<compile_context>
chip_gen: v6e
topology: v6e:2x2x1
jax: 0.10.0
libtpu: 0.0.40
codegen_flags: <defaults>
</compile_context>

<pallas_src>
import jax
import jax.numpy as jnp
from jax.experimental import pallas as pl
from jax.experimental.pallas import tpu as pltpu


def basic_block_kernel(x_ref, w1_ref, w2_ref, s1_ref, b1_ref, s2_ref, b2_ref,
                       out_ref, pad_scr):
    """One batch element per grid step.

    x_ref   : (1, H, W, C)       un-padded NHWC input (also used as the residual)
    w1_ref  : (3, 3C, C)         conv1 weights, row(dy)-major, K = kw*Cin
    w2_ref  : (3, 3C, C)         conv2 weights
    s*_ref  : (1, C)             folded BN scale
    b*_ref  : (1, C)             folded BN bias
    out_ref : (1, H, W, C)
    pad_scr : VMEM (H+2, W+2, C) f32 scratch, reused for both conv inputs
    """
    _, H, W, C = out_ref.shape
    mm_dtype = w1_ref.dtype          # bf16 on v6e/v7x, f32 otherwise

    x = x_ref[0]                     # (H, W, C), f32

    # Zero only the 1-px border (interior is fully overwritten below).  Done
    # every step (cheap: ~2(W+2)C + 2HC elements) so the batch grid axis can be
    # "parallel" (megacore-shardable on v7x) without persistent-scratch hazards.
    zrow = jnp.zeros((1, W + 2, C), jnp.float32)
    zcol = jnp.zeros((H, 1, C), jnp.float32)
    pad_scr[0:1, :, :] = zrow
    pad_scr[H + 1:H + 2, :, :] = zrow
    pad_scr[1:H + 1, 0:1, :] = zcol
    pad_scr[1:H + 1, W + 1:W + 2, :] = zcol

    def conv3x3(w_ref):
        # Concatenate the three dx-shifted windows along channels -> K = 3C.
        xcat = jnp.concatenate(
            [pad_scr[:, 0:W, :],
             pad_scr[:, 1:W + 1, :],
             pad_scr[:, 2:W + 2, :]], axis=-1).astype(mm_dtype)   # (H+2, W, 3C)
        acc = jnp.zeros((H * W, C), jnp.float32)
        for dy in range(3):                       # 3 fat matmuls instead of 9 tiny ones
            patch = xcat[dy:dy + H].reshape(H * W, 3 * C)
            acc = acc + jnp.dot(patch, w_ref[dy],
                                preferred_element_type=jnp.float32)
        return acc

    # ---- conv1 + bn1 (folded) + relu
    pad_scr[1:H + 1, 1:W + 1, :] = x
    mid = jnp.maximum(conv3x3(w1_ref) * s1_ref[...] + b1_ref[...], 0.0)

    # ---- conv2 (reuse the same padded scratch) + bn2 + residual + relu
    pad_scr[1:H + 1, 1:W + 1, :] = mid.reshape(H, W, C)
    out = conv3x3(w2_ref) * s2_ref[...] + b2_ref[...]
    out = jnp.maximum(out + x.reshape(H * W, C), 0.0)
    out_ref[0] = out.reshape(H, W, C)


def basic_block_forward(x_nchw, w1_oihw, w2_oihw, bn1, bn2, eps=1e-5,
                        matmul_dtype=jnp.float32):
    """BasicBlock forward (stride=1, downsample=None).  x_nchw: (N, C, H, W) f32.

    matmul_dtype=jnp.bfloat16 is recommended on v6e/v7x (2-4x MXU throughput,
    half the weight DMA bytes); BN / residual math stays f32.
    """
    N, C, H, W = x_nchw.shape
    x_nhwc = jnp.transpose(x_nchw, (0, 2, 3, 1))          # (N, H, W, C)

    # OIHW -> (kh, kw*Cin, Cout): one (3C, C) weight slab per kernel row dy.
    def repack(w):
        return jnp.transpose(w, (2, 3, 1, 0)).reshape(3, 3 * C, C).astype(matmul_dtype)
    w1 = repack(w1_oihw)
    w2 = repack(w2_oihw)

    def fold(bn):
        gamma, beta, mean, var = bn
        scale = gamma / jnp.sqrt(var + eps)
        bias = beta - mean * scale
        return scale.reshape(1, C), bias.reshape(1, C)
    s1, b1 = fold(bn1)
    s2, b2 = fold(bn2)

    out_nhwc = pl.pallas_call(
        basic_block_kernel,
        out_shape=jax.ShapeDtypeStruct((N, H, W, C), jnp.float32),
        grid=(N,),
        in_specs=[
            pl.BlockSpec((1, H, W, C), lambda n: (n, 0, 0, 0)),   # x (also residual)
            pl.BlockSpec((3, 3 * C, C), lambda n: (0, 0, 0)),     # w1 (grid-invariant)
            pl.BlockSpec((3, 3 * C, C), lambda n: (0, 0, 0)),     # w2 (grid-invariant)
            pl.BlockSpec((1, C), lambda n: (0, 0)),               # s1
            pl.BlockSpec((1, C), lambda n: (0, 0)),               # b1
            pl.BlockSpec((1, C), lambda n: (0, 0)),               # s2
            pl.BlockSpec((1, C), lambda n: (0, 0)),               # b2
        ],
        out_specs=pl.BlockSpec((1, H, W, C), lambda n: (n, 0, 0, 0)),
        scratch_shapes=[pltpu.VMEM((H + 2, W + 2, C), jnp.float32)],
        compiler_params=pltpu.CompilerParams(
            # No state carried across batch steps -> shardable across v7x's two
            # TensorCores; harmless on single-TC v5e/v6e.
            dimension_semantics=("parallel",),
            # Explicit VMEM budget with headroom (v7x physical VMEM is 64 MiB).
            vmem_limit_bytes=32 * 1024 * 1024,
        ),
    )(x_nhwc, w1, w2, s1, b1, s2, b2)

    return jnp.transpose(out_nhwc, (0, 3, 1, 2))          # back to NCHW


def reference_forward(x_nchw, w1_oihw, w2_oihw, bn1, bn2, eps=1e-5):
    """Pure-JAX reference matching PyTorch eval-mode BasicBlock."""
    x = jnp.transpose(x_nchw, (0, 2, 3, 1))
    dn = ('NHWC', 'HWIO', 'NHWC')

    def conv(inp, w_oihw):
        w = jnp.transpose(w_oihw, (2, 3, 1, 0))
        return jax.lax.conv_general_dilated(
            inp, w, window_strides=(1, 1), padding=((1, 1), (1, 1)),
            dimension_numbers=dn)

    def bn(inp, p):
        gamma, beta, mean, var = p
        return (inp - mean) / jnp.sqrt(var + eps) * gamma + beta

    y = jnp.maximum(bn(conv(x, w1_oihw), bn1), 0.0)
    z = bn(conv(y, w2_oihw), bn2)
    z = jnp.maximum(z + x, 0.0)
    return jnp.transpose(z, (0, 3, 1, 2))


if __name__ == "__main__":
    N, C, H, W = 2, 4, 16, 16   # in_channel == out_channel, stride=1, downsample=None

    key = jax.random.PRNGKey(0)
    keys = jax.random.split(key, 9)
    x = jax.random.normal(keys[0], (N, C, H, W), jnp.float32)

    w1 = jax.random.normal(keys[1], (C, C, 3, 3), jnp.float32) * 0.1   # OIHW
    w2 = jax.random.normal(keys[2], (C, C, 3, 3), jnp.float32) * 0.1   # OIHW

    bn1 = (jax.random.uniform(keys[3], (C,), jnp.float32, 0.5, 1.5),   # gamma
           jax.random.normal(keys[4], (C,), jnp.float32) * 0.1,        # beta
           jax.random.normal(keys[5], (C,), jnp.float32) * 0.1,        # running_mean
           jax.random.uniform(keys[6], (C,), jnp.float32, 0.5, 1.5))   # running_var
    bn2 = (jax.random.uniform(keys[7], (C,), jnp.float32, 0.5, 1.5),
           jax.random.normal(keys[8], (C,), jnp.float32) * 0.1,
           jnp.zeros((C,), jnp.float32),
           jnp.ones((C,), jnp.float32))

    ref = reference_forward(x, w1, w2, bn1, bn2)

    # f32-matmul path (matches PyTorch eval-mode numerics).
    out = jax.block_until_ready(basic_block_forward(x, w1, w2, bn1, bn2))
    assert out.shape == (N, C, H, W)
    assert jnp.allclose(out, ref, rtol=1e-4, atol=1e-4), \
        f"f32 max abs diff = {jnp.max(jnp.abs(out - ref))}"

    # bf16-matmul path (recommended on v6e/v7x; f32 accumulation + f32 BN/residual).
    out_bf16 = jax.block_until_ready(
        basic_block_forward(x, w1, w2, bn1, bn2, matmul_dtype=jnp.bfloat16))
    assert jnp.allclose(out_bf16, ref, rtol=5e-2, atol=5e-2), \
        f"bf16 max abs diff = {jnp.max(jnp.abs(out_bf16 - ref))}"

    print("KERNEL_OK")
</pallas_src>

<mosaic_0001>
module attributes {stable_mosaic.version = 11 : i64} {
  func.func @basic_block_kernel(%arg0: i32, %arg1: memref<1x16x16x4xf32, #tpu.memory_space<vmem>>, %arg2: memref<3x12x4xf32, #tpu.memory_space<vmem>>, %arg3: memref<3x12x4xf32, #tpu.memory_space<vmem>>, %arg4: memref<1x4xf32, #tpu.memory_space<vmem>>, %arg5: memref<1x4xf32, #tpu.memory_space<vmem>>, %arg6: memref<1x4xf32, #tpu.memory_space<vmem>>, %arg7: memref<1x4xf32, #tpu.memory_space<vmem>>, %arg8: memref<1x16x16x4xf32, #tpu.memory_space<vmem>>, %arg9: memref<18x18x4xf32, #tpu.memory_space<vmem>>) attributes {dimension_semantics = [#tpu.dimension_semantics<parallel>], iteration_bounds = array<i64: 2>, scalar_prefetch = 0 : i64, scratch_operands = 1 : i64, tpu.core_type = #tpu.core_type<tc>, window_params = [{transform_indices = @transform_0, window_bounds = array<i64: 1, 16, 16, 4>}, {pipeline_mode = #tpu.pipeline_mode<synchronous>, transform_indices = @transform_1, window_bounds = array<i64: 3, 12, 4>}, {pipeline_mode = #tpu.pipeline_mode<synchronous>, transform_indices = @transform_2, window_bounds = array<i64: 3, 12, 4>}, {pipeline_mode = #tpu.pipeline_mode<synchronous>, transform_indices = @transform_3, window_bounds = array<i64: 1, 4>}, {pipeline_mode = #tpu.pipeline_mode<synchronous>, transform_indices = @transform_4, window_bounds = array<i64: 1, 4>}, {pipeline_mode = #tpu.pipeline_mode<synchronous>, transform_indices = @transform_5, window_bounds = array<i64: 1, 4>}, {pipeline_mode = #tpu.pipeline_mode<synchronous>, transform_indices = @transform_6, window_bounds = array<i64: 1, 4>}, {transform_indices = @transform_7, window_bounds = array<i64: 1, 16, 16, 4>}]} {
    %c0 = arith.constant 0 : index
    %c0_0 = arith.constant 0 : index
    %c0_1 = arith.constant 0 : index
    %c0_2 = arith.constant 0 : index
    %0 = vector.load %arg1[%c0, %c0_0, %c0_1, %c0_2] : memref<1x16x16x4xf32, #tpu.memory_space<vmem>>, vector<1x16x16x4xf32>
    %1 = vector.shape_cast %0 : vector<1x16x16x4xf32> to vector<16x16x4xf32>
    %cst = arith.constant 0.000000e+00 : f32
    %2 = vector.broadcast %cst : f32 to vector<1x18x4xf32>
    %cst_3 = arith.constant 0.000000e+00 : f32
    %3 = vector.broadcast %cst_3 : f32 to vector<16x1x4xf32>
    %c0_4 = arith.constant 0 : index
    %c0_5 = arith.constant 0 : index
    %c0_6 = arith.constant 0 : index
    %4 = vector.load %arg9[%c0_4, %c0_5, %c0_6] : memref<18x18x4xf32, #tpu.memory_space<vmem>>, vector<1x18x4xf32>
    tpu.vector_store %arg9[%c0_4, %c0_5, %c0_6], %2 {strides = array<i32>} : memref<18x18x4xf32, #tpu.memory_space<vmem>>, vector<1x18x4xf32>,
    %c17 = arith.constant 17 : index
    %c0_7 = arith.constant 0 : index
    %c0_8 = arith.constant 0 : index
    %5 = vector.load %arg9[%c17, %c0_7, %c0_8] : memref<18x18x4xf32, #tpu.memory_space<vmem>>, vector<1x18x4xf32>
    tpu.vector_store %arg9[%c17, %c0_7, %c0_8], %2 {strides = array<i32>} : memref<18x18x4xf32, #tpu.memory_space<vmem>>, vector<1x18x4xf32>,
    %c1 = arith.constant 1 : index
    %c0_9 = arith.constant 0 : index
    %c0_10 = arith.constant 0 : index
    %6 = vector.load %arg9[%c1, %c0_9, %c0_10] : memref<18x18x4xf32, #tpu.memory_space<vmem>>, vector<16x1x4xf32>
    tpu.vector_store %arg9[%c1, %c0_9, %c0_10], %3 {strides = array<i32>} : memref<18x18x4xf32, #tpu.memory_space<vmem>>, vector<16x1x4xf32>,
    %c1_11 = arith.constant 1 : index
    %c17_12 = arith.constant 17 : index
    %c0_13 = arith.constant 0 : index
    %7 = vector.load %arg9[%c1_11, %c17_12, %c0_13] : memref<18x18x4xf32, #tpu.memory_space<vmem>>, vector<16x1x4xf32>
    tpu.vector_store %arg9[%c1_11, %c17_12, %c0_13], %3 {strides = array<i32>} : memref<18x18x4xf32, #tpu.memory_space<vmem>>, vector<16x1x4xf32>,
    %c1_14 = arith.constant 1 : index
    %c1_15 = arith.constant 1 : index
    %c0_16 = arith.constant 0 : index
    %8 = vector.load %arg9[%c1_14, %c1_15, %c0_16] : memref<18x18x4xf32, #tpu.memory_space<vmem>>, vector<16x16x4xf32>
    tpu.vector_store %arg9[%c1_14, %c1_15, %c0_16], %1 {strides = array<i32>} : memref<18x18x4xf32, #tpu.memory_space<vmem>>, vector<16x16x4xf32>,
    %c0_17 = arith.constant 0 : index
    %c0_18 = arith.constant 0 : index
    %c0_19 = arith.constant 0 : index
    %9 = vector.load %arg9[%c0_17, %c0_18, %c0_19] : memref<18x18x4xf32, #tpu.memory_space<vmem>>, vector<18x16x4xf32>
    %c0_20 = arith.constant 0 : index
    %c1_21 = arith.constant 1 : index
    %c0_22 = arith.constant 0 : index
    %10 = vector.load %arg9[%c0_20, %c1_21, %c0_22] : memref<18x18x4xf32, #tpu.memory_space<vmem>>, vector<18x16x4xf32>
    %c0_23 = arith.constant 0 : index
    %c2 = arith.constant 2 : index
    %c0_24 = arith.constant 0 : index
    %11 = vector.load %arg9[%c0_23, %c2, %c0_24] : memref<18x18x4xf32, #tpu.memory_space<vmem>>, vector<18x16x4xf32>
    %12 = tpu.concatenate %9, %10, %11 in 2 : vector<18x16x4xf32>, vector<18x16x4xf32>, vector<18x16x4xf32> -> vector<18x16x12xf32>
    %cst_25 = arith.constant 0.000000e+00 : f32
    %13 = vector.broadcast %cst_25 : f32 to vector<256x4xf32>
    %14 = vector.extract_strided_slice %12 {offsets = [0, 0, 0], sizes = [16, 16, 12], strides = [1, 1, 1]} : vector<18x16x12xf32> to vector<16x16x12xf32>
    %15 = vector.shape_cast %14 : vector<16x16x12xf32> to vector<256x12xf32>
    %c0_26 = arith.constant 0 : index
    %c0_27 = arith.constant 0 : index
    %c0_28 = arith.constant 0 : index
    %16 = vector.load %arg2[%c0_26, %c0_27, %c0_28] : memref<3x12x4xf32, #tpu.memory_space<vmem>>, vector<1x12x4xf32>
    %17 = vector.shape_cast %16 : vector<1x12x4xf32> to vector<12x4xf32>
    %cst_29 = arith.constant dense<0.000000e+00> : vector<256x4xf32>
    %18 = tpu.matmul %15, %17, %cst_29 {dimension_numbers = #tpu.dot_dimension_numbers<[1], [0], [0], [1], [0, 0, 1, 1], [], []>} : vector<256x12xf32>, vector<12x4xf32>, vector<256x4xf32> -> vector<256x4xf32>
    %19 = arith.addf %13, %18 : vector<256x4xf32>
    %20 = vector.extract_strided_slice %12 {offsets = [1, 0, 0], sizes = [16, 16, 12], strides = [1, 1, 1]} : vector<18x16x12xf32> to vector<16x16x12xf32>
    %21 = vector.shape_cast %20 : vector<16x16x12xf32> to vector<256x12xf32>
    %c1_30 = arith.constant 1 : index
    %c0_31 = arith.constant 0 : index
    %c0_32 = arith.constant 0 : index
    %22 = vector.load %arg2[%c1_30, %c0_31, %c0_32] : memref<3x12x4xf32, #tpu.memory_space<vmem>>, vector<1x12x4xf32>
    %23 = vector.shape_cast %22 : vector<1x12x4xf32> to vector<12x4xf32>
    %cst_33 = arith.constant dense<0.000000e+00> : vector<256x4xf32>
    %24 = tpu.matmul %21, %23, %cst_33 {dimension_numbers = #tpu.dot_dimension_numbers<[1], [0], [0], [1], [0, 0, 1, 1], [], []>} : vector<256x12xf32>, vector<12x4xf32>, vector<256x4xf32> -> vector<256x4xf32>
    %25 = arith.addf %19, %24 : vector<256x4xf32>
    %26 = vector.extract_strided_slice %12 {offsets = [2, 0, 0], sizes = [16, 16, 12], strides = [1, 1, 1]} : vector<18x16x12xf32> to vector<16x16x12xf32>
    %27 = vector.shape_cast %26 : vector<16x16x12xf32> to vector<256x12xf32>
    %c2_34 = arith.constant 2 : index
    %c0_35 = arith.constant 0 : index
    %c0_36 = arith.constant 0 : index
    %28 = vector.load %arg2[%c2_34, %c0_35, %c0_36] : memref<3x12x4xf32, #tpu.memory_space<vmem>>, vector<1x12x4xf32>
    %29 = vector.shape_cast %28 : vector<1x12x4xf32> to vector<12x4xf32>
    %cst_37 = arith.constant dense<0.000000e+00> : vector<256x4xf32>
    %30 = tpu.matmul %27, %29, %cst_37 {dimension_numbers = #tpu.dot_dimension_numbers<[1], [0], [0], [1], [0, 0, 1, 1], [], []>} : vector<256x12xf32>, vector<12x4xf32>, vector<256x4xf32> -> vector<256x4xf32>
    %31 = arith.addf %25, %30 : vector<256x4xf32>
    %c0_38 = arith.constant 0 : index
    %c0_39 = arith.constant 0 : index
    %32 = vector.load %arg4[%c0_38, %c0_39] : memref<1x4xf32, #tpu.memory_space<vmem>>, vector<1x4xf32>
    %33 = vector.broadcast %32 : vector<1x4xf32> to vector<256x4xf32>
    %34 = arith.mulf %31, %33 : vector<256x4xf32>
    %c0_40 = arith.constant 0 : index
    %c0_41 = arith.constant 0 : index
    %35 = vector.load %arg5[%c0_40, %c0_41] : memref<1x4xf32, #tpu.memory_space<vmem>>, vector<1x4xf32>
    %36 = vector.broadcast %35 : vector<1x4xf32> to vector<256x4xf32>
    %37 = arith.addf %34, %36 : vector<256x4xf32>
    %cst_42 = arith.constant 0.000000e+00 : f32
    %38 = vector.broadcast %cst_42 : f32 to vector<256x4xf32>
    %39 = arith.maximumf %37, %38 : vector<256x4xf32>
    %40 = vector.shape_cast %39 : vector<256x4xf32> to vector<16x16x4xf32>
    %c1_43 = arith.constant 1 : index
    %c1_44 = arith.constant 1 : index
    %c0_45 = arith.constant 0 : index
    %41 = vector.load %arg9[%c1_43, %c1_44, %c0_45] : memref<18x18x4xf32, #tpu.memory_space<vmem>>, vector<16x16x4xf32>
    tpu.vector_store %arg9[%c1_43, %c1_44, %c0_45], %40 {strides = array<i32>} : memref<18x18x4xf32, #tpu.memory_space<vmem>>, vector<16x16x4xf32>,
    %c0_46 = arith.constant 0 : index
    %c0_47 = arith.constant 0 : index
    %c0_48 = arith.constant 0 : index
    %42 = vector.load %arg9[%c0_46, %c0_47, %c0_48] : memref<18x18x4xf32, #tpu.memory_space<vmem>>, vector<18x16x4xf32>
    %c0_49 = arith.constant 0 : index
    %c1_50 = arith.constant 1 : index
    %c0_51 = arith.constant 0 : index
    %43 = vector.load %arg9[%c0_49, %c1_50, %c0_51] : memref<18x18x4xf32, #tpu.memory_space<vmem>>, vector<18x16x4xf32>
    %c0_52 = arith.constant 0 : index
    %c2_53 = arith.constant 2 : index
    %c0_54 = arith.constant 0 : index
    %44 = vector.load %arg9[%c0_52, %c2_53, %c0_54] : memref<18x18x4xf32, #tpu.memory_space<vmem>>, vector<18x16x4xf32>
    %45 = tpu.concatenate %42, %43, %44 in 2 : vector<18x16x4xf32>, vector<18x16x4xf32>, vector<18x16x4xf32> -> vector<18x16x12xf32>
    %cst_55 = arith.constant 0.000000e+00 : f32
    %46 = vector.broadcast %cst_55 : f32 to vector<256x4xf32>
    %47 = vector.extract_strided_slice %45 {offsets = [0, 0, 0], sizes = [16, 16, 12], strides = [1, 1, 1]} : vector<18x16x12xf32> to vector<16x16x12xf32>
    %48 = vector.shape_cast %47 : vector<16x16x12xf32> to vector<256x12xf32>
    %c0_56 = arith.constant 0 : index
    %c0_57 = arith.constant 0 : index
    %c0_58 = arith.constant 0 : index
    %49 = vector.load %arg3[%c0_56, %c0_57, %c0_58] : memref<3x12x4xf32, #tpu.memory_space<vmem>>, vector<1x12x4xf32>
    %50 = vector.shape_cast %49 : vector<1x12x4xf32> to vector<12x4xf32>
    %cst_59 = arith.constant dense<0.000000e+00> : vector<256x4xf32>
    %51 = tpu.matmul %48, %50, %cst_59 {dimension_numbers = #tpu.dot_dimension_numbers<[1], [0], [0], [1], [0, 0, 1, 1], [], []>} : vector<256x12xf32>, vector<12x4xf32>, vector<256x4xf32> -> vector<256x4xf32>
    %52 = arith.addf %46, %51 : vector<256x4xf32>
    %53 = vector.extract_strided_slice %45 {offsets = [1, 0, 0], sizes = [16, 16, 12], strides = [1, 1, 1]} : vector<18x16x12xf32> to vector<16x16x12xf32>
    %54 = vector.shape_cast %53 : vector<16x16x12xf32> to vector<256x12xf32>
    %c1_60 = arith.constant 1 : index
    %c0_61 = arith.constant 0 : index
    %c0_62 = arith.constant 0 : index
    %55 = vector.load %arg3[%c1_60, %c0_61, %c0_62] : memref<3x12x4xf32, #tpu.memory_space<vmem>>, vector<1x12x4xf32>
    %56 = vector.shape_cast %55 : vector<1x12x4xf32> to vector<12x4xf32>
    %cst_63 = arith.constant dense<0.000000e+00> : vector<256x4xf32>
    %57 = tpu.matmul %54, %56, %cst_63 {dimension_numbers = #tpu.dot_dimension_numbers<[1], [0], [0], [1], [0, 0, 1, 1], [], []>} : vector<256x12xf32>, vector<12x4xf32>, vector<256x4xf32> -> vector<256x4xf32>
    %58 = arith.addf %52, %57 : vector<256x4xf32>
    %59 = vector.extract_strided_slice %45 {offsets = [2, 0, 0], sizes = [16, 16, 12], strides = [1, 1, 1]} : vector<18x16x12xf32> to vector<16x16x12xf32>
    %60 = vector.shape_cast %59 : vector<16x16x12xf32> to vector<256x12xf32>
    %c2_64 = arith.constant 2 : index
    %c0_65 = arith.constant 0 : index
    %c0_66 = arith.constant 0 : index
    %61 = vector.load %arg3[%c2_64, %c0_65, %c0_66] : memref<3x12x4xf32, #tpu.memory_space<vmem>>, vector<1x12x4xf32>
    %62 = vector.shape_cast %61 : vector<1x12x4xf32> to vector<12x4xf32>
    %cst_67 = arith.constant dense<0.000000e+00> : vector<256x4xf32>
    %63 = tpu.matmul %60, %62, %cst_67 {dimension_numbers = #tpu.dot_dimension_numbers<[1], [0], [0], [1], [0, 0, 1, 1], [], []>} : vector<256x12xf32>, vector<12x4xf32>, vector<256x4xf32> -> vector<256x4xf32>
    %64 = arith.addf %58, %63 : vector<256x4xf32>
    %c0_68 = arith.constant 0 : index
    %c0_69 = arith.constant 0 : index
    %65 = vector.load %arg6[%c0_68, %c0_69] : memref<1x4xf32, #tpu.memory_space<vmem>>, vector<1x4xf32>
    %66 = vector.broadcast %65 : vector<1x4xf32> to vector<256x4xf32>
    %67 = arith.mulf %64, %66 : vector<256x4xf32>
    %c0_70 = arith.constant 0 : index
    %c0_71 = arith.constant 0 : index
    %68 = vector.load %arg7[%c0_70, %c0_71] : memref<1x4xf32, #tpu.memory_space<vmem>>, vector<1x4xf32>
    %69 = vector.broadcast %68 : vector<1x4xf32> to vector<256x4xf32>
    %70 = arith.addf %67, %69 : vector<256x4xf32>
    %71 = vector.shape_cast %1 : vector<16x16x4xf32> to vector<256x4xf32>
    %72 = arith.addf %70, %71 : vector<256x4xf32>
    %cst_72 = arith.constant 0.000000e+00 : f32
    %73 = vector.broadcast %cst_72 : f32 to vector<256x4xf32>
    %74 = arith.maximumf %72, %73 : vector<256x4xf32>
    %75 = vector.shape_cast %74 : vector<256x4xf32> to vector<16x16x4xf32>
    %c0_73 = arith.constant 0 : index
    %c0_74 = arith.constant 0 : index
    %c0_75 = arith.constant 0 : index
    %c0_76 = arith.constant 0 : index
    %76 = vector.load %arg8[%c0_73, %c0_74, %c0_75, %c0_76] : memref<1x16x16x4xf32, #tpu.memory_space<vmem>>, vector<1x16x16x4xf32>
    %77 = vector.shape_cast %76 : vector<1x16x16x4xf32> to vector<16x16x4xf32>
    %78 = vector.shape_cast %75 : vector<16x16x4xf32> to vector<1x16x16x4xf32>
    tpu.vector_store %arg8[%c0_73, %c0_74, %c0_75, %c0_76], %78 {strides = array<i32>} : memref<1x16x16x4xf32, #tpu.memory_space<vmem>>, vector<1x16x16x4xf32>,
    return
  }
  func.func @transform_0(%arg0: i32) -> (i32, i32, i32, i32) {
    %c0_i32 = arith.constant 0 : i32
    %c0_i32_0 = arith.constant 0 : i32
    %c0_i32_1 = arith.constant 0 : i32
    %c0_i32_2 = arith.constant 0 : i32
    return %arg0, %c0_i32, %c0_i32_0, %c0_i32_1 : i32, i32, i32, i32
  }
  func.func @transform_1(%arg0: i32) -> (i32, i32, i32) {
    %c0_i32 = arith.constant 0 : i32
    %c0_i32_0 = arith.constant 0 : i32
    %c0_i32_1 = arith.constant 0 : i32
    %c0_i32_2 = arith.constant 0 : i32
    return %c0_i32, %c0_i32_0, %c0_i32_1 : i32, i32, i32
  }
  func.func @transform_2(%arg0: i32) -> (i32, i32, i32) {
    %c0_i32 = arith.constant 0 : i32
    %c0_i32_0 = arith.constant 0 : i32
    %c0_i32_1 = arith.constant 0 : i32
    %c0_i32_2 = arith.constant 0 : i32
    return %c0_i32, %c0_i32_0, %c0_i32_1 : i32, i32, i32
  }
  func.func @transform_3(%arg0: i32) -> (i32, i32) {
    %c0_i32 = arith.constant 0 : i32
    %c0_i32_0 = arith.constant 0 : i32
    %c0_i32_1 = arith.constant 0 : i32
    return %c0_i32, %c0_i32_0 : i32, i32
  }
  func.func @transform_4(%arg0: i32) -> (i32, i32) {
    %c0_i32 = arith.constant 0 : i32
    %c0_i32_0 = arith.constant 0 : i32
    %c0_i32_1 = arith.constant 0 : i32
    return %c0_i32, %c0_i32_0 : i32, i32
  }
  func.func @transform_5(%arg0: i32) -> (i32, i32) {
    %c0_i32 = arith.constant 0 : i32
    %c0_i32_0 = arith.constant 0 : i32
    %c0_i32_1 = arith.constant 0 : i32
    return %c0_i32, %c0_i32_0 : i32, i32
  }
  func.func @transform_6(%arg0: i32) -> (i32, i32) {
    %c0_i32 = arith.constant 0 : i32
    %c0_i32_0 = arith.constant 0 : i32
    %c0_i32_1 = arith.constant 0 : i32
    return %c0_i32, %c0_i32_0 : i32, i32
  }
  func.func @transform_7(%arg0: i32) -> (i32, i32, i32, i32) {
    %c0_i32 = arith.constant 0 : i32
    %c0_i32_0 = arith.constant 0 : i32
    %c0_i32_1 = arith.constant 0 : i32
    %c0_i32_2 = arith.constant 0 : i32
    return %arg0, %c0_i32, %c0_i32_0, %c0_i32_1 : i32, i32, i32, i32
  }
}

</mosaic_0001>

<llo_original>
// kernel: tpu_custom_call.1
$region0: #{tpu_custom_call.1}
  #allocation0 [shape = 'u32[]', space=smem, size = 0x4, offset = 0x4, fixed_abs, tag = 'smem constant byte address 0x4 - core index']
  #allocation1 [shape = 'u32[144,128]{1,0:T(1,128)}', space=vmem, size = 0x12000, scoped, tag = 'internal scratch']
  #allocation2 [shape = 'f32[18,18,4]{2,1,0:T(8,128)}', space=vmem, size = 0x36000, scoped, tag = 'scratch operand']
  %s0 = inlined_call_operand.vmem [shape: f32[2,16,16,4], index: 0, kind: input, shape index: {}]
  %s1 = inlined_call_operand.vmem [shape: f32[3,12,4], index: 1, kind: input, shape index: {}]
  %s2 = inlined_call_operand.vmem [shape: f32[3,12,4], index: 2, kind: input, shape index: {}]
  %s3 = inlined_call_operand.vmem [shape: f32[1,4], index: 3, kind: input, shape index: {}]
  %s4 = inlined_call_operand.vmem [shape: f32[1,4], index: 4, kind: input, shape index: {}]
  %s5 = inlined_call_operand.vmem [shape: f32[1,4], index: 5, kind: input, shape index: {}]
  %s6 = inlined_call_operand.vmem [shape: f32[1,4], index: 6, kind: input, shape index: {}]
  %s7 = inlined_call_operand.vmem [shape: f32[2,16,16,4], index: 7, kind: output, shape index: {}]
  %s8 = sld [smem:[#allocation0]]
  $region61: #{tpu_custom_call.1} parent=0
    _
  %s10 = ssub.s32 1, %s8
  %s11 = scalar_select 0, %s10, %s8
  loop: start=0, step=1, limit=4
  $region2: #{tpu_custom_call.1} parent=0 // loop_pre_header
    _
  $region3: #{tpu_custom_call.1} parent=0 // loop_header
    %s13 = sphi 0, %s17
    %p14 = scmp.ge.s32.totalorder %s13, 4
    %s23 = sphi 0, %s25
    %s26 = sphi 0, %s23
    %s27 = sphi 0, %s26
    %s43 = sphi 0, %s27
    %s47 = sphi 0, %s47
    %s49 = sphi 0, %s47
    %s50 = sphi 0, %s49
    %s64 = sphi 0, %s50
    %s68 = sphi 0, %s68
    %s70 = sphi 0, %s68
    %s71 = sphi 0, %s70
    %s85 = sphi 0, %s71
    %s89 = sphi 0, %s89
    %s91 = sphi 0, %s89
    %s92 = sphi 0, %s91
    %s106 = sphi 0, %s92
    %s110 = sphi 0, %s110
    %s112 = sphi 0, %s110
    %s113 = sphi 0, %s112
    %s127 = sphi 0, %s113
    %s131 = sphi 0, %s131
    %s133 = sphi 0, %s131
    %s134 = sphi 0, %s133
    %s148 = sphi 0, %s134
    %s152 = sphi 0, %s152
    %s154 = sphi 0, %s152
    %s155 = sphi 0, %s154
    %s169 = sphi 0, %s155
    %s175 = sphi 0, %s177
    %s178 = sphi 0, %s175
    %s179 = sphi 0, %s178
    %s195 = sphi 0, %s179
  $region4: #{tpu_custom_call.1} parent=0 // loop_header_branch
    %16 = sbr.rel (%p14) target = $region8
  $region5: #{tpu_custom_call.1} parent=0 // loop_body
    %s18 = ssub.s32 %s13, 1
    %s19 = ssub.s32 %s13, 2
    %s20 = sadd.s32 %s13, 1
    %s21 = ssub.s32 %s13, %s20
    %p22 = scmp.eq.s32.totalorder %s21, 0
    %s24 = sadd.s32 %s23, 1
    %s25 = scalar_select %p22, %s23, %s24
    %p28 = pneg %p22
    %p29 = scmp.eq.s32.totalorder %s13, 1
    %p30 = por %p28, %p29
    %p31 = scmp.ne.s32.totalorder %s23, %s26
    %p32 = scmp.eq.s32.totalorder %s13, 0
    %p33 = por %p31, %p32
    %p34 = scmp.ne.s32.totalorder %s23, %s26
    %p35 = scmp.eq.s32.totalorder %s18, 1
    %p36 = por %p34, %p35
    %p37 = scmp.ne.s32.totalorder %s26, %s27
    %p38 = scmp.eq.s32.totalorder %s18, 0
    %p39 = por %p37, %p38
    %p40 = scmp.ne.s32.totalorder %s26, %s27
    %p41 = scmp.eq.s32.totalorder %s19, 1
    %p42 = por %p40, %p41
    %p44 = scmp.ne.s32.totalorder %s27, %s43
    %p45 = scmp.eq.s32.totalorder %s19, 0
    %p46 = por %p44, %p45
    %s48 = sadd.s32 %s47, 1
    %p51 = scmp.eq.s32.totalorder %s13, 1
    %p52 = scmp.ne.s32.totalorder %s47, %s49
    %p53 = scmp.eq.s32.totalorder %s13, 0
    %p54 = por %p52, %p53
    %p55 = scmp.ne.s32.totalorder %s47, %s49
    %p56 = scmp.eq.s32.totalorder %s18, 1
    %p57 = por %p55, %p56
    %p58 = scmp.ne.s32.totalorder %s49, %s50
    %p59 = scmp.eq.s32.totalorder %s18, 0
    %p60 = por %p58, %p59
    %p61 = scmp.ne.s32.totalorder %s49, %s50
    %p62 = scmp.eq.s32.totalorder %s19, 1
    %p63 = por %p61, %p62
    %p65 = scmp.ne.s32.totalorder %s50, %s64
    %p66 = scmp.eq.s32.totalorder %s19, 0
    %p67 = por %p65, %p66
    %s69 = sadd.s32 %s68, 1
    %p72 = scmp.eq.s32.totalorder %s13, 1
    %p73 = scmp.ne.s32.totalorder %s68, %s70
    %p74 = scmp.eq.s32.totalorder %s13, 0
    %p75 = por %p73, %p74
    %p76 = scmp.ne.s32.totalorder %s68, %s70
    %p77 = scmp.eq.s32.totalorder %s18, 1
    %p78 = por %p76, %p77
    %p79 = scmp.ne.s32.totalorder %s70, %s71
    %p80 = scmp.eq.s32.totalorder %s18, 0
    %p81 = por %p79, %p80
    %p82 = scmp.ne.s32.totalorder %s70, %s71
    %p83 = scmp.eq.s32.totalorder %s19, 1
    %p84 = por %p82, %p83
    %p86 = scmp.ne.s32.totalorder %s71, %s85
    %p87 = scmp.eq.s32.totalorder %s19, 0
    %p88 = por %p86, %p87
    %s90 = sadd.s32 %s89, 1
    %p93 = scmp.eq.s32.totalorder %s13, 1
    %p94 = scmp.ne.s32.totalorder %s89, %s91
    %p95 = scmp.eq.s32.totalorder %s13, 0
    %p96 = por %p94, %p95
    %p97 = scmp.ne.s32.totalorder %s89, %s91
    %p98 = scmp.eq.s32.totalorder %s18, 1
    %p99 = por %p97, %p98
    %p100 = scmp.ne.s32.totalorder %s91, %s92
    %p101 = scmp.eq.s32.totalorder %s18, 0
    %p102 = por %p100, %p101
    %p103 = scmp.ne.s32.totalorder %s91, %s92
    %p104 = scmp.eq.s32.totalorder %s19, 1
    %p105 = por %p103, %p104
    %p107 = scmp.ne.s32.totalorder %s92, %s106
    %p108 = scmp.eq.s32.totalorder %s19, 0
    %p109 = por %p107, %p108
    %s111 = sadd.s32 %s110, 1
    %p114 = scmp.eq.s32.totalorder %s13, 1
    %p115 = scmp.ne.s32.totalorder %s110, %s112
    %p116 = scmp.eq.s32.totalorder %s13, 0
    %p117 = por %p115, %p116
    %p118 = scmp.ne.s32.totalorder %s110, %s112
    %p119 = scmp.eq.s32.totalorder %s18, 1
    %p120 = por %p118, %p119
    %p121 = scmp.ne.s32.totalorder %s112, %s113
    %p122 = scmp.eq.s32.totalorder %s18, 0
    %p123 = por %p121, %p122
    %p124 = scmp.ne.s32.totalorder %s112, %s113
    %p125 = scmp.eq.s32.totalorder %s19, 1
    %p126 = por %p124, %p125
    %p128 = scmp.ne.s32.totalorder %s113, %s127
    %p129 = scmp.eq.s32.totalorder %s19, 0
    %p130 = por %p128, %p129
    %s132 = sadd.s32 %s131, 1
    %p135 = scmp.eq.s32.totalorder %s13, 1
    %p136 = scmp.ne.s32.totalorder %s131, %s133
    %p137 = scmp.eq.s32.totalorder %s13, 0
    %p138 = por %p136, %p137
    %p139 = scmp.ne.s32.totalorder %s131, %s133
    %p140 = scmp.eq.s32.totalorder %s18, 1
    %p141 = por %p139, %p140
    %p142 = scmp.ne.s32.totalorder %s133, %s134
    %p143 = scmp.eq.s32.totalorder %s18, 0
    %p144 = por %p142, %p143
    %p145 = scmp.ne.s32.totalorder %s133, %s134
    %p146 = scmp.eq.s32.totalorder %s19, 1
    %p147 = por %p145, %p146
    %p149 = scmp.ne.s32.totalorder %s134, %s148
    %p150 = scmp.eq.s32.totalorder %s19, 0
    %p151 = por %p149, %p150
    %s153 = sadd.s32 %s152, 1
    %p156 = scmp.eq.s32.totalorder %s13, 1
    %p157 = scmp.ne.s32.totalorder %s152, %s154
    %p158 = scmp.eq.s32.totalorder %s13, 0
    %p159 = por %p157, %p158
    %p160 = scmp.ne.s32.totalorder %s152, %s154
    %p161 = scmp.eq.s32.totalorder %s18, 1
    %p162 = por %p160, %p161
    %p163 = scmp.ne.s32.totalorder %s154, %s155
    %p164 = scmp.eq.s32.totalorder %s18, 0
    %p165 = por %p163, %p164
    %p166 = scmp.ne.s32.totalorder %s154, %s155
    %p167 = scmp.eq.s32.totalorder %s19, 1
    %p168 = por %p166, %p167
    %p170 = scmp.ne.s32.totalorder %s155, %s169
    %p171 = scmp.eq.s32.totalorder %s19, 0
    %p172 = por %p170, %p171
    %s173 = ssub.s32 %s13, %s20
    %p174 = scmp.eq.s32.totalorder %s173, 0
    %s176 = sadd.s32 %s175, 1
    %s177 = scalar_select %p174, %s175, %s176
    %p180 = pneg %p174
    %p181 = scmp.eq.s32.totalorder %s13, 1
    %p182 = por %p180, %p181
    %p183 = scmp.ne.s32.totalorder %s175, %s178
    %p184 = scmp.eq.s32.totalorder %s13, 0
    %p185 = por %p183, %p184
    %p186 = scmp.ne.s32.totalorder %s175, %s178
    %p187 = scmp.eq.s32.totalorder %s18, 1
    %p188 = por %p186, %p187
    %p189 = scmp.ne.s32.totalorder %s178, %s179
    %p190 = scmp.eq.s32.totalorder %s18, 0
    %p191 = por %p189, %p190
    %p192 = scmp.ne.s32.totalorder %s178, %s179
    %p193 = scmp.eq.s32.totalorder %s19, 1
    %p194 = por %p192, %p193
    %p196 = scmp.ne.s32.totalorder %s179, %s195
    %p197 = scmp.eq.s32.totalorder %s19, 0
    %p198 = por %p196, %p197
    %p199 = scmp.le.s32.totalorder 1, %s13
    %p200 = scmp.lt.s32.totalorder %s13, 3
    %p201 = pnand %p199, %p200
    %p202 = pneg %p201
    // Predicated region
    $region9: #{tpu_custom_call.1} parent=5 // pred_check
      _
    $region10: #{tpu_custom_call.1} parent=5 // pred_check_branch
      %204 = sbr.rel (%p201) target = $region12
    $region11: #{tpu_custom_call.1} parent=5 // pred_region
      %s205 = ssub.s32 %s13, 1
      // Predicated region
      $region13: #{tpu_custom_call.1} parent=11 // pred_check
        %p206 = pneg %p60
      $region14: #{tpu_custom_call.1} parent=11 // pred_check_branch
        %208 = sbr.rel (%p206) target = $region16
      $region15: #{tpu_custom_call.1} parent=11 // pred_region
        _
      $region16: #{tpu_custom_call.1} parent=11 // pred_fallthru
        _
      // Predicated region
      $region17: #{tpu_custom_call.1} parent=11 // pred_check
        %p209 = pneg %p81
      $region18: #{tpu_custom_call.1} parent=11 // pred_check_branch
        %211 = sbr.rel (%p209) target = $region20
      $region19: #{tpu_custom_call.1} parent=11 // pred_region
        _
      $region20: #{tpu_custom_call.1} parent=11 // pred_fallthru
        _
      // Predicated region
      $region21: #{tpu_custom_call.1} parent=11 // pred_check
        %p212 = pneg %p102
      $region22: #{tpu_custom_call.1} parent=11 // pred_check_branch
        %214 = sbr.rel (%p212) target = $region24
      $region23: #{tpu_custom_call.1} parent=11 // pred_region
        _
      $region24: #{tpu_custom_call.1} parent=11 // pred_fallthru
        _
      // Predicated region
      $region25: #{tpu_custom_call.1} parent=11 // pred_check
        %p215 = pneg %p123
      $region26: #{tpu_custom_call.1} parent=11 // pred_check_branch
        %217 = sbr.rel (%p215) target = $region28
      $region27: #{tpu_custom_call.1} parent=11 // pred_region
        _
      $region28: #{tpu_custom_call.1} parent=11 // pred_fallthru
        _
      // Predicated region
      $region29: #{tpu_custom_call.1} parent=11 // pred_check
        %p218 = pneg %p144
      $region30: #{tpu_custom_call.1} parent=11 // pred_check_branch
        %220 = sbr.rel (%p218) target = $region32
      $region31: #{tpu_custom_call.1} parent=11 // pred_region
        _
      $region32: #{tpu_custom_call.1} parent=11 // pred_fallthru
        _
      // Predicated region
      $region33: #{tpu_custom_call.1} parent=11 // pred_check
        %p221 = pneg %p165
      $region34: #{tpu_custom_call.1} parent=11 // pred_check_branch
        %223 = sbr.rel (%p221) target = $region36
      $region35: #{tpu_custom_call.1} parent=11 // pred_region
        _
      $region36: #{tpu_custom_call.1} parent=11 // pred_fallthru
        _
    $region12: #{tpu_custom_call.1} parent=5 // pred_fallthru
      _
    %p224 = scmp.lt.s32.totalorder %s13, 2
    // Predicated region
    $region37: #{tpu_custom_call.1} parent=5 // pred_check
      %p225 = pneg %p224
    $region38: #{tpu_custom_call.1} parent=5 // pred_check_branch
      %227 = sbr.rel (%p225) target = $region40
    $region39: #{tpu_custom_call.1} parent=5 // pred_region
      // Predicated region
      $region41: #{tpu_custom_call.1} parent=39 // pred_check
        %p228 = pneg %p33
      $region42: #{tpu_custom_call.1} parent=39 // pred_check_branch
        %230 = sbr.rel (%p228) target = $region44
      $region43: #{tpu_custom_call.1} parent=39 // pred_region
        %p231 = scmp.lt.s32.totalorder %s13, 1
        %s232 = scalar_select %p231, %s13, 1
        %s233 = smul.addr %s232, 32
        %s234 = smul.addr %s233, 8
        %s235 = scalar_lea.vmem %s0, %s234
      $region44: #{tpu_custom_call.1} parent=39 // pred_fallthru
        _
    $region40: #{tpu_custom_call.1} parent=5 // pred_fallthru
      _
    %p236 = scmp.le.s32.totalorder 1, %s13
    %p237 = scmp.lt.s32.totalorder %s13, 3
    %p238 = pnand %p236, %p237
    %p239 = pneg %p238
    // Predicated region
    $region45: #{tpu_custom_call.1} parent=5 // pred_check
      _
    $region46: #{tpu_custom_call.1} parent=5 // pred_check_branch
      %241 = sbr.rel (%p238) target = $region48
    $region47: #{tpu_custom_call.1} parent=5 // pred_region
      %s242 = ssub.s32 %s13, 1
      %p243 = scmp.lt.s32.totalorder %s18, 1
      %s244 = scalar_select %p243, %s18, 1
      %s245 = smul.addr %s244, 32
      %s246 = smul.addr %s245, 8
      %s247 = scalar_lea.vmem %s0, %s246
      %p248 = pneg %p39
      %p249 = pneg %p36
      %p250 = pneg %p60
      %p251 = pneg %p57
      %p252 = pneg %p81
      %p253 = pneg %p78
      %p254 = pneg %p102
      %p255 = pneg %p99
      %p256 = pneg %p123
      %p257 = pneg %p120
      %p258 = pneg %p144
      %p259 = pneg %p141
      %p260 = pneg %p165
      %p261 = pneg %p162
      %p262 = pneg %p191
      %p263 = pneg %p188
      %p264 = scmp.lt.s32.totalorder %s18, 1
      %s265 = scalar_select %p264, %s18, 1
      %s266 = smul.addr %s265, 32
      %s267 = smul.addr %s266, 8
      %s268 = scalar_lea.vmem %s7, %s267
      %p269 = scmp.lt.s32.totalorder %s18, 1
      %s270 = scalar_select %p269, %s18, 1
      %s271 = smul.addr %s270, 32
      %s272 = smul.addr %s271, 8
      %s273 = scalar_lea.vmem %s0, %s272
      %p274 = scmp.lt.s32.totalorder %s18, 1
      %s275 = scalar_select %p274, %s18, 1
      %s276 = smul.addr %s275, 32
      %s277 = smul.addr %s276, 8
      %s278 = scalar_lea.vmem %s7, %s277
      %v279 = vld [vmem:[%s273] sm:$0xff]
      %v280 = vld [vmem:[%s273 + $0x8] sm:$0xff]
      %v281 = vld [vmem:[%s273 + $0x10] sm:$0xff]
      %v282 = vld [vmem:[%s273 + $0x18] sm:$0xff]
      %v283 = vld [vmem:[%s273 + $0x20] sm:$0xff]
      %v284 = vld [vmem:[%s273 + $0x28] sm:$0xff]
      %v285 = vld [vmem:[%s273 + $0x30] sm:$0xff]
      %v286 = vld [vmem:[%s273 + $0x38] sm:$0xff]
      %v287 = vld [vmem:[%s273 + $0x40] sm:$0xff]
      %v288 = vld [vmem:[%s273 + $0x48] sm:$0xff]
      %v289 = vld [vmem:[%s273 + $0x50] sm:$0xff]
      %v290 = vld [vmem:[%s273 + $0x58] sm:$0xff]
      %v291 = vld [vmem:[%s273 + $0x60] sm:$0xff]
      %v292 = vld [vmem:[%s273 + $0x68] sm:$0xff]
      %v293 = vld [vmem:[%s273 + $0x70] sm:$0xff]
      %v294 = vld [vmem:[%s273 + $0x78] sm:$0xff]
      %v295 = vld [vmem:[%s273 + $0x80] sm:$0xff]
      %v296 = vld [vmem:[%s273 + $0x88] sm:$0xff]
      %v297 = vld [vmem:[%s273 + $0x90] sm:$0xff]
      %v298 = vld [vmem:[%s273 + $0x98] sm:$0xff]
      %v299 = vld [vmem:[%s273 + $0xa0] sm:$0xff]
      %v300 = vld [vmem:[%s273 + $0xa8] sm:$0xff]
      %v301 = vld [vmem:[%s273 + $0xb0] sm:$0xff]
      %v302 = vld [vmem:[%s273 + $0xb8] sm:$0xff]
      %v303 = vld [vmem:[%s273 + $0xc0] sm:$0xff]
      %v304 = vld [vmem:[%s273 + $0xc8] sm:$0xff]
      %v305 = vld [vmem:[%s273 + $0xd0] sm:$0xff]
      %v306 = vld [vmem:[%s273 + $0xd8] sm:$0xff]
      %v307 = vld [vmem:[%s273 + $0xe0] sm:$0xff]
      %v308 = vld [vmem:[%s273 + $0xe8] sm:$0xff]
      %v309 = vld [vmem:[%s273 + $0xf0] sm:$0xff]
      %v310 = vld [vmem:[%s273 + $0xf8] sm:$0xff]
      %vm311 = vcmask 31744
      %312 = vst.msk [vmem:[#allocation2] sm:$0xff] %vm311, 0.0
      %313 = vst.msk [vmem:[#allocation2 + $0x8] sm:$0xff] %vm311, 0.0
      %vm314 = vcmask 25600
      %315 = vst.msk [vmem:[#allocation2 + $0x10] sm:$0x3] %vm314, 0.0
      %s316 = scalar_lea.vmem [#allocation2], 408
      %317 = vst.msk [vmem:[%s316] sm:$0xff] %vm311, 0.0
      %318 = vst.msk [vmem:[%s316 + $0x8] sm:$0xff] %vm311, 0.0
      %319 = vst.msk [vmem:[%s316 + $0x10] sm:$0x3] %vm314, 0.0
      %s320 = scalar_lea.vmem [#allocation2], 24
      %vm321 = vcmask 24576
      %322 = vst.msk [vmem:[%s320] sm:$0x1] %vm321, 0.0
      %323 = vst.msk [vmem:[%s320 + $0x18] sm:$0x1] %vm321, 0.0
      %324 = vst.msk [vmem:[%s320 + $0x30] sm:$0x1] %vm321, 0.0
      %325 = vst.msk [vmem:[%s320 + $0x48] sm:$0x1] %vm321, 0.0
      %326 = vst.msk [vmem:[%s320 + $0x60] sm:$0x1] %vm321, 0.0
      %327 = vst.msk [vmem:[%s320 + $0x78] sm:$0x1] %vm321, 0.0
      %328 = vst.msk [vmem:[%s320 + $0x90] sm:$0x1] %vm321, 0.0
      %329 = vst.msk [vmem:[%s320 + $0xa8] sm:$0x1] %vm321, 0.0
      %330 = vst.msk [vmem:[%s320 + $0xc0] sm:$0x1] %vm321, 0.0
      %331 = vst.msk [vmem:[%s320 + $0xd8] sm:$0x1] %vm321, 0.0
      %332 = vst.msk [vmem:[%s320 + $0xf0] sm:$0x1] %vm321, 0.0
      %333 = vst.msk [vmem:[%s320 + $0x108] sm:$0x1] %vm321, 0.0
      %334 = vst.msk [vmem:[%s320 + $0x120] sm:$0x1] %vm321, 0.0
      %335 = vst.msk [vmem:[%s320 + $0x138] sm:$0x1] %vm321, 0.0
      %336 = vst.msk [vmem:[%s320 + $0x150] sm:$0x1] %vm321, 0.0
      %337 = vst.msk [vmem:[%s320 + $0x168] sm:$0x1] %vm321, 0.0
      %338 = vst.msk [vmem:[%s320 + $0x11] sm:$0x1] %vm321, 0.0
      %339 = vst.msk [vmem:[%s320 + $0x29] sm:$0x1] %vm321, 0.0
      %340 = vst.msk [vmem:[%s320 + $0x41] sm:$0x1] %vm321, 0.0
      %341 = vst.msk [vmem:[%s320 + $0x59] sm:$0x1] %vm321, 0.0
      %342 = vst.msk [vmem:[%s320 + $0x71] sm:$0x1] %vm321, 0.0
      %343 = vst.msk [vmem:[%s320 + $0x89] sm:$0x1] %vm321, 0.0
      %344 = vst.msk [vmem:[%s320 + $0xa1] sm:$0x1] %vm321, 0.0
      %345 = vst.msk [vmem:[%s320 + $0xb9] sm:$0x1] %vm321, 0.0
      %346 = vst.msk [vmem:[%s320 + $0xd1] sm:$0x1] %vm321, 0.0
      %347 = vst.msk [vmem:[%s320 + $0xe9] sm:$0x1] %vm321, 0.0
      %348 = vst.msk [vmem:[%s320 + $0x101] sm:$0x1] %vm321, 0.0
      %349 = vst.msk [vmem:[%s320 + $0x119] sm:$0x1] %vm321, 0.0
      %350 = vst.msk [vmem:[%s320 + $0x131] sm:$0x1] %vm321, 0.0
      %351 = vst.msk [vmem:[%s320 + $0x149] sm:$0x1] %vm321, 0.0
      %352 = vst.msk [vmem:[%s320 + $0x161] sm:$0x1] %vm321, 0.0
      %353 = vst.msk [vmem:[%s320 + $0x179] sm:$0x1] %vm321, 0.0
      %354 = vst.msk [vmem:[%s320 + $0x1] sm:$0xff] %vm311, %v279
      %355 = vst.msk [vmem:[%s320 + $0x9] sm:$0xff] %vm311, %v280
      %356 = vst.msk [vmem:[%s320 + $0x19] sm:$0xff] %vm311, %v281
      %357 = vst.msk [vmem:[%s320 + $0x21] sm:$0xff] %vm311, %v282
      %358 = vst.msk [vmem:[%s320 + $0x31] sm:$0xff] %vm311, %v283
      %359 = vst.msk [vmem:[%s320 + $0x39] sm:$0xff] %vm311, %v284
      %360 = vst.msk [vmem:[%s320 + $0x49] sm:$0xff] %vm311, %v285
      %361 = vst.msk [vmem:[%s320 + $0x51] sm:$0xff] %vm311, %v286
      %362 = vst.msk [vmem:[%s320 + $0x61] sm:$0xff] %vm311, %v287
      %363 = vst.msk [vmem:[%s320 + $0x69] sm:$0xff] %vm311, %v288
      %364 = vst.msk [vmem:[%s320 + $0x79] sm:$0xff] %vm311, %v289
      %365 = vst.msk [vmem:[%s320 + $0x81] sm:$0xff] %vm311, %v290
      %366 = vst.msk [vmem:[%s320 + $0x91] sm:$0xff] %vm311, %v291
      %367 = vst.msk [vmem:[%s320 + $0x99] sm:$0xff] %vm311, %v292
      %368 = vst.msk [vmem:[%s320 + $0xa9] sm:$0xff] %vm311, %v293
      %369 = vst.msk [vmem:[%s320 + $0xb1] sm:$0xff] %vm311, %v294
      %370 = vst.msk [vmem:[%s320 + $0xc1] sm:$0xff] %vm311, %v295
      %371 = vst.msk [vmem:[%s320 + $0xc9] sm:$0xff] %vm311, %v296
      %372 = vst.msk [vmem:[%s320 + $0xd9] sm:$0xff] %vm311, %v297
      %373 = vst.msk [vmem:[%s320 + $0xe1] sm:$0xff] %vm311, %v298
      %374 = vst.msk [vmem:[%s320 + $0xf1] sm:$0xff] %vm311, %v299
      %375 = vst.msk [vmem:[%s320 + $0xf9] sm:$0xff] %vm311, %v300
      %376 = vst.msk [vmem:[%s320 + $0x109] sm:$0xff] %vm311, %v301
      %377 = vst.msk [vmem:[%s320 + $0x111] sm:$0xff] %vm311, %v302
      %378 = vst.msk [vmem:[%s320 + $0x121] sm:$0xff] %vm311, %v303
      %379 = vst.msk [vmem:[%s320 + $0x129] sm:$0xff] %vm311, %v304
      %380 = vst.msk [vmem:[%s320 + $0x139] sm:$0xff] %vm311, %v305
      %381 = vst.msk [vmem:[%s320 + $0x141] sm:$0xff] %vm311, %v306
      %382 = vst.msk [vmem:[%s320 + $0x151] sm:$0xff] %vm311, %v307
      %383 = vst.msk [vmem:[%s320 + $0x159] sm:$0xff] %vm311, %v308
      %384 = vst.msk [vmem:[%s320 + $0x169] sm:$0xff] %vm311, %v309
      %385 = vst.msk [vmem:[%s320 + $0x171] sm:$0xff] %vm311, %v310
      %v386 = vld [vmem:[#allocation2] sm:$0xff]
      %v387 = vld [vmem:[#allocation2 + $0x8] sm:$0xff]
      %v388 = vld [vmem:[#allocation2 + $0x18] sm:$0xff]
      %v389 = vld [vmem:[#allocation2 + $0x20] sm:$0xff]
      %v390 = vld [vmem:[#allocation2 + $0x30] sm:$0xff]
      %v391 = vld [vmem:[#allocation2 + $0x38] sm:$0xff]
      %v392 = vld [vmem:[#allocation2 + $0x48] sm:$0xff]
      %v393 = vld [vmem:[#allocation2 + $0x50] sm:$0xff]
      %v394 = vld [vmem:[#allocation2 + $0x60] sm:$0xff]
      %v395 = vld [vmem:[#allocation2 + $0x68] sm:$0xff]
      %v396 = vld [vmem:[#allocation2 + $0x78] sm:$0xff]
      %v397 = vld [vmem:[#allocation2 + $0x80] sm:$0xff]
      %v398 = vld [vmem:[#allocation2 + $0x90] sm:$0xff]
      %v399 = vld [vmem:[#allocation2 + $0x98] sm:$0xff]
      %v400 = vld [vmem:[#allocation2 + $0xa8] sm:$0xff]
      %v401 = vld [vmem:[#allocation2 + $0xb0] sm:$0xff]
      %v402 = vld [vmem:[#allocation2 + $0xc0] sm:$0xff]
      %v403 = vld [vmem:[#allocation2 + $0xc8] sm:$0xff]
      %v404 = vld [vmem:[#allocation2 + $0xd8] sm:$0xff]
      %v405 = vld [vmem:[#allocation2 + $0xe0] sm:$0xff]
      %v406 = vld [vmem:[#allocation2 + $0xf0] sm:$0xff]
      %v407 = vld [vmem:[#allocation2 + $0xf8] sm:$0xff]
      %v408 = vld [vmem:[#allocation2 + $0x108] sm:$0xff]
      %v409 = vld [vmem:[#allocation2 + $0x110] sm:$0xff]
      %v410 = vld [vmem:[#allocation2 + $0x120] sm:$0xff]
      %v411 = vld [vmem:[#allocation2 + $0x128] sm:$0xff]
      %v412 = vld [vmem:[#allocation2 + $0x138] sm:$0xff]
      %v413 = vld [vmem:[#allocation2 + $0x140] sm:$0xff]
      %v414 = vld [vmem:[#allocation2 + $0x150] sm:$0xff]
      %v415 = vld [vmem:[#allocation2 + $0x158] sm:$0xff]
      %v416 = vld [vmem:[#allocation2 + $0x168] sm:$0xff]
      %v417 = vld [vmem:[#allocation2 + $0x170] sm:$0xff]
      %v418 = vld [vmem:[#allocation2 + $0x180] sm:$0xff]
      %v419 = vld [vmem:[#allocation2 + $0x188] sm:$0xff]
      %v420 = vld [vmem:[#allocation2 + $0x198] sm:$0xff]
      %v421 = vld [vmem:[#allocation2 + $0x1a0] sm:$0xff]
      %v422 = vld [vmem:[#allocation2 + $0x1] sm:$0xff]
      %v423 = vld [vmem:[#allocation2 + $0x9] sm:$0xff]
      %v424 = vld [vmem:[#allocation2 + $0x19] sm:$0xff]
      %v425 = vld [vmem:[#allocation2 + $0x21] sm:$0xff]
      %v426 = vld [vmem:[#allocation2 + $0x31] sm:$0xff]
      %v427 = vld [vmem:[#allocation2 + $0x39] sm:$0xff]
      %v428 = vld [vmem:[#allocation2 + $0x49] sm:$0xff]
      %v429 = vld [vmem:[#allocation2 + $0x51] sm:$0xff]
      %v430 = vld [vmem:[#allocation2 + $0x61] sm:$0xff]
      %v431 = vld [vmem:[#allocation2 + $0x69] sm:$0xff]
      %v432 = vld [vmem:[#allocation2 + $0x79] sm:$0xff]
      %v433 = vld [vmem:[#allocation2 + $0x81] sm:$0xff]
      %v434 = vld [vmem:[#allocation2 + $0x91] sm:$0xff]
      %v435 = vld [vmem:[#allocation2 + $0x99] sm:$0xff]
      %v436 = vld [vmem:[#allocation2 + $0xa9] sm:$0xff]
      %v437 = vld [vmem:[#allocation2 + $0xb1] sm:$0xff]
      %v438 = vld [vmem:[#allocation2 + $0xc1] sm:$0xff]
      %v439 = vld [vmem:[#allocation2 + $0xc9] sm:$0xff]
      %v440 = vld [vmem:[#allocation2 + $0xd9] sm:$0xff]
      %v441 = vld [vmem:[#allocation2 + $0xe1] sm:$0xff]
      %v442 = vld [vmem:[#allocation2 + $0xf1] sm:$0xff]
      %v443 = vld [vmem:[#allocation2 + $0xf9] sm:$0xff]
      %v444 = vld [vmem:[#allocation2 + $0x109] sm:$0xff]
      %v445 = vld [vmem:[#allocation2 + $0x111] sm:$0xff]
      %v446 = vld [vmem:[#allocation2 + $0x121] sm:$0xff]
      %v447 = vld [vmem:[#allocation2 + $0x129] sm:$0xff]
      %v448 = vld [vmem:[#allocation2 + $0x139] sm:$0xff]
      %v449 = vld [vmem:[#allocation2 + $0x141] sm:$0xff]
      %v450 = vld [vmem:[#allocation2 + $0x151] sm:$0xff]
      %v451 = vld [vmem:[#allocation2 + $0x159] sm:$0xff]
      %v452 = vld [vmem:[#allocation2 + $0x169] sm:$0xff]
      %v453 = vld [vmem:[#allocation2 + $0x171] sm:$0xff]
      %v454 = vld [vmem:[#allocation2 + $0x181] sm:$0xff]
      %v455 = vld [vmem:[#allocation2 + $0x189] sm:$0xff]
      %v456 = vld [vmem:[#allocation2 + $0x199] sm:$0xff]
      %v457 = vld [vmem:[#allocation2 + $0x1a1] sm:$0xff]
      %v458 = vld [vmem:[#allocation2 + $0x2] sm:$0xff]
      %v459 = vld [vmem:[#allocation2 + $0xa] sm:$0xff]
      %v460 = vld [vmem:[#allocation2 + $0x1a] sm:$0xff]
      %v461 = vld [vmem:[#allocation2 + $0x22] sm:$0xff]
      %v462 = vld [vmem:[#allocation2 + $0x32] sm:$0xff]
      %v463 = vld [vmem:[#allocation2 + $0x3a] sm:$0xff]
      %v464 = vld [vmem:[#allocation2 + $0x4a] sm:$0xff]
      %v465 = vld [vmem:[#allocation2 + $0x52] sm:$0xff]
      %v466 = vld [vmem:[#allocation2 + $0x62] sm:$0xff]
      %v467 = vld [vmem:[#allocation2 + $0x6a] sm:$0xff]
      %v468 = vld [vmem:[#allocation2 + $0x7a] sm:$0xff]
      %v469 = vld [vmem:[#allocation2 + $0x82] sm:$0xff]
      %v470 = vld [vmem:[#allocation2 + $0x92] sm:$0xff]
      %v471 = vld [vmem:[#allocation2 + $0x9a] sm:$0xff]
      %v472 = vld [vmem:[#allocation2 + $0xaa] sm:$0xff]
      %v473 = vld [vmem:[#allocation2 + $0xb2] sm:$0xff]
      %v474 = vld [vmem:[#allocation2 + $0xc2] sm:$0xff]
      %v475 = vld [vmem:[#allocation2 + $0xca] sm:$0xff]
      %v476 = vld [vmem:[#allocation2 + $0xda] sm:$0xff]
      %v477 = vld [vmem:[#allocation2 + $0xe2] sm:$0xff]
      %v478 = vld [vmem:[#allocation2 + $0xf2] sm:$0xff]
      %v479 = vld [vmem:[#allocation2 + $0xfa] sm:$0xff]
      %v480 = vld [vmem:[#allocation2 + $0x10a] sm:$0xff]
      %v481 = vld [vmem:[#allocation2 + $0x112] sm:$0xff]
      %v482 = vld [vmem:[#allocation2 + $0x122] sm:$0xff]
      %v483 = vld [vmem:[#allocation2 + $0x12a] sm:$0xff]
      %v484 = vld [vmem:[#allocation2 + $0x13a] sm:$0xff]
      %v485 = vld [vmem:[#allocation2 + $0x142] sm:$0xff]
      %v486 = vld [vmem:[#allocation2 + $0x152] sm:$0xff]
      %v487 = vld [vmem:[#allocation2 + $0x15a] sm:$0xff]
      %v488 = vld [vmem:[#allocation2 + $0x16a] sm:$0xff]
      %v489 = vld [vmem:[#allocation2 + $0x172] sm:$0xff]
      %v490 = vld [vmem:[#allocation2 + $0x182] sm:$0xff]
      %v491 = vld [vmem:[#allocation2 + $0x18a] sm:$0xff]
      %v492 = vld [vmem:[#allocation2 + $0x19a] sm:$0xff]
      %v493 = vld [vmem:[#allocation2 + $0x1a2] sm:$0xff]
      %530 = vrot.lane.b32.xlu0 %v422, 4
      %v531 = vpop.permute.xlu0 %530
      %532 = vrot.lane.b32.xlu0 %v423, 4
      %v533 = vpop.permute.xlu0 %532
      %534 = vrot.lane.b32.xlu0 %v424, 4
      %v535 = vpop.permute.xlu0 %534
      %536 = vrot.lane.b32.xlu0 %v425, 4
      %v537 = vpop.permute.xlu0 %536
      %538 = vrot.lane.b32.xlu0 %v426, 4
      %v539 = vpop.permute.xlu0 %538
      %540 = vrot.lane.b32.xlu0 %v427, 4
      %v541 = vpop.permute.xlu0 %540
      %542 = vrot.lane.b32.xlu0 %v428, 4
      %v543 = vpop.permute.xlu0 %542
      %544 = vrot.lane.b32.xlu0 %v429, 4
      %v545 = vpop.permute.xlu0 %544
      %546 = vrot.lane.b32.xlu0 %v430, 4
      %v547 = vpop.permute.xlu0 %546
      %548 = vrot.lane.b32.xlu0 %v431, 4
      %v549 = vpop.permute.xlu0 %548
      %550 = vrot.lane.b32.xlu0 %v432, 4
      %v551 = vpop.permute.xlu0 %550
      %552 = vrot.lane.b32.xlu0 %v433, 4
      %v553 = vpop.permute.xlu0 %552
      %554 = vrot.lane.b32.xlu0 %v434, 4
      %v555 = vpop.permute.xlu0 %554
      %556 = vrot.lane.b32.xlu0 %v435, 4
      %v557 = vpop.permute.xlu0 %556
      %558 = vrot.lane.b32.xlu0 %v436, 4
      %v559 = vpop.permute.xlu0 %558
      %560 = vrot.lane.b32.xlu0 %v437, 4
      %v561 = vpop.permute.xlu0 %560
      %562 = vrot.lane.b32.xlu0 %v438, 4
      %v563 = vpop.permute.xlu0 %562
      %564 = vrot.lane.b32.xlu0 %v439, 4
      %v565 = vpop.permute.xlu0 %564
      %566 = vrot.lane.b32.xlu0 %v440, 4
      %v567 = vpop.permute.xlu0 %566
      %568 = vrot.lane.b32.xlu0 %v441, 4
      %v569 = vpop.permute.xlu0 %568
      %570 = vrot.lane.b32.xlu0 %v442, 4
      %v571 = vpop.permute.xlu0 %570
      %572 = vrot.lane.b32.xlu0 %v443, 4
      %v573 = vpop.permute.xlu0 %572
      %574 = vrot.lane.b32.xlu0 %v444, 4
      %v575 = vpop.permute.xlu0 %574
      %576 = vrot.lane.b32.xlu0 %v445, 4
      %v577 = vpop.permute.xlu0 %576
      %578 = vrot.lane.b32.xlu0 %v446, 4
      %v579 = vpop.permute.xlu0 %578
      %580 = vrot.lane.b32.xlu0 %v447, 4
      %v581 = vpop.permute.xlu0 %580
      %582 = vrot.lane.b32.xlu0 %v448, 4
      %v583 = vpop.permute.xlu0 %582
      %584 = vrot.lane.b32.xlu0 %v449, 4
      %v585 = vpop.permute.xlu0 %584
      %586 = vrot.lane.b32.xlu0 %v450, 4
      %v587 = vpop.permute.xlu0 %586
      %588 = vrot.lane.b32.xlu0 %v451, 4
      %v589 = vpop.permute.xlu0 %588
      %590 = vrot.lane.b32.xlu0 %v452, 4
      %v591 = vpop.permute.xlu0 %590
      %592 = vrot.lane.b32.xlu0 %v453, 4
      %v593 = vpop.permute.xlu0 %592
      %594 = vrot.lane.b32.xlu0 %v454, 4
      %v595 = vpop.permute.xlu0 %594
      %596 = vrot.lane.b32.xlu0 %v455, 4
      %v597 = vpop.permute.xlu0 %596
      %598 = vrot.lane.b32.xlu0 %v456, 4
      %v599 = vpop.permute.xlu0 %598
      %600 = vrot.lane.b32.xlu0 %v457, 4
      %v601 = vpop.permute.xlu0 %600
      %674 = vrot.lane.b32.xlu0 %v458, 8
      %v675 = vpop.permute.xlu0 %674
      %676 = vrot.lane.b32.xlu0 %v459, 8
      %v677 = vpop.permute.xlu0 %676
      %678 = vrot.lane.b32.xlu0 %v460, 8
      %v679 = vpop.permute.xlu0 %678
      %680 = vrot.lane.b32.xlu0 %v461, 8
      %v681 = vpop.permute.xlu0 %680
      %682 = vrot.lane.b32.xlu0 %v462, 8
      %v683 = vpop.permute.xlu0 %682
      %684 = vrot.lane.b32.xlu0 %v463, 8
      %v685 = vpop.permute.xlu0 %684
      %686 = vrot.lane.b32.xlu0 %v464, 8
      %v687 = vpop.permute.xlu0 %686
      %688 = vrot.lane.b32.xlu0 %v465, 8
      %v689 = vpop.permute.xlu0 %688
      %690 = vrot.lane.b32.xlu0 %v466, 8
      %v691 = vpop.permute.xlu0 %690
      %692 = vrot.lane.b32.xlu0 %v467, 8
      %v693 = vpop.permute.xlu0 %692
      %694 = vrot.lane.b32.xlu0 %v468, 8
      %v695 = vpop.permute.xlu0 %694
      %696 = vrot.lane.b32.xlu0 %v469, 8
      %v697 = vpop.permute.xlu0 %696
      %698 = vrot.lane.b32.xlu0 %v470, 8
      %v699 = vpop.permute.xlu0 %698
      %700 = vrot.lane.b32.xlu0 %v471, 8
      %v701 = vpop.permute.xlu0 %700
      %702 = vrot.lane.b32.xlu0 %v472, 8
      %v703 = vpop.permute.xlu0 %702
      %704 = vrot.lane.b32.xlu0 %v473, 8
      %v705 = vpop.permute.xlu0 %704
      %706 = vrot.lane.b32.xlu0 %v474, 8
      %v707 = vpop.permute.xlu0 %706
      %708 = vrot.lane.b32.xlu0 %v475, 8
      %v709 = vpop.permute.xlu0 %708
      %710 = vrot.lane.b32.xlu0 %v476, 8
      %v711 = vpop.permute.xlu0 %710
      %712 = vrot.lane.b32.xlu0 %v477, 8
      %v713 = vpop.permute.xlu0 %712
      %714 = vrot.lane.b32.xlu0 %v478, 8
      %v715 = vpop.permute.xlu0 %714
      %716 = vrot.lane.b32.xlu0 %v479, 8
      %v717 = vpop.permute.xlu0 %716
      %718 = vrot.lane.b32.xlu0 %v480, 8
      %v719 = vpop.permute.xlu0 %718
      %720 = vrot.lane.b32.xlu0 %v481, 8
      %v721 = vpop.permute.xlu0 %720
      %722 = vrot.lane.b32.xlu0 %v482, 8
      %v723 = vpop.permute.xlu0 %722
      %724 = vrot.lane.b32.xlu0 %v483, 8
      %v725 = vpop.permute.xlu0 %724
      %726 = vrot.lane.b32.xlu0 %v484, 8
      %v727 = vpop.permute.xlu0 %726
      %728 = vrot.lane.b32.xlu0 %v485, 8
      %v729 = vpop.permute.xlu0 %728
      %730 = vrot.lane.b32.xlu0 %v486, 8
      %v731 = vpop.permute.xlu0 %730
      %732 = vrot.lane.b32.xlu0 %v487, 8
      %v733 = vpop.permute.xlu0 %732
      %734 = vrot.lane.b32.xlu0 %v488, 8
      %v735 = vpop.permute.xlu0 %734
      %736 = vrot.lane.b32.xlu0 %v489, 8
      %v737 = vpop.permute.xlu0 %736
      %738 = vrot.lane.b32.xlu0 %v490, 8
      %v739 = vpop.permute.xlu0 %738
      %740 = vrot.lane.b32.xlu0 %v491, 8
      %v741 = vpop.permute.xlu0 %740
      %742 = vrot.lane.b32.xlu0 %v492, 8
      %v743 = vpop.permute.xlu0 %742
      %744 = vrot.lane.b32.xlu0 %v493, 8
      %v745 = vpop.permute.xlu0 %744
      %v782 = vsel %vm311, %v386, %v531
      %v783 = vsel %vm311, %v387, %v533
      %v784 = vsel %vm311, %v388, %v535
      %v785 = vsel %vm311, %v389, %v537
      %v786 = vsel %vm311, %v390, %v539
      %v787 = vsel %vm311, %v391, %v541
      %v788 = vsel %vm311, %v392, %v543
      %v789 = vsel %vm311, %v393, %v545
      %v790 = vsel %vm311, %v394, %v547
      %v791 = vsel %vm311, %v395, %v549
      %v792 = vsel %vm311, %v396, %v551
      %v793 = vsel %vm311, %v397, %v553
      %v794 = vsel %vm311, %v398, %v555
      %v795 = vsel %vm311, %v399, %v557
      %v796 = vsel %vm311, %v400, %v559
      %v797 = vsel %vm311, %v401, %v561
      %v798 = vsel %vm311, %v402, %v563
      %v799 = vsel %vm311, %v403, %v565
      %v800 = vsel %vm311, %v404, %v567
      %v801 = vsel %vm311, %v405, %v569
      %v802 = vsel %vm311, %v406, %v571
      %v803 = vsel %vm311, %v407, %v573
      %v804 = vsel %vm311, %v408, %v575
      %v805 = vsel %vm311, %v409, %v577
      %v806 = vsel %vm311, %v410, %v579
      %v807 = vsel %vm311, %v411, %v581
      %v808 = vsel %vm311, %v412, %v583
      %v809 = vsel %vm311, %v413, %v585
      %v810 = vsel %vm311, %v414, %v587
      %v811 = vsel %vm311, %v415, %v589
      %v812 = vsel %vm311, %v416, %v591
      %v813 = vsel %vm311, %v417, %v593
      %v814 = vsel %vm311, %v418, %v595
      %v815 = vsel %vm311, %v419, %v597
      %v816 = vsel %vm311, %v420, %v599
      %v817 = vsel %vm311, %v421, %v601
      %vm818 = vcmask 64512
      %v819 = vsel %vm818, %v782, %v675
      %v820 = vsel %vm818, %v783, %v677
      %v821 = vsel %vm818, %v784, %v679
      %v822 = vsel %vm818, %v785, %v681
      %v823 = vsel %vm818, %v786, %v683
      %v824 = vsel %vm818, %v787, %v685
      %v825 = vsel %vm818, %v788, %v687
      %v826 = vsel %vm818, %v789, %v689
      %v827 = vsel %vm818, %v790, %v691
      %v828 = vsel %vm818, %v791, %v693
      %v829 = vsel %vm818, %v792, %v695
      %v830 = vsel %vm818, %v793, %v697
      %v831 = vsel %vm818, %v794, %v699
      %v832 = vsel %vm818, %v795, %v701
      %v833 = vsel %vm818, %v796, %v703
      %v834 = vsel %vm818, %v797, %v705
      %v835 = vsel %vm818, %v798, %v707
      %v836 = vsel %vm818, %v799, %v709
      %v837 = vsel %vm818, %v800, %v711
      %v838 = vsel %vm818, %v801, %v713
      %v839 = vsel %vm818, %v802, %v715
      %v840 = vsel %vm818, %v803, %v717
      %v841 = vsel %vm818, %v804, %v719
      %v842 = vsel %vm818, %v805, %v721
      %v843 = vsel %vm818, %v806, %v723
      %v844 = vsel %vm818, %v807, %v725
      %v845 = vsel %vm818, %v808, %v727
      %v846 = vsel %vm818, %v809, %v729
      %v847 = vsel %vm818, %v810, %v731
      %v848 = vsel %vm818, %v811, %v733
      %v849 = vsel %vm818, %v812, %v735
      %v850 = vsel %vm818, %v813, %v737
      %v851 = vsel %vm818, %v814, %v739
      %v852 = vsel %vm818, %v815, %v741
      %v853 = vsel %vm818, %v816, %v743
      %v854 = vsel %vm818, %v817, %v745
      %v855 = vld [vmem:[%s1] sm:$0xff]
      %v856 = vld [vmem:[%s1 + $0x8] sm:$0xf]
      %s857 = scalar_lea.vmem %s1, 16
      %v858 = vld [vmem:[%s857] sm:$0xff]
      %v859 = vld [vmem:[%s857 + $0x8] sm:$0xf]
      %vm860 = vcmask 97280
      %v862 = vsel %vm860, %v821, 0
      %v865 = vsel %vm860, %v822, 0
      %v868 = vsel %vm860, %v823, 0
      %v871 = vsel %vm860, %v824, 0
      %v874 = vsel %vm860, %v825, 0
      %v877 = vsel %vm860, %v826, 0
      %v880 = vsel %vm860, %v827, 0
      %v883 = vsel %vm860, %v828, 0
      %v886 = vsel %vm860, %v829, 0
      %v889 = vsel %vm860, %v830, 0
      %v892 = vsel %vm860, %v831, 0
      %v895 = vsel %vm860, %v832, 0
      %v898 = vsel %vm860, %v833, 0
      %v901 = vsel %vm860, %v834, 0
      %v904 = vsel %vm860, %v835, 0
      %v907 = vsel %vm860, %v836, 0
      %v910 = vsel %vm860, %v837, 0
      %v913 = vsel %vm860, %v838, 0
      %v916 = vsel %vm860, %v839, 0
      %v919 = vsel %vm860, %v840, 0
      %v922 = vsel %vm860, %v841, 0
      %v925 = vsel %vm860, %v842, 0
      %v928 = vsel %vm860, %v843, 0
      %v931 = vsel %vm860, %v844, 0
      %v934 = vsel %vm860, %v845, 0
      %v937 = vsel %vm860, %v846, 0
      %v940 = vsel %vm860, %v847, 0
      %v943 = vsel %vm860, %v848, 0
      %v946 = vsel %vm860, %v849, 0
      %v949 = vsel %vm860, %v850, 0
      %v952 = vsel %vm860, %v851, 0
      %v955 = vsel %vm860, %v852, 0
      %vm957 = vcmask 1043456
      %v959 = vsel %vm957, %v859, 0
      %961 = vmatprep.subr.mxu0 0.0
      %962 = vmatpush1.msra.mxu0 0.0
      %963 = vmatprep.subr.mxu0 0.0
      %964 = vmatpush1.msra.mxu0 0.0
      %965 = vmatprep.subr.mxu0 0.0
      %966 = vmatpush1.msra.mxu0 0.0
      %967 = vmatprep.subr.mxu0 0.0
      %968 = vmatpush1.msra.mxu0 0.0
      %969 = vmatprep.subr.mxu0 0.0
      %970 = vmatpush1.msra.mxu0 0.0
      %971 = vmatprep.subr.mxu0 0.0
      %972 = vmatpush1.msra.mxu0 0.0
      %973 = vmatprep.subr.mxu0 0.0
      %974 = vmatpush1.msra.mxu0 0.0
      %975 = vmatprep.subr.mxu0 0.0
      %976 = vmatpush1.msra.mxu0 0.0
      %977 = vmatprep.subr.mxu0 0.0
      %978 = vmatpush1.msra.mxu0 0.0
      %979 = vmatprep.subr.mxu0 0.0
      %980 = vmatpush1.msra.mxu0 0.0
      %981 = vmatprep.subr.mxu0 0.0
      %982 = vmatpush1.msra.mxu0 0.0
      %983 = vmatprep.subr.mxu0 0.0
      %984 = vmatpush1.msra.mxu0 0.0
      %985 = vmatprep.subr.mxu0 0.0
      %986 = vmatpush1.msra.mxu0 0.0
      %987 = vmatprep.subr.mxu0 0.0
      %988 = vmatpush1.msra.mxu0 0.0
      %989 = vmatprep.subr.mxu0 0.0
      %990 = vmatpush1.msra.mxu0 %v959
      %991 = vmatprep.subr.mxu0 0.0
      %992 = vmatpush1.msra.mxu0 %v858
      %993 = vmatprep.subr.mxu0 0.0
      %994 = vmatpush2.msra.mxu0 0.0
      %995 = vmatprep.subr.mxu0 0.0
      %996 = vmatpush2.msra.mxu0 0.0
      %997 = vmatprep.subr.mxu0 0.0
      %998 = vmatpush2.msra.mxu0 0.0
      %999 = vmatprep.subr.mxu0 0.0
      %1000 = vmatpush2.msra.mxu0 0.0
      %1001 = vmatprep.subr.mxu0 0.0
      %1002 = vmatpush2.msra.mxu0 0.0
      %1003 = vmatprep.subr.mxu0 0.0
      %1004 = vmatpush2.msra.mxu0 0.0
      %1005 = vmatprep.subr.mxu0 0.0
      %1006 = vmatpush2.msra.mxu0 0.0
      %1007 = vmatprep.subr.mxu0 0.0
      %1008 = vmatpush2.msra.mxu0 0.0
      %1009 = vmatprep.subr.mxu0 0.0
      %1010 = vmatpush2.msra.mxu0 0.0
      %1011 = vmatprep.subr.mxu0 0.0
      %1012 = vmatpush2.msra.mxu0 0.0
      %1013 = vmatprep.subr.mxu0 0.0
      %1014 = vmatpush2.msra.mxu0 0.0
      %1015 = vmatprep.subr.mxu0 0.0
      %1016 = vmatpush2.msra.mxu0 0.0
      %1017 = vmatprep.subr.mxu0 0.0
      %1018 = vmatpush2.msra.mxu0 0.0
      %1019 = vmatprep.subr.mxu0 0.0
      %1020 = vmatpush2.msra.mxu0 0.0
      %1021 = vmatprep.subr.mxu0 0.0
      %1022 = vmatpush2.msra.mxu0 0.0
      %1023 = vmatprep.subr.mxu0 0.0
      %1024 = vmatpush2.msra.mxu0 0.0
      %1025 = vmatprep.mubr.f32.mxu0 0.0
      %1026 = vmatmul.mubr.f32.gmra.mxu0 %v862
      %v1027 = vpop.f32.mrf.mxu0
      %v1028 = vadd.f32 0.0, %v1027
      %v1029 = vpop.f32.mrf.mxu0
      %1030 = vmatprep.mubr.f32.mxu0 0.0
      %1031 = vmatmul.mubr.f32.gmra.mxu0 %v865
      %v1032 = vpop.f32.mrf.mxu0
      %v1033 = vadd.f32 0.0, %v1032
      %v1034 = vpop.f32.mrf.mxu0
      %1035 = vmatprep.mubr.f32.mxu0 0.0
      %1036 = vmatmul.mubr.f32.gmra.mxu0 %v868
      %v1037 = vpop.f32.mrf.mxu0
      %v1038 = vadd.f32 0.0, %v1037
      %v1039 = vpop.f32.mrf.mxu0
      %1040 = vmatprep.mubr.f32.mxu0 0.0
      %1041 = vmatmul.mubr.f32.gmra.mxu0 %v871
      %v1042 = vpop.f32.mrf.mxu0
      %v1043 = vadd.f32 0.0, %v1042
      %v1044 = vpop.f32.mrf.mxu0
      %1045 = vmatprep.mubr.f32.mxu0 0.0
      %1046 = vmatmul.mubr.f32.gmra.mxu0 %v874
      %v1047 = vpop.f32.mrf.mxu0
      %v1048 = vadd.f32 0.0, %v1047
      %v1049 = vpop.f32.mrf.mxu0
      %1050 = vmatprep.mubr.f32.mxu0 0.0
      %1051 = vmatmul.mubr.f32.gmra.mxu0 %v877
      %v1052 = vpop.f32.mrf.mxu0
      %v1053 = vadd.f32 0.0, %v1052
      %v1054 = vpop.f32.mrf.mxu0
      %1055 = vmatprep.mubr.f32.mxu0 0.0
      %1056 = vmatmul.mubr.f32.gmra.mxu0 %v880
      %v1057 = vpop.f32.mrf.mxu0
      %v1058 = vadd.f32 0.0, %v1057
      %v1059 = vpop.f32.mrf.mxu0
      %1060 = vmatprep.mubr.f32.mxu0 0.0
      %1061 = vmatmul.mubr.f32.gmra.mxu0 %v883
      %v1062 = vpop.f32.mrf.mxu0
      %v1063 = vadd.f32 0.0, %v1062
      %v1064 = vpop.f32.mrf.mxu0
      %1065 = vmatprep.mubr.f32.mxu0 0.0
      %1066 = vmatmul.mubr.f32.gmra.mxu0 %v886
      %v1067 = vpop.f32.mrf.mxu0
      %v1068 = vadd.f32 0.0, %v1067
      %v1069 = vpop.f32.mrf.mxu0
      %1070 = vmatprep.mubr.f32.mxu0 0.0
      %1071 = vmatmul.mubr.f32.gmra.mxu0 %v889
      %v1072 = vpop.f32.mrf.mxu0
      %v1073 = vadd.f32 0.0, %v1072
      %v1074 = vpop.f32.mrf.mxu0
      %1075 = vmatprep.mubr.f32.mxu0 0.0
      %1076 = vmatmul.mubr.f32.gmra.mxu0 %v892
      %v1077 = vpop.f32.mrf.mxu0
      %v1078 = vadd.f32 0.0, %v1077
      %v1079 = vpop.f32.mrf.mxu0
      %1080 = vmatprep.mubr.f32.mxu0 0.0
      %1081 = vmatmul.mubr.f32.gmra.mxu0 %v895
      %v1082 = vpop.f32.mrf.mxu0
      %v1083 = vadd.f32 0.0, %v1082
      %v1084 = vpop.f32.mrf.mxu0
      %1085 = vmatprep.mubr.f32.mxu0 0.0
      %1086 = vmatmul.mubr.f32.gmra.mxu0 %v898
      %v1087 = vpop.f32.mrf.mxu0
      %v1088 = vadd.f32 0.0, %v1087
      %v1089 = vpop.f32.mrf.mxu0
      %1090 = vmatprep.mubr.f32.mxu0 0.0
      %1091 = vmatmul.mubr.f32.gmra.mxu0 %v901
      %v1092 = vpop.f32.mrf.mxu0
      %v1093 = vadd.f32 0.0, %v1092
      %v1094 = vpop.f32.mrf.mxu0
      %1095 = vmatprep.mubr.f32.mxu0 0.0
      %1096 = vmatmul.mubr.f32.gmra.mxu0 %v904
      %v1097 = vpop.f32.mrf.mxu0
      %v1098 = vadd.f32 0.0, %v1097
      %v1099 = vpop.f32.mrf.mxu0
      %1100 = vmatprep.mubr.f32.mxu0 0.0
      %1101 = vmatmul.mubr.f32.gmra.mxu0 %v907
      %v1102 = vpop.f32.mrf.mxu0
      %v1103 = vadd.f32 0.0, %v1102
      %v1104 = vpop.f32.mrf.mxu0
      %1105 = vmatprep.mubr.f32.mxu0 0.0
      %1106 = vmatmul.mubr.f32.gmra.mxu0 %v910
      %v1107 = vpop.f32.mrf.mxu0
      %v1108 = vadd.f32 0.0, %v1107
      %v1109 = vpop.f32.mrf.mxu0
      %1110 = vmatprep.mubr.f32.mxu0 0.0
      %1111 = vmatmul.mubr.f32.gmra.mxu0 %v913
      %v1112 = vpop.f32.mrf.mxu0
      %v1113 = vadd.f32 0.0, %v1112
      %v1114 = vpop.f32.mrf.mxu0
      %1115 = vmatprep.mubr.f32.mxu0 0.0
      %1116 = vmatmul.mubr.f32.gmra.mxu0 %v916
      %v1117 = vpop.f32.mrf.mxu0
      %v1118 = vadd.f32 0.0, %v1117
      %v1119 = vpop.f32.mrf.mxu0
      %1120 = vmatprep.mubr.f32.mxu0 0.0
      %1121 = vmatmul.mubr.f32.gmra.mxu0 %v919
      %v1122 = vpop.f32.mrf.mxu0
      %v1123 = vadd.f32 0.0, %v1122
      %v1124 = vpop.f32.mrf.mxu0
      %1125 = vmatprep.mubr.f32.mxu0 0.0
      %1126 = vmatmul.mubr.f32.gmra.mxu0 %v922
      %v1127 = vpop.f32.mrf.mxu0
      %v1128 = vadd.f32 0.0, %v1127
      %v1129 = vpop.f32.mrf.mxu0
      %1130 = vmatprep.mubr.f32.mxu0 0.0
      %1131 = vmatmul.mubr.f32.gmra.mxu0 %v925
      %v1132 = vpop.f32.mrf.mxu0
      %v1133 = vadd.f32 0.0, %v1132
      %v1134 = vpop.f32.mrf.mxu0
      %1135 = vmatprep.mubr.f32.mxu0 0.0
      %1136 = vmatmul.mubr.f32.gmra.mxu0 %v928
      %v1137 = vpop.f32.mrf.mxu0
      %v1138 = vadd.f32 0.0, %v1137
      %v1139 = vpop.f32.mrf.mxu0
      %1140 = vmatprep.mubr.f32.mxu0 0.0
      %1141 = vmatmul.mubr.f32.gmra.mxu0 %v931
      %v1142 = vpop.f32.mrf.mxu0
      %v1143 = vadd.f32 0.0, %v1142
      %v1144 = vpop.f32.mrf.mxu0
      %1145 = vmatprep.mubr.f32.mxu0 0.0
      %1146 = vmatmul.mubr.f32.gmra.mxu0 %v934
      %v1147 = vpop.f32.mrf.mxu0
      %v1148 = vadd.f32 0.0, %v1147
      %v1149 = vpop.f32.mrf.mxu0
      %1150 = vmatprep.mubr.f32.mxu0 0.0
      %1151 = vmatmul.mubr.f32.gmra.mxu0 %v937
      %v1152 = vpop.f32.mrf.mxu0
      %v1153 = vadd.f32 0.0, %v1152
      %v1154 = vpop.f32.mrf.mxu0
      %1155 = vmatprep.mubr.f32.mxu0 0.0
      %1156 = vmatmul.mubr.f32.gmra.mxu0 %v940
      %v1157 = vpop.f32.mrf.mxu0
      %v1158 = vadd.f32 0.0, %v1157
      %v1159 = vpop.f32.mrf.mxu0
      %1160 = vmatprep.mubr.f32.mxu0 0.0
      %1161 = vmatmul.mubr.f32.gmra.mxu0 %v943
      %v1162 = vpop.f32.mrf.mxu0
      %v1163 = vadd.f32 0.0, %v1162
      %v1164 = vpop.f32.mrf.mxu0
      %1165 = vmatprep.mubr.f32.mxu0 0.0
      %1166 = vmatmul.mubr.f32.gmra.mxu0 %v946
      %v1167 = vpop.f32.mrf.mxu0
      %v1168 = vadd.f32 0.0, %v1167
      %v1169 = vpop.f32.mrf.mxu0
      %1170 = vmatprep.mubr.f32.mxu0 0.0
      %1171 = vmatmul.mubr.f32.gmra.mxu0 %v949
      %v1172 = vpop.f32.mrf.mxu0
      %v1173 = vadd.f32 0.0, %v1172
      %v1174 = vpop.f32.mrf.mxu0
      %1175 = vmatprep.mubr.f32.mxu0 0.0
      %1176 = vmatmul.mubr.f32.gmra.mxu0 %v952
      %v1177 = vpop.f32.mrf.mxu0
      %v1178 = vadd.f32 0.0, %v1177
      %v1179 = vpop.f32.mrf.mxu0
      %1180 = vmatprep.mubr.f32.mxu0 0.0
      %1181 = vmatmul.mubr.f32.gmra.mxu0 %v955
      %v1182 = vpop.f32.mrf.mxu0
      %v1183 = vadd.f32 0.0, %v1182
      %v1184 = vpop.f32.mrf.mxu0
      %1185 = vdwg.mxu0
      %v1187 = vsel %vm860, %v819, 0
      %v1190 = vsel %vm860, %v820, 0
      %v1193 = vsel %vm957, %v856, 0
      %1195 = vmatprep.subr.mxu0 0.0
      %1196 = vmatpush1.msra.mxu0 0.0
      %1197 = vmatprep.subr.mxu0 0.0
      %1198 = vmatpush1.msra.mxu0 0.0
      %1199 = vmatprep.subr.mxu0 0.0
      %1200 = vmatpush1.msra.mxu0 0.0
      %1201 = vmatprep.subr.mxu0 0.0
      %1202 = vmatpush1.msra.mxu0 0.0
      %1203 = vmatprep.subr.mxu0 0.0
      %1204 = vmatpush1.msra.mxu0 0.0
      %1205 = vmatprep.subr.mxu0 0.0
      %1206 = vmatpush1.msra.mxu0 0.0
      %1207 = vmatprep.subr.mxu0 0.0
      %1208 = vmatpush1.msra.mxu0 0.0
      %1209 = vmatprep.subr.mxu0 0.0
      %1210 = vmatpush1.msra.mxu0 0.0
      %1211 = vmatprep.subr.mxu0 0.0
      %1212 = vmatpush1.msra.mxu0 0.0
      %1213 = vmatprep.subr.mxu0 0.0
      %1214 = vmatpush1.msra.mxu0 0.0
      %1215 = vmatprep.subr.mxu0 0.0
      %1216 = vmatpush1.msra.mxu0 0.0
      %1217 = vmatprep.subr.mxu0 0.0
      %1218 = vmatpush1.msra.mxu0 0.0
      %1219 = vmatprep.subr.mxu0 0.0
      %1220 = vmatpush1.msra.mxu0 0.0
      %1221 = vmatprep.subr.mxu0 0.0
      %1222 = vmatpush1.msra.mxu0 0.0
      %1223 = vmatprep.subr.mxu0 0.0
      %1224 = vmatpush1.msra.mxu0 %v1193
      %1225 = vmatprep.subr.mxu0 0.0
      %1226 = vmatpush1.msra.mxu0 %v855
      %1227 = vmatprep.subr.mxu0 0.0
      %1228 = vmatpush2.msra.mxu0 0.0
      %1229 = vmatprep.subr.mxu0 0.0
      %1230 = vmatpush2.msra.mxu0 0.0
      %1231 = vmatprep.subr.mxu0 0.0
      %1232 = vmatpush2.msra.mxu0 0.0
      %1233 = vmatprep.subr.mxu0 0.0
      %1234 = vmatpush2.msra.mxu0 0.0
      %1235 = vmatprep.subr.mxu0 0.0
      %1236 = vmatpush2.msra.mxu0 0.0
      %1237 = vmatprep.subr.mxu0 0.0
      %1238 = vmatpush2.msra.mxu0 0.0
      %1239 = vmatprep.subr.mxu0 0.0
      %1240 = vmatpush2.msra.mxu0 0.0
      %1241 = vmatprep.subr.mxu0 0.0
      %1242 = vmatpush2.msra.mxu0 0.0
      %1243 = vmatprep.subr.mxu0 0.0
      %1244 = vmatpush2.msra.mxu0 0.0
      %1245 = vmatprep.subr.mxu0 0.0
      %1246 = vmatpush2.msra.mxu0 0.0
      %1247 = vmatprep.subr.mxu0 0.0
      %1248 = vmatpush2.msra.mxu0 0.0
      %1249 = vmatprep.subr.mxu0 0.0
      %1250 = vmatpush2.msra.mxu0 0.0
      %1251 = vmatprep.subr.mxu0 0.0
      %1252 = vmatpush2.msra.mxu0 0.0
      %1253 = vmatprep.subr.mxu0 0.0
      %1254 = vmatpush2.msra.mxu0 0.0
      %1255 = vmatprep.subr.mxu0 0.0
      %1256 = vmatpush2.msra.mxu0 0.0
      %1257 = vmatprep.subr.mxu0 0.0
      %1258 = vmatpush2.msra.mxu0 0.0
      %1259 = vmatprep.mubr.f32.mxu0 0.0
      %1260 = vmatmul.mubr.f32.gmra.mxu0 %v1187
      %v1261 = vpop.f32.mrf.mxu0
      %v1262 = vadd.f32 %v1028, %v1261
      %v1263 = vpop.f32.mrf.mxu0
      %1264 = vmatprep.mubr.f32.mxu0 0.0
      %1265 = vmatmul.mubr.f32.gmra.mxu0 %v1190
      %v1266 = vpop.f32.mrf.mxu0
      %v1267 = vadd.f32 %v1033, %v1266
      %v1268 = vpop.f32.mrf.mxu0
      %1269 = vmatprep.mubr.f32.mxu0 0.0
      %1270 = vmatmul.mubr.f32.gmra.mxu0 %v862
      %v1271 = vpop.f32.mrf.mxu0
      %v1272 = vadd.f32 %v1038, %v1271
      %v1273 = vpop.f32.mrf.mxu0
      %1274 = vmatprep.mubr.f32.mxu0 0.0
      %1275 = vmatmul.mubr.f32.gmra.mxu0 %v865
      %v1276 = vpop.f32.mrf.mxu0
      %v1277 = vadd.f32 %v1043, %v1276
      %v1278 = vpop.f32.mrf.mxu0
      %1279 = vmatprep.mubr.f32.mxu0 0.0
      %1280 = vmatmul.mubr.f32.gmra.mxu0 %v868
      %v1281 = vpop.f32.mrf.mxu0
      %v1282 = vadd.f32 %v1048, %v1281
      %v1283 = vpop.f32.mrf.mxu0
      %1284 = vmatprep.mubr.f32.mxu0 0.0
      %1285 = vmatmul.mubr.f32.gmra.mxu0 %v871
      %v1286 = vpop.f32.mrf.mxu0
      %v1287 = vadd.f32 %v1053, %v1286
      %v1288 = vpop.f32.mrf.mxu0
      %1289 = vmatprep.mubr.f32.mxu0 0.0
      %1290 = vmatmul.mubr.f32.gmra.mxu0 %v874
      %v1291 = vpop.f32.mrf.mxu0
      %v1292 = vadd.f32 %v1058, %v1291
      %v1293 = vpop.f32.mrf.mxu0
      %1294 = vmatprep.mubr.f32.mxu0 0.0
      %1295 = vmatmul.mubr.f32.gmra.mxu0 %v877
      %v1296 = vpop.f32.mrf.mxu0
      %v1297 = vadd.f32 %v1063, %v1296
      %v1298 = vpop.f32.mrf.mxu0
      %1299 = vmatprep.mubr.f32.mxu0 0.0
      %1300 = vmatmul.mubr.f32.gmra.mxu0 %v880
      %v1301 = vpop.f32.mrf.mxu0
      %v1302 = vadd.f32 %v1068, %v1301
      %v1303 = vpop.f32.mrf.mxu0
      %1304 = vmatprep.mubr.f32.mxu0 0.0
      %1305 = vmatmul.mubr.f32.gmra.mxu0 %v883
      %v1306 = vpop.f32.mrf.mxu0
      %v1307 = vadd.f32 %v1073, %v1306
      %v1308 = vpop.f32.mrf.mxu0
      %1309 = vmatprep.mubr.f32.mxu0 0.0
      %1310 = vmatmul.mubr.f32.gmra.mxu0 %v886
      %v1311 = vpop.f32.mrf.mxu0
      %v1312 = vadd.f32 %v1078, %v1311
      %v1313 = vpop.f32.mrf.mxu0
      %1314 = vmatprep.mubr.f32.mxu0 0.0
      %1315 = vmatmul.mubr.f32.gmra.mxu0 %v889
      %v1316 = vpop.f32.mrf.mxu0
      %v1317 = vadd.f32 %v1083, %v1316
      %v1318 = vpop.f32.mrf.mxu0
      %1319 = vmatprep.mubr.f32.mxu0 0.0
      %1320 = vmatmul.mubr.f32.gmra.mxu0 %v892
      %v1321 = vpop.f32.mrf.mxu0
      %v1322 = vadd.f32 %v1088, %v1321
      %v1323 = vpop.f32.mrf.mxu0
      %1324 = vmatprep.mubr.f32.mxu0 0.0
      %1325 = vmatmul.mubr.f32.gmra.mxu0 %v895
      %v1326 = vpop.f32.mrf.mxu0
      %v1327 = vadd.f32 %v1093, %v1326
      %v1328 = vpop.f32.mrf.mxu0
      %1329 = vmatprep.mubr.f32.mxu0 0.0
      %1330 = vmatmul.mubr.f32.gmra.mxu0 %v898
      %v1331 = vpop.f32.mrf.mxu0
      %v1332 = vadd.f32 %v1098, %v1331
      %v1333 = vpop.f32.mrf.mxu0
      %1334 = vmatprep.mubr.f32.mxu0 0.0
      %1335 = vmatmul.mubr.f32.gmra.mxu0 %v901
      %v1336 = vpop.f32.mrf.mxu0
      %v1337 = vadd.f32 %v1103, %v1336
      %v1338 = vpop.f32.mrf.mxu0
      %1339 = vmatprep.mubr.f32.mxu0 0.0
      %1340 = vmatmul.mubr.f32.gmra.mxu0 %v904
      %v1341 = vpop.f32.mrf.mxu0
      %v1342 = vadd.f32 %v1108, %v1341
      %v1343 = vpop.f32.mrf.mxu0
      %1344 = vmatprep.mubr.f32.mxu0 0.0
      %1345 = vmatmul.mubr.f32.gmra.mxu0 %v907
      %v1346 = vpop.f32.mrf.mxu0
      %v1347 = vadd.f32 %v1113, %v1346
      %v1348 = vpop.f32.mrf.mxu0
      %1349 = vmatprep.mubr.f32.mxu0 0.0
      %1350 = vmatmul.mubr.f32.gmra.mxu0 %v910
      %v1351 = vpop.f32.mrf.mxu0
      %v1352 = vadd.f32 %v1118, %v1351
      %v1353 = vpop.f32.mrf.mxu0
      %1354 = vmatprep.mubr.f32.mxu0 0.0
      %1355 = vmatmul.mubr.f32.gmra.mxu0 %v913
      %v1356 = vpop.f32.mrf.mxu0
      %v1357 = vadd.f32 %v1123, %v1356
      %v1358 = vpop.f32.mrf.mxu0
      %1359 = vmatprep.mubr.f32.mxu0 0.0
      %1360 = vmatmul.mubr.f32.gmra.mxu0 %v916
      %v1361 = vpop.f32.mrf.mxu0
      %v1362 = vadd.f32 %v1128, %v1361
      %v1363 = vpop.f32.mrf.mxu0
      %1364 = vmatprep.mubr.f32.mxu0 0.0
      %1365 = vmatmul.mubr.f32.gmra.mxu0 %v919
      %v1366 = vpop.f32.mrf.mxu0
      %v1367 = vadd.f32 %v1133, %v1366
      %v1368 = vpop.f32.mrf.mxu0
      %1369 = vmatprep.mubr.f32.mxu0 0.0
      %1370 = vmatmul.mubr.f32.gmra.mxu0 %v922
      %v1371 = vpop.f32.mrf.mxu0
      %v1372 = vadd.f32 %v1138, %v1371
      %v1373 = vpop.f32.mrf.mxu0
      %1374 = vmatprep.mubr.f32.mxu0 0.0
      %1375 = vmatmul.mubr.f32.gmra.mxu0 %v925
      %v1376 = vpop.f32.mrf.mxu0
      %v1377 = vadd.f32 %v1143, %v1376
      %v1378 = vpop.f32.mrf.mxu0
      %1379 = vmatprep.mubr.f32.mxu0 0.0
      %1380 = vmatmul.mubr.f32.gmra.mxu0 %v928
      %v1381 = vpop.f32.mrf.mxu0
      %v1382 = vadd.f32 %v1148, %v1381
      %v1383 = vpop.f32.mrf.mxu0
      %1384 = vmatprep.mubr.f32.mxu0 0.0
      %1385 = vmatmul.mubr.f32.gmra.mxu0 %v931
      %v1386 = vpop.f32.mrf.mxu0
      %v1387 = vadd.f32 %v1153, %v1386
      %v1388 = vpop.f32.mrf.mxu0
      %1389 = vmatprep.mubr.f32.mxu0 0.0
      %1390 = vmatmul.mubr.f32.gmra.mxu0 %v934
      %v1391 = vpop.f32.mrf.mxu0
      %v1392 = vadd.f32 %v1158, %v1391
      %v1393 = vpop.f32.mrf.mxu0
      %1394 = vmatprep.mubr.f32.mxu0 0.0
      %1395 = vmatmul.mubr.f32.gmra.mxu0 %v937
      %v1396 = vpop.f32.mrf.mxu0
      %v1397 = vadd.f32 %v1163, %v1396
      %v1398 = vpop.f32.mrf.mxu0
      %1399 = vmatprep.mubr.f32.mxu0 0.0
      %1400 = vmatmul.mubr.f32.gmra.mxu0 %v940
      %v1401 = vpop.f32.mrf.mxu0
      %v1402 = vadd.f32 %v1168, %v1401
      %v1403 = vpop.f32.mrf.mxu0
      %1404 = vmatprep.mubr.f32.mxu0 0.0
      %1405 = vmatmul.mubr.f32.gmra.mxu0 %v943
      %v1406 = vpop.f32.mrf.mxu0
      %v1407 = vadd.f32 %v1173, %v1406
      %v1408 = vpop.f32.mrf.mxu0
      %1409 = vmatprep.mubr.f32.mxu0 0.0
      %1410 = vmatmul.mubr.f32.gmra.mxu0 %v946
      %v1411 = vpop.f32.mrf.mxu0
      %v1412 = vadd.f32 %v1178, %v1411
      %v1413 = vpop.f32.mrf.mxu0
      %1414 = vmatprep.mubr.f32.mxu0 0.0
      %1415 = vmatmul.mubr.f32.gmra.mxu0 %v949
      %v1416 = vpop.f32.mrf.mxu0
      %v1417 = vadd.f32 %v1183, %v1416
      %v1418 = vpop.f32.mrf.mxu0
      %1419 = vdwg.mxu0
      %s1420 = scalar_lea.vmem %s1, 32
      %v1421 = vld [vmem:[%s1420] sm:$0xff]
      %v1422 = vld [vmem:[%s1420 + $0x8] sm:$0xf]
      %v1424 = vsel %vm860, %v853, 0
      %v1427 = vsel %vm860, %v854, 0
      %v1430 = vsel %vm957, %v1422, 0
      %1432 = vmatprep.subr.mxu0 0.0
      %1433 = vmatpush1.msra.mxu0 0.0
      %1434 = vmatprep.subr.mxu0 0.0
      %1435 = vmatpush1.msra.mxu0 0.0
      %1436 = vmatprep.subr.mxu0 0.0
      %1437 = vmatpush1.msra.mxu0 0.0
      %1438 = vmatprep.subr.mxu0 0.0
      %1439 = vmatpush1.msra.mxu0 0.0
      %1440 = vmatprep.subr.mxu0 0.0
      %1441 = vmatpush1.msra.mxu0 0.0
      %1442 = vmatprep.subr.mxu0 0.0
      %1443 = vmatpush1.msra.mxu0 0.0
      %1444 = vmatprep.subr.mxu0 0.0
      %1445 = vmatpush1.msra.mxu0 0.0
      %1446 = vmatprep.subr.mxu0 0.0
      %1447 = vmatpush1.msra.mxu0 0.0
      %1448 = vmatprep.subr.mxu0 0.0
      %1449 = vmatpush1.msra.mxu0 0.0
      %1450 = vmatprep.subr.mxu0 0.0
      %1451 = vmatpush1.msra.mxu0 0.0
      %1452 = vmatprep.subr.mxu0 0.0
      %1453 = vmatpush1.msra.mxu0 0.0
      %1454 = vmatprep.subr.mxu0 0.0
      %1455 = vmatpush1.msra.mxu0 0.0
      %1456 = vmatprep.subr.mxu0 0.0
      %1457 = vmatpush1.msra.mxu0 0.0
      %1458 = vmatprep.subr.mxu0 0.0
      %1459 = vmatpush1.msra.mxu0 0.0
      %1460 = vmatprep.subr.mxu0 0.0
      %1461 = vmatpush1.msra.mxu0 %v1430
      %1462 = vmatprep.subr.mxu0 0.0
      %1463 = vmatpush1.msra.mxu0 %v1421
      %1464 = vmatprep.subr.mxu0 0.0
      %1465 = vmatpush2.msra.mxu0 0.0
      %1466 = vmatprep.subr.mxu0 0.0
      %1467 = vmatpush2.msra.mxu0 0.0
      %1468 = vmatprep.subr.mxu0 0.0
      %1469 = vmatpush2.msra.mxu0 0.0
      %1470 = vmatprep.subr.mxu0 0.0
      %1471 = vmatpush2.msra.mxu0 0.0
      %1472 = vmatprep.subr.mxu0 0.0
      %1473 = vmatpush2.msra.mxu0 0.0
      %1474 = vmatprep.subr.mxu0 0.0
      %1475 = vmatpush2.msra.mxu0 0.0
      %1476 = vmatprep.subr.mxu0 0.0
      %1477 = vmatpush2.msra.mxu0 0.0
      %1478 = vmatprep.subr.mxu0 0.0
      %1479 = vmatpush2.msra.mxu0 0.0
      %1480 = vmatprep.subr.mxu0 0.0
      %1481 = vmatpush2.msra.mxu0 0.0
      %1482 = vmatprep.subr.mxu0 0.0
      %1483 = vmatpush2.msra.mxu0 0.0
      %1484 = vmatprep.subr.mxu0 0.0
      %1485 = vmatpush2.msra.mxu0 0.0
      %1486 = vmatprep.subr.mxu0 0.0
      %1487 = vmatpush2.msra.mxu0 0.0
      %1488 = vmatprep.subr.mxu0 0.0
      %1489 = vmatpush2.msra.mxu0 0.0
      %1490 = vmatprep.subr.mxu0 0.0
      %1491 = vmatpush2.msra.mxu0 0.0
      %1492 = vmatprep.subr.mxu0 0.0
      %1493 = vmatpush2.msra.mxu0 0.0
      %1494 = vmatprep.subr.mxu0 0.0
      %1495 = vmatpush2.msra.mxu0 0.0
      %1496 = vmatprep.mubr.f32.mxu0 0.0
      %1497 = vmatmul.mubr.f32.gmra.mxu0 %v868
      %v1498 = vpop.f32.mrf.mxu0
      %v1499 = vadd.f32 0.0, %v1498
      %v1500 = vpop.f32.mrf.mxu0
      %1501 = vmatprep.mubr.f32.mxu0 0.0
      %1502 = vmatmul.mubr.f32.gmra.mxu0 %v871
      %v1503 = vpop.f32.mrf.mxu0
      %v1504 = vadd.f32 0.0, %v1503
      %v1505 = vpop.f32.mrf.mxu0
      %1506 = vmatprep.mubr.f32.mxu0 0.0
      %1507 = vmatmul.mubr.f32.gmra.mxu0 %v874
      %v1508 = vpop.f32.mrf.mxu0
      %v1509 = vadd.f32 0.0, %v1508
      %v1510 = vpop.f32.mrf.mxu0
      %1511 = vmatprep.mubr.f32.mxu0 0.0
      %1512 = vmatmul.mubr.f32.gmra.mxu0 %v877
      %v1513 = vpop.f32.mrf.mxu0
      %v1514 = vadd.f32 0.0, %v1513
      %v1515 = vpop.f32.mrf.mxu0
      %1516 = vmatprep.mubr.f32.mxu0 0.0
      %1517 = vmatmul.mubr.f32.gmra.mxu0 %v880
      %v1518 = vpop.f32.mrf.mxu0
      %v1519 = vadd.f32 0.0, %v1518
      %v1520 = vpop.f32.mrf.mxu0
      %1521 = vmatprep.mubr.f32.mxu0 0.0
      %1522 = vmatmul.mubr.f32.gmra.mxu0 %v883
      %v1523 = vpop.f32.mrf.mxu0
      %v1524 = vadd.f32 0.0, %v1523
      %v1525 = vpop.f32.mrf.mxu0
      %1526 = vmatprep.mubr.f32.mxu0 0.0
      %1527 = vmatmul.mubr.f32.gmra.mxu0 %v886
      %v1528 = vpop.f32.mrf.mxu0
      %v1529 = vadd.f32 0.0, %v1528
      %v1530 = vpop.f32.mrf.mxu0
      %1531 = vmatprep.mubr.f32.mxu0 0.0
      %1532 = vmatmul.mubr.f32.gmra.mxu0 %v889
      %v1533 = vpop.f32.mrf.mxu0
      %v1534 = vadd.f32 0.0, %v1533
      %v1535 = vpop.f32.mrf.mxu0
      %1536 = vmatprep.mubr.f32.mxu0 0.0
      %1537 = vmatmul.mubr.f32.gmra.mxu0 %v892
      %v1538 = vpop.f32.mrf.mxu0
      %v1539 = vadd.f32 0.0, %v1538
      %v1540 = vpop.f32.mrf.mxu0
      %1541 = vmatprep.mubr.f32.mxu0 0.0
      %1542 = vmatmul.mubr.f32.gmra.mxu0 %v895
      %v1543 = vpop.f32.mrf.mxu0
      %v1544 = vadd.f32 0.0, %v1543
      %v1545 = vpop.f32.mrf.mxu0
      %1546 = vmatprep.mubr.f32.mxu0 0.0
      %1547 = vmatmul.mubr.f32.gmra.mxu0 %v898
      %v1548 = vpop.f32.mrf.mxu0
      %v1549 = vadd.f32 0.0, %v1548
      %v1550 = vpop.f32.mrf.mxu0
      %1551 = vmatprep.mubr.f32.mxu0 0.0
      %1552 = vmatmul.mubr.f32.gmra.mxu0 %v901
      %v1553 = vpop.f32.mrf.mxu0
      %v1554 = vadd.f32 0.0, %v1553
      %v1555 = vpop.f32.mrf.mxu0
      %1556 = vmatprep.mubr.f32.mxu0 0.0
      %1557 = vmatmul.mubr.f32.gmra.mxu0 %v904
      %v1558 = vpop.f32.mrf.mxu0
      %v1559 = vadd.f32 0.0, %v1558
      %v1560 = vpop.f32.mrf.mxu0
      %1561 = vmatprep.mubr.f32.mxu0 0.0
      %1562 = vmatmul.mubr.f32.gmra.mxu0 %v907
      %v1563 = vpop.f32.mrf.mxu0
      %v1564 = vadd.f32 0.0, %v1563
      %v1565 = vpop.f32.mrf.mxu0
      %1566 = vmatprep.mubr.f32.mxu0 0.0
      %1567 = vmatmul.mubr.f32.gmra.mxu0 %v910
      %v1568 = vpop.f32.mrf.mxu0
      %v1569 = vadd.f32 0.0, %v1568
      %v1570 = vpop.f32.mrf.mxu0
      %1571 = vmatprep.mubr.f32.mxu0 0.0
      %1572 = vmatmul.mubr.f32.gmra.mxu0 %v913
      %v1573 = vpop.f32.mrf.mxu0
      %v1574 = vadd.f32 0.0, %v1573
      %v1575 = vpop.f32.mrf.mxu0
      %1576 = vmatprep.mubr.f32.mxu0 0.0
      %1577 = vmatmul.mubr.f32.gmra.mxu0 %v916
      %v1578 = vpop.f32.mrf.mxu0
      %v1579 = vadd.f32 0.0, %v1578
      %v1580 = vpop.f32.mrf.mxu0
      %1581 = vmatprep.mubr.f32.mxu0 0.0
      %1582 = vmatmul.mubr.f32.gmra.mxu0 %v919
      %v1583 = vpop.f32.mrf.mxu0
      %v1584 = vadd.f32 0.0, %v1583
      %v1585 = vpop.f32.mrf.mxu0
      %1586 = vmatprep.mubr.f32.mxu0 0.0
      %1587 = vmatmul.mubr.f32.gmra.mxu0 %v922
      %v1588 = vpop.f32.mrf.mxu0
      %v1589 = vadd.f32 0.0, %v1588
      %v1590 = vpop.f32.mrf.mxu0
      %1591 = vmatprep.mubr.f32.mxu0 0.0
      %1592 = vmatmul.mubr.f32.gmra.mxu0 %v925
      %v1593 = vpop.f32.mrf.mxu0
      %v1594 = vadd.f32 0.0, %v1593
      %v1595 = vpop.f32.mrf.mxu0
      %1596 = vmatprep.mubr.f32.mxu0 0.0
      %1597 = vmatmul.mubr.f32.gmra.mxu0 %v928
      %v1598 = vpop.f32.mrf.mxu0
      %v1599 = vadd.f32 0.0, %v1598
      %v1600 = vpop.f32.mrf.mxu0
      %1601 = vmatprep.mubr.f32.mxu0 0.0
      %1602 = vmatmul.mubr.f32.gmra.mxu0 %v931
      %v1603 = vpop.f32.mrf.mxu0
      %v1604 = vadd.f32 0.0, %v1603
      %v1605 = vpop.f32.mrf.mxu0
      %1606 = vmatprep.mubr.f32.mxu0 0.0
      %1607 = vmatmul.mubr.f32.gmra.mxu0 %v934
      %v1608 = vpop.f32.mrf.mxu0
      %v1609 = vadd.f32 0.0, %v1608
      %v1610 = vpop.f32.mrf.mxu0
      %1611 = vmatprep.mubr.f32.mxu0 0.0
      %1612 = vmatmul.mubr.f32.gmra.mxu0 %v937
      %v1613 = vpop.f32.mrf.mxu0
      %v1614 = vadd.f32 0.0, %v1613
      %v1615 = vpop.f32.mrf.mxu0
      %1616 = vmatprep.mubr.f32.mxu0 0.0
      %1617 = vmatmul.mubr.f32.gmra.mxu0 %v940
      %v1618 = vpop.f32.mrf.mxu0
      %v1619 = vadd.f32 0.0, %v1618
      %v1620 = vpop.f32.mrf.mxu0
      %1621 = vmatprep.mubr.f32.mxu0 0.0
      %1622 = vmatmul.mubr.f32.gmra.mxu0 %v943
      %v1623 = vpop.f32.mrf.mxu0
      %v1624 = vadd.f32 0.0, %v1623
      %v1625 = vpop.f32.mrf.mxu0
      %1626 = vmatprep.mubr.f32.mxu0 0.0
      %1627 = vmatmul.mubr.f32.gmra.mxu0 %v946
      %v1628 = vpop.f32.mrf.mxu0
      %v1629 = vadd.f32 0.0, %v1628
      %v1630 = vpop.f32.mrf.mxu0
      %1631 = vmatprep.mubr.f32.mxu0 0.0
      %1632 = vmatmul.mubr.f32.gmra.mxu0 %v949
      %v1633 = vpop.f32.mrf.mxu0
      %v1634 = vadd.f32 0.0, %v1633
      %v1635 = vpop.f32.mrf.mxu0
      %1636 = vmatprep.mubr.f32.mxu0 0.0
      %1637 = vmatmul.mubr.f32.gmra.mxu0 %v952
      %v1638 = vpop.f32.mrf.mxu0
      %v1639 = vadd.f32 0.0, %v1638
      %v1640 = vpop.f32.mrf.mxu0
      %1641 = vmatprep.mubr.f32.mxu0 0.0
      %1642 = vmatmul.mubr.f32.gmra.mxu0 %v955
      %v1643 = vpop.f32.mrf.mxu0
      %v1644 = vadd.f32 0.0, %v1643
      %v1645 = vpop.f32.mrf.mxu0
      %1646 = vmatprep.mubr.f32.mxu0 0.0
      %1647 = vmatmul.mubr.f32.gmra.mxu0 %v1424
      %v1648 = vpop.f32.mrf.mxu0
      %v1649 = vadd.f32 0.0, %v1648
      %v1650 = vpop.f32.mrf.mxu0
      %1651 = vmatprep.mubr.f32.mxu0 0.0
      %1652 = vmatmul.mubr.f32.gmra.mxu0 %v1427
      %v1653 = vpop.f32.mrf.mxu0
      %v1654 = vadd.f32 0.0, %v1653
      %v1655 = vpop.f32.mrf.mxu0
      %1656 = vdwg.mxu0
      %v1657 = vadd.f32 %v1262, %v1499
      %v1658 = vadd.f32 %v1267, %v1504
      %v1659 = vadd.f32 %v1272, %v1509
      %v1660 = vadd.f32 %v1277, %v1514
      %v1661 = vadd.f32 %v1282, %v1519
      %v1662 = vadd.f32 %v1287, %v1524
      %v1663 = vadd.f32 %v1292, %v1529
      %v1664 = vadd.f32 %v1297, %v1534
      %v1665 = vadd.f32 %v1302, %v1539
      %v1666 = vadd.f32 %v1307, %v1544
      %v1667 = vadd.f32 %v1312, %v1549
      %v1668 = vadd.f32 %v1317, %v1554
      %v1669 = vadd.f32 %v1322, %v1559
      %v1670 = vadd.f32 %v1327, %v1564
      %v1671 = vadd.f32 %v1332, %v1569
      %v1672 = vadd.f32 %v1337, %v1574
      %v1673 = vadd.f32 %v1342, %v1579
      %v1674 = vadd.f32 %v1347, %v1584
      %v1675 = vadd.f32 %v1352, %v1589
      %v1676 = vadd.f32 %v1357, %v1594
      %v1677 = vadd.f32 %v1362, %v1599
      %v1678 = vadd.f32 %v1367, %v1604
      %v1679 = vadd.f32 %v1372, %v1609
      %v1680 = vadd.f32 %v1377, %v1614
      %v1681 = vadd.f32 %v1382, %v1619
      %v1682 = vadd.f32 %v1387, %v1624
      %v1683 = vadd.f32 %v1392, %v1629
      %v1684 = vadd.f32 %v1397, %v1634
      %v1685 = vadd.f32 %v1402, %v1639
      %v1686 = vadd.f32 %v1407, %v1644
      %v1687 = vadd.f32 %v1412, %v1649
      %v1688 = vadd.f32 %v1417, %v1654
      %v1689 = vld [vmem:[%s3] sm:$0x1]
      %v1691 = vlaneseq
      %v1692 = vshrl.u32 %v1691, 7
      %v1693 = vsub.s32 0, %v1692
      %v1694 = vrot.slane %v1689, %v1693
      %v1696 = vmul.f32 %v1657, %v1694
      %v1697 = vmul.f32 %v1658, %v1694
      %v1698 = vmul.f32 %v1659, %v1694
      %v1699 = vmul.f32 %v1660, %v1694
      %v1700 = vmul.f32 %v1661, %v1694
      %v1701 = vmul.f32 %v1662, %v1694
      %v1702 = vmul.f32 %v1663, %v1694
      %v1703 = vmul.f32 %v1664, %v1694
      %v1704 = vmul.f32 %v1665, %v1694
      %v1705 = vmul.f32 %v1666, %v1694
      %v1706 = vmul.f32 %v1667, %v1694
      %v1707 = vmul.f32 %v1668, %v1694
      %v1708 = vmul.f32 %v1669, %v1694
      %v1709 = vmul.f32 %v1670, %v1694
      %v1710 = vmul.f32 %v1671, %v1694
      %v1711 = vmul.f32 %v1672, %v1694
      %v1712 = vmul.f32 %v1673, %v1694
      %v1713 = vmul.f32 %v1674, %v1694
      %v1714 = vmul.f32 %v1675, %v1694
      %v1715 = vmul.f32 %v1676, %v1694
      %v1716 = vmul.f32 %v1677, %v1694
      %v1717 = vmul.f32 %v1678, %v1694
      %v1718 = vmul.f32 %v1679, %v1694
      %v1719 = vmul.f32 %v1680, %v1694
      %v1720 = vmul.f32 %v1681, %v1694
      %v1721 = vmul.f32 %v1682, %v1694
      %v1722 = vmul.f32 %v1683, %v1694
      %v1723 = vmul.f32 %v1684, %v1694
      %v1724 = vmul.f32 %v1685, %v1694
      %v1725 = vmul.f32 %v1686, %v1694
      %v1726 = vmul.f32 %v1687, %v1694
      %v1727 = vmul.f32 %v1688, %v1694
      %v1728 = vld [vmem:[%s4] sm:$0x1]
      %v1730 = vlaneseq
      %v1731 = vshrl.u32 %v1730, 7
      %v1732 = vsub.s32 0, %v1731
      %v1733 = vrot.slane %v1728, %v1732
      %v1735 = vadd.f32 %v1696, %v1733
      %v1736 = vadd.f32 %v1697, %v1733
      %v1737 = vadd.f32 %v1698, %v1733
      %v1738 = vadd.f32 %v1699, %v1733
      %v1739 = vadd.f32 %v1700, %v1733
      %v1740 = vadd.f32 %v1701, %v1733
      %v1741 = vadd.f32 %v1702, %v1733
      %v1742 = vadd.f32 %v1703, %v1733
      %v1743 = vadd.f32 %v1704, %v1733
      %v1744 = vadd.f32 %v1705, %v1733
      %v1745 = vadd.f32 %v1706, %v1733
      %v1746 = vadd.f32 %v1707, %v1733
      %v1747 = vadd.f32 %v1708, %v1733
      %v1748 = vadd.f32 %v1709, %v1733
      %v1749 = vadd.f32 %v1710, %v1733
      %v1750 = vadd.f32 %v1711, %v1733
      %v1751 = vadd.f32 %v1712, %v1733
      %v1752 = vadd.f32 %v1713, %v1733
      %v1753 = vadd.f32 %v1714, %v1733
      %v1754 = vadd.f32 %v1715, %v1733
      %v1755 = vadd.f32 %v1716, %v1733
      %v1756 = vadd.f32 %v1717, %v1733
      %v1757 = vadd.f32 %v1718, %v1733
      %v1758 = vadd.f32 %v1719, %v1733
      %v1759 = vadd.f32 %v1720, %v1733
      %v1760 = vadd.f32 %v1721, %v1733
      %v1761 = vadd.f32 %v1722, %v1733
      %v1762 = vadd.f32 %v1723, %v1733
      %v1763 = vadd.f32 %v1724, %v1733
      %v1764 = vadd.f32 %v1725, %v1733
      %v1765 = vadd.f32 %v1726, %v1733
      %v1766 = vadd.f32 %v1727, %v1733
      %v1767 = vmax.f32 %v1735, 0.0
      %v1768 = vmax.f32 %v1736, 0.0
      %v1769 = vmax.f32 %v1737, 0.0
      %v1770 = vmax.f32 %v1738, 0.0
      %v1771 = vmax.f32 %v1739, 0.0
      %v1772 = vmax.f32 %v1740, 0.0
      %v1773 = vmax.f32 %v1741, 0.0
      %v1774 = vmax.f32 %v1742, 0.0
      %v1775 = vmax.f32 %v1743, 0.0
      %v1776 = vmax.f32 %v1744, 0.0
      %v1777 = vmax.f32 %v1745, 0.0
      %v1778 = vmax.f32 %v1746, 0.0
      %v1779 = vmax.f32 %v1747, 0.0
      %v1780 = vmax.f32 %v1748, 0.0
      %v1781 = vmax.f32 %v1749, 0.0
      %v1782 = vmax.f32 %v1750, 0.0
      %v1783 = vmax.f32 %v1751, 0.0
      %v1784 = vmax.f32 %v1752, 0.0
      %v1785 = vmax.f32 %v1753, 0.0
      %v1786 = vmax.f32 %v1754, 0.0
      %v1787 = vmax.f32 %v1755, 0.0
      %v1788 = vmax.f32 %v1756, 0.0
      %v1789 = vmax.f32 %v1757, 0.0
      %v1790 = vmax.f32 %v1758, 0.0
      %v1791 = vmax.f32 %v1759, 0.0
      %v1792 = vmax.f32 %v1760, 0.0
      %v1793 = vmax.f32 %v1761, 0.0
      %v1794 = vmax.f32 %v1762, 0.0
      %v1795 = vmax.f32 %v1763, 0.0
      %v1796 = vmax.f32 %v1764, 0.0
      %v1797 = vmax.f32 %v1765, 0.0
      %v1798 = vmax.f32 %v1766, 0.0
      %1799 = vst.msk [vmem:[%s320 + $0x1] sm:$0xff] %vm311, %v1767
      %1800 = vst.msk [vmem:[%s320 + $0x9] sm:$0xff] %vm311, %v1768
      %1801 = vst.msk [vmem:[%s320 + $0x19] sm:$0xff] %vm311, %v1769
      %1802 = vst.msk [vmem:[%s320 + $0x21] sm:$0xff] %vm311, %v1770
      %1803 = vst.msk [vmem:[%s320 + $0x31] sm:$0xff] %vm311, %v1771
      %1804 = vst.msk [vmem:[%s320 + $0x39] sm:$0xff] %vm311, %v1772
      %1805 = vst.msk [vmem:[%s320 + $0x49] sm:$0xff] %vm311, %v1773
      %1806 = vst.msk [vmem:[%s320 + $0x51] sm:$0xff] %vm311, %v1774
      %1807 = vst.msk [vmem:[%s320 + $0x61] sm:$0xff] %vm311, %v1775
      %1808 = vst.msk [vmem:[%s320 + $0x69] sm:$0xff] %vm311, %v1776
      %1809 = vst.msk [vmem:[%s320 + $0x79] sm:$0xff] %vm311, %v1777
      %1810 = vst.msk [vmem:[%s320 + $0x81] sm:$0xff] %vm311, %v1778
      %1811 = vst.msk [vmem:[%s320 + $0x91] sm:$0xff] %vm311, %v1779
      %1812 = vst.msk [vmem:[%s320 + $0x99] sm:$0xff] %vm311, %v1780
      %1813 = vst.msk [vmem:[%s320 + $0xa9] sm:$0xff] %vm311, %v1781
      %1814 = vst.msk [vmem:[%s320 + $0xb1] sm:$0xff] %vm311, %v1782
      %1815 = vst.msk [vmem:[%s320 + $0xc1] sm:$0xff] %vm311, %v1783
      %1816 = vst.msk [vmem:[%s320 + $0xc9] sm:$0xff] %vm311, %v1784
      %1817 = vst.msk [vmem:[%s320 + $0xd9] sm:$0xff] %vm311, %v1785
      %1818 = vst.msk [vmem:[%s320 + $0xe1] sm:$0xff] %vm311, %v1786
      %1819 = vst.msk [vmem:[%s320 + $0xf1] sm:$0xff] %vm311, %v1787
      %1820 = vst.msk [vmem:[%s320 + $0xf9] sm:$0xff] %vm311, %v1788
      %1821 = vst.msk [vmem:[%s320 + $0x109] sm:$0xff] %vm311, %v1789
      %1822 = vst.msk [vmem:[%s320 + $0x111] sm:$0xff] %vm311, %v1790
      %1823 = vst.msk [vmem:[%s320 + $0x121] sm:$0xff] %vm311, %v1791
      %1824 = vst.msk [vmem:[%s320 + $0x129] sm:$0xff] %vm311, %v1792
      %1825 = vst.msk [vmem:[%s320 + $0x139] sm:$0xff] %vm311, %v1793
      %1826 = vst.msk [vmem:[%s320 + $0x141] sm:$0xff] %vm311, %v1794
      %1827 = vst.msk [vmem:[%s320 + $0x151] sm:$0xff] %vm311, %v1795
      %1828 = vst.msk [vmem:[%s320 + $0x159] sm:$0xff] %vm311, %v1796
      %1829 = vst.msk [vmem:[%s320 + $0x169] sm:$0xff] %vm311, %v1797
      %1830 = vst.msk [vmem:[%s320 + $0x171] sm:$0xff] %vm311, %v1798
      %v1831 = vld [vmem:[#allocation2] sm:$0xff]
      %v1832 = vld [vmem:[#allocation2 + $0x8] sm:$0xff]
      %v1833 = vld [vmem:[#allocation2 + $0x18] sm:$0xff]
      %v1834 = vld [vmem:[#allocation2 + $0x20] sm:$0xff]
      %v1835 = vld [vmem:[#allocation2 + $0x30] sm:$0xff]
      %v1836 = vld [vmem:[#allocation2 + $0x38] sm:$0xff]
      %v1837 = vld [vmem:[#allocation2 + $0x48] sm:$0xff]
      %v1838 = vld [vmem:[#allocation2 + $0x50] sm:$0xff]
      %v1839 = vld [vmem:[#allocation2 + $0x60] sm:$0xff]
      %v1840 = vld [vmem:[#allocation2 + $0x68] sm:$0xff]
      %v1841 = vld [vmem:[#allocation2 + $0x78] sm:$0xff]
      %v1842 = vld [vmem:[#allocation2 + $0x80] sm:$0xff]
      %v1843 = vld [vmem:[#allocation2 + $0x90] sm:$0xff]
      %v1844 = vld [vmem:[#allocation2 + $0x98] sm:$0xff]
      %v1845 = vld [vmem:[#allocation2 + $0xa8] sm:$0xff]
      %v1846 = vld [vmem:[#allocation2 + $0xb0] sm:$0xff]
      %v1847 = vld [vmem:[#allocation2 + $0xc0] sm:$0xff]
      %v1848 = vld [vmem:[#allocation2 + $0xc8] sm:$0xff]
      %v1849 = vld [vmem:[#allocation2 + $0xd8] sm:$0xff]
      %v1850 = vld [vmem:[#allocation2 + $0xe0] sm:$0xff]
      %v1851 = vld [vmem:[#allocation2 + $0xf0] sm:$0xff]
      %v1852 = vld [vmem:[#allocation2 + $0xf8] sm:$0xff]
      %v1853 = vld [vmem:[#allocation2 + $0x108] sm:$0xff]
      %v1854 = vld [vmem:[#allocation2 + $0x110] sm:$0xff]
      %v1855 = vld [vmem:[#allocation2 + $0x120] sm:$0xff]
      %v1856 = vld [vmem:[#allocation2 + $0x128] sm:$0xff]
      %v1857 = vld [vmem:[#allocation2 + $0x138] sm:$0xff]
      %v1858 = vld [vmem:[#allocation2 + $0x140] sm:$0xff]
      %v1859 = vld [vmem:[#allocation2 + $0x150] sm:$0xff]
      %v1860 = vld [vmem:[#allocation2 + $0x158] sm:$0xff]
      %v1861 = vld [vmem:[#allocation2 + $0x168] sm:$0xff]
      %v1862 = vld [vmem:[#allocation2 + $0x170] sm:$0xff]
      %v1863 = vld [vmem:[#allocation2 + $0x180] sm:$0xff]
      %v1864 = vld [vmem:[#allocation2 + $0x188] sm:$0xff]
      %v1865 = vld [vmem:[#allocation2 + $0x198] sm:$0xff]
      %v1866 = vld [vmem:[#allocation2 + $0x1a0] sm:$0xff]
      %v1867 = vld [vmem:[#allocation2 + $0x1] sm:$0xff]
      %v1868 = vld [vmem:[#allocation2 + $0x9] sm:$0xff]
      %v1869 = vld [vmem:[#allocation2 + $0x19] sm:$0xff]
      %v1870 = vld [vmem:[#allocation2 + $0x21] sm:$0xff]
      %v1871 = vld [vmem:[#allocation2 + $0x31] sm:$0xff]
      %v1872 = vld [vmem:[#allocation2 + $0x39] sm:$0xff]
      %v1873 = vld [vmem:[#allocation2 + $0x49] sm:$0xff]
      %v1874 = vld [vmem:[#allocation2 + $0x51] sm:$0xff]
      %v1875 = vld [vmem:[#allocation2 + $0x61] sm:$0xff]
      %v1876 = vld [vmem:[#allocation2 + $0x69] sm:$0xff]
      %v1877 = vld [vmem:[#allocation2 + $0x79] sm:$0xff]
      %v1878 = vld [vmem:[#allocation2 + $0x81] sm:$0xff]
      %v1879 = vld [vmem:[#allocation2 + $0x91] sm:$0xff]
      %v1880 = vld [vmem:[#allocation2 + $0x99] sm:$0xff]
      %v1881 = vld [vmem:[#allocation2 + $0xa9] sm:$0xff]
      %v1882 = vld [vmem:[#allocation2 + $0xb1] sm:$0xff]
      %v1883 = vld [vmem:[#allocation2 + $0xc1] sm:$0xff]
      %v1884 = vld [vmem:[#allocation2 + $0xc9] sm:$0xff]
      %v1885 = vld [vmem:[#allocation2 + $0xd9] sm:$0xff]
      %v1886 = vld [vmem:[#allocation2 + $0xe1] sm:$0xff]
      %v1887 = vld [vmem:[#allocation2 + $0xf1] sm:$0xff]
      %v1888 = vld [vmem:[#allocation2 + $0xf9] sm:$0xff]
      %v1889 = vld [vmem:[#allocation2 + $0x109] sm:$0xff]
      %v1890 = vld [vmem:[#allocation2 + $0x111] sm:$0xff]
      %v1891 = vld [vmem:[#allocation2 + $0x121] sm:$0xff]
      %v1892 = vld [vmem:[#allocation2 + $0x129] sm:$0xff]
      %v1893 = vld [vmem:[#allocation2 + $0x139] sm:$0xff]
      %v1894 = vld [vmem:[#allocation2 + $0x141] sm:$0xff]
      %v1895 = vld [vmem:[#allocation2 + $0x151] sm:$0xff]
      %v1896 = vld [vmem:[#allocation2 + $0x159] sm:$0xff]
      %v1897 = vld [vmem:[#allocation2 + $0x169] sm:$0xff]
      %v1898 = vld [vmem:[#allocation2 + $0x171] sm:$0xff]
      %v1899 = vld [vmem:[#allocation2 + $0x181] sm:$0xff]
      %v1900 = vld [vmem:[#allocation2 + $0x189] sm:$0xff]
      %v1901 = vld [vmem:[#allocation2 + $0x199] sm:$0xff]
      %v1902 = vld [vmem:[#allocation2 + $0x1a1] sm:$0xff]
      %v1903 = vld [vmem:[#allocation2 + $0x2] sm:$0xff]
      %v1904 = vld [vmem:[#allocation2 + $0xa] sm:$0xff]
      %v1905 = vld [vmem:[#allocation2 + $0x1a] sm:$0xff]
      %v1906 = vld [vmem:[#allocation2 + $0x22] sm:$0xff]
      %v1907 = vld [vmem:[#allocation2 + $0x32] sm:$0xff]
      %v1908 = vld [vmem:[#allocation2 + $0x3a] sm:$0xff]
      %v1909 = vld [vmem:[#allocation2 + $0x4a] sm:$0xff]
      %v1910 = vld [vmem:[#allocation2 + $0x52] sm:$0xff]
      %v1911 = vld [vmem:[#allocation2 + $0x62] sm:$0xff]
      %v1912 = vld [vmem:[#allocation2 + $0x6a] sm:$0xff]
      %v1913 = vld [vmem:[#allocation2 + $0x7a] sm:$0xff]
      %v1914 = vld [vmem:[#allocation2 + $0x82] sm:$0xff]
      %v1915 = vld [vmem:[#allocation2 + $0x92] sm:$0xff]
      %v1916 = vld [vmem:[#allocation2 + $0x9a] sm:$0xff]
      %v1917 = vld [vmem:[#allocation2 + $0xaa] sm:$0xff]
      %v1918 = vld [vmem:[#allocation2 + $0xb2] sm:$0xff]
      %v1919 = vld [vmem:[#allocation2 + $0xc2] sm:$0xff]
      %v1920 = vld [vmem:[#allocation2 + $0xca] sm:$0xff]
      %v1921 = vld [vmem:[#allocation2 + $0xda] sm:$0xff]
      %v1922 = vld [vmem:[#allocation2 + $0xe2] sm:$0xff]
      %v1923 = vld [vmem:[#allocation2 + $0xf2] sm:$0xff]
      %v1924 = vld [vmem:[#allocation2 + $0xfa] sm:$0xff]
      %v1925 = vld [vmem:[#allocation2 + $0x10a] sm:$0xff]
      %v1926 = vld [vmem:[#allocation2 + $0x112] sm:$0xff]
      %v1927 = vld [vmem:[#allocation2 + $0x122] sm:$0xff]
      %v1928 = vld [vmem:[#allocation2 + $0x12a] sm:$0xff]
      %v1929 = vld [vmem:[#allocation2 + $0x13a] sm:$0xff]
      %v1930 = vld [vmem:[#allocation2 + $0x142] sm:$0xff]
      %v1931 = vld [vmem:[#allocation2 + $0x152] sm:$0xff]
      %v1932 = vld [vmem:[#allocation2 + $0x15a] sm:$0xff]
      %v1933 = vld [vmem:[#allocation2 + $0x16a] sm:$0xff]
      %v1934 = vld [vmem:[#allocation2 + $0x172] sm:$0xff]
      %v1935 = vld [vmem:[#allocation2 + $0x182] sm:$0xff]
      %v1936 = vld [vmem:[#allocation2 + $0x18a] sm:$0xff]
      %v1937 = vld [vmem:[#allocation2 + $0x19a] sm:$0xff]
      %v1938 = vld [vmem:[#allocation2 + $0x1a2] sm:$0xff]
      %1975 = vrot.lane.b32.xlu0 %v1867, 4
      %v1976 = vpop.permute.xlu0 %1975
      %1977 = vrot.lane.b32.xlu0 %v1868, 4
      %v1978 = vpop.permute.xlu0 %1977
      %1979 = vrot.lane.b32.xlu0 %v1869, 4
      %v1980 = vpop.permute.xlu0 %1979
      %1981 = vrot.lane.b32.xlu0 %v1870, 4
      %v1982 = vpop.permute.xlu0 %1981
      %1983 = vrot.lane.b32.xlu0 %v1871, 4
      %v1984 = vpop.permute.xlu0 %1983
      %1985 = vrot.lane.b32.xlu0 %v1872, 4
      %v1986 = vpop.permute.xlu0 %1985
      %1987 = vrot.lane.b32.xlu0 %v1873, 4
      %v1988 = vpop.permute.xlu0 %1987
      %1989 = vrot.lane.b32.xlu0 %v1874, 4
      %v1990 = vpop.permute.xlu0 %1989
      %1991 = vrot.lane.b32.xlu0 %v1875, 4
      %v1992 = vpop.permute.xlu0 %1991
      %1993 = vrot.lane.b32.xlu0 %v1876, 4
      %v1994 = vpop.permute.xlu0 %1993
      %1995 = vrot.lane.b32.xlu0 %v1877, 4
      %v1996 = vpop.permute.xlu0 %1995
      %1997 = vrot.lane.b32.xlu0 %v1878, 4
      %v1998 = vpop.permute.xlu0 %1997
      %1999 = vrot.lane.b32.xlu0 %v1879, 4
      %v2000 = vpop.permute.xlu0 %1999
      %2001 = vrot.lane.b32.xlu0 %v1880, 4
      %v2002 = vpop.permute.xlu0 %2001
      %2003 = vrot.lane.b32.xlu0 %v1881, 4
      %v2004 = vpop.permute.xlu0 %2003
      %2005 = vrot.lane.b32.xlu0 %v1882, 4
      %v2006 = vpop.permute.xlu0 %2005
      %2007 = vrot.lane.b32.xlu0 %v1883, 4
      %v2008 = vpop.permute.xlu0 %2007
      %2009 = vrot.lane.b32.xlu0 %v1884, 4
      %v2010 = vpop.permute.xlu0 %2009
      %2011 = vrot.lane.b32.xlu0 %v1885, 4
      %v2012 = vpop.permute.xlu0 %2011
      %2013 = vrot.lane.b32.xlu0 %v1886, 4
      %v2014 = vpop.permute.xlu0 %2013
      %2015 = vrot.lane.b32.xlu0 %v1887, 4
      %v2016 = vpop.permute.xlu0 %2015
      %2017 = vrot.lane.b32.xlu0 %v1888, 4
      %v2018 = vpop.permute.xlu0 %2017
      %2019 = vrot.lane.b32.xlu0 %v1889, 4
      %v2020 = vpop.permute.xlu0 %2019
      %2021 = vrot.lane.b32.xlu0 %v1890, 4
      %v2022 = vpop.permute.xlu0 %2021
      %2023 = vrot.lane.b32.xlu0 %v1891, 4
      %v2024 = vpop.permute.xlu0 %2023
      %2025 = vrot.lane.b32.xlu0 %v1892, 4
      %v2026 = vpop.permute.xlu0 %2025
      %2027 = vrot.lane.b32.xlu0 %v1893, 4
      %v2028 = vpop.permute.xlu0 %2027
      %2029 = vrot.lane.b32.xlu0 %v1894, 4
      %v2030 = vpop.permute.xlu0 %2029
      %2031 = vrot.lane.b32.xlu0 %v1895, 4
      %v2032 = vpop.permute.xlu0 %2031
      %2033 = vrot.lane.b32.xlu0 %v1896, 4
      %v2034 = vpop.permute.xlu0 %2033
      %2035 = vrot.lane.b32.xlu0 %v1897, 4
      %v2036 = vpop.permute.xlu0 %2035
      %2037 = vrot.lane.b32.xlu0 %v1898, 4
      %v2038 = vpop.permute.xlu0 %2037
      %2039 = vrot.lane.b32.xlu0 %v1899, 4
      %v2040 = vpop.permute.xlu0 %2039
      %2041 = vrot.lane.b32.xlu0 %v1900, 4
      %v2042 = vpop.permute.xlu0 %2041
      %2043 = vrot.lane.b32.xlu0 %v1901, 4
      %v2044 = vpop.permute.xlu0 %2043
      %2045 = vrot.lane.b32.xlu0 %v1902, 4
      %v2046 = vpop.permute.xlu0 %2045
      %2119 = vrot.lane.b32.xlu0 %v1903, 8
      %v2120 = vpop.permute.xlu0 %2119
      %2121 = vrot.lane.b32.xlu0 %v1904, 8
      %v2122 = vpop.permute.xlu0 %2121
      %2123 = vrot.lane.b32.xlu0 %v1905, 8
      %v2124 = vpop.permute.xlu0 %2123
      %2125 = vrot.lane.b32.xlu0 %v1906, 8
      %v2126 = vpop.permute.xlu0 %2125
      %2127 = vrot.lane.b32.xlu0 %v1907, 8
      %v2128 = vpop.permute.xlu0 %2127
      %2129 = vrot.lane.b32.xlu0 %v1908, 8
      %v2130 = vpop.permute.xlu0 %2129
      %2131 = vrot.lane.b32.xlu0 %v1909, 8
      %v2132 = vpop.permute.xlu0 %2131
      %2133 = vrot.lane.b32.xlu0 %v1910, 8
      %v2134 = vpop.permute.xlu0 %2133
      %2135 = vrot.lane.b32.xlu0 %v1911, 8
      %v2136 = vpop.permute.xlu0 %2135
      %2137 = vrot.lane.b32.xlu0 %v1912, 8
      %v2138 = vpop.permute.xlu0 %2137
      %2139 = vrot.lane.b32.xlu0 %v1913, 8
      %v2140 = vpop.permute.xlu0 %2139
      %2141 = vrot.lane.b32.xlu0 %v1914, 8
      %v2142 = vpop.permute.xlu0 %2141
      %2143 = vrot.lane.b32.xlu0 %v1915, 8
      %v2144 = vpop.permute.xlu0 %2143
      %2145 = vrot.lane.b32.xlu0 %v1916, 8
      %v2146 = vpop.permute.xlu0 %2145
      %2147 = vrot.lane.b32.xlu0 %v1917, 8
      %v2148 = vpop.permute.xlu0 %2147
      %2149 = vrot.lane.b32.xlu0 %v1918, 8
      %v2150 = vpop.permute.xlu0 %2149
      %2151 = vrot.lane.b32.xlu0 %v1919, 8
      %v2152 = vpop.permute.xlu0 %2151
      %2153 = vrot.lane.b32.xlu0 %v1920, 8
      %v2154 = vpop.permute.xlu0 %2153
      %2155 = vrot.lane.b32.xlu0 %v1921, 8
      %v2156 = vpop.permute.xlu0 %2155
      %2157 = vrot.lane.b32.xlu0 %v1922, 8
      %v2158 = vpop.permute.xlu0 %2157
      %2159 = vrot.lane.b32.xlu0 %v1923, 8
      %v2160 = vpop.permute.xlu0 %2159
      %2161 = vrot.lane.b32.xlu0 %v1924, 8
      %v2162 = vpop.permute.xlu0 %2161
      %2163 = vrot.lane.b32.xlu0 %v1925, 8
      %v2164 = vpop.permute.xlu0 %2163
      %2165 = vrot.lane.b32.xlu0 %v1926, 8
      %v2166 = vpop.permute.xlu0 %2165
      %2167 = vrot.lane.b32.xlu0 %v1927, 8
      %v2168 = vpop.permute.xlu0 %2167
      %2169 = vrot.lane.b32.xlu0 %v1928, 8
      %v2170 = vpop.permute.xlu0 %2169
      %2171 = vrot.lane.b32.xlu0 %v1929, 8
      %v2172 = vpop.permute.xlu0 %2171
      %2173 = vrot.lane.b32.xlu0 %v1930, 8
      %v2174 = vpop.permute.xlu0 %2173
      %2175 = vrot.lane.b32.xlu0 %v1931, 8
      %v2176 = vpop.permute.xlu0 %2175
      %2177 = vrot.lane.b32.xlu0 %v1932, 8
      %v2178 = vpop.permute.xlu0 %2177
      %2179 = vrot.lane.b32.xlu0 %v1933, 8
      %v2180 = vpop.permute.xlu0 %2179
      %2181 = vrot.lane.b32.xlu0 %v1934, 8
      %v2182 = vpop.permute.xlu0 %2181
      %2183 = vrot.lane.b32.xlu0 %v1935, 8
      %v2184 = vpop.permute.xlu0 %2183
      %2185 = vrot.lane.b32.xlu0 %v1936, 8
      %v2186 = vpop.permute.xlu0 %2185
      %2187 = vrot.lane.b32.xlu0 %v1937, 8
      %v2188 = vpop.permute.xlu0 %2187
      %2189 = vrot.lane.b32.xlu0 %v1938, 8
      %v2190 = vpop.permute.xlu0 %2189
      %v2227 = vsel %vm311, %v1831, %v1976
      %v2228 = vsel %vm311, %v1832, %v1978
      %v2229 = vsel %vm311, %v1833, %v1980
      %v2230 = vsel %vm311, %v1834, %v1982
      %v2231 = vsel %vm311, %v1835, %v1984
      %v2232 = vsel %vm311, %v1836, %v1986
      %v2233 = vsel %vm311, %v1837, %v1988
      %v2234 = vsel %vm311, %v1838, %v1990
      %v2235 = vsel %vm311, %v1839, %v1992
      %v2236 = vsel %vm311, %v1840, %v1994
      %v2237 = vsel %vm311, %v1841, %v1996
      %v2238 = vsel %vm311, %v1842, %v1998
      %v2239 = vsel %vm311, %v1843, %v2000
      %v2240 = vsel %vm311, %v1844, %v2002
      %v2241 = vsel %vm311, %v1845, %v2004
      %v2242 = vsel %vm311, %v1846, %v2006
      %v2243 = vsel %vm311, %v1847, %v2008
      %v2244 = vsel %vm311, %v1848, %v2010
      %v2245 = vsel %vm311, %v1849, %v2012
      %v2246 = vsel %vm311, %v1850, %v2014
      %v2247 = vsel %vm311, %v1851, %v2016
      %v2248 = vsel %vm311, %v1852, %v2018
      %v2249 = vsel %vm311, %v1853, %v2020
      %v2250 = vsel %vm311, %v1854, %v2022
      %v2251 = vsel %vm311, %v1855, %v2024
      %v2252 = vsel %vm311, %v1856, %v2026
      %v2253 = vsel %vm311, %v1857, %v2028
      %v2254 = vsel %vm311, %v1858, %v2030
      %v2255 = vsel %vm311, %v1859, %v2032
      %v2256 = vsel %vm311, %v1860, %v2034
      %v2257 = vsel %vm311, %v1861, %v2036
      %v2258 = vsel %vm311, %v1862, %v2038
      %v2259 = vsel %vm311, %v1863, %v2040
      %v2260 = vsel %vm311, %v1864, %v2042
      %v2261 = vsel %vm311, %v1865, %v2044
      %v2262 = vsel %vm311, %v1866, %v2046
      %v2263 = vsel %vm818, %v2227, %v2120
      %v2264 = vsel %vm818, %v2228, %v2122
      %v2265 = vsel %vm818, %v2229, %v2124
      %v2266 = vsel %vm818, %v2230, %v2126
      %v2267 = vsel %vm818, %v2231, %v2128
      %v2268 = vsel %vm818, %v2232, %v2130
      %v2269 = vsel %vm818, %v2233, %v2132
      %v2270 = vsel %vm818, %v2234, %v2134
      %v2271 = vsel %vm818, %v2235, %v2136
      %v2272 = vsel %vm818, %v2236, %v2138
      %v2273 = vsel %vm818, %v2237, %v2140
      %v2274 = vsel %vm818, %v2238, %v2142
      %v2275 = vsel %vm818, %v2239, %v2144
      %v2276 = vsel %vm818, %v2240, %v2146
      %v2277 = vsel %vm818, %v2241, %v2148
      %v2278 = vsel %vm818, %v2242, %v2150
      %v2279 = vsel %vm818, %v2243, %v2152
      %v2280 = vsel %vm818, %v2244, %v2154
      %v2281 = vsel %vm818, %v2245, %v2156
      %v2282 = vsel %vm818, %v2246, %v2158
      %v2283 = vsel %vm818, %v2247, %v2160
      %v2284 = vsel %vm818, %v2248, %v2162
      %v2285 = vsel %vm818, %v2249, %v2164
      %v2286 = vsel %vm818, %v2250, %v2166
      %v2287 = vsel %vm818, %v2251, %v2168
      %v2288 = vsel %vm818, %v2252, %v2170
      %v2289 = vsel %vm818, %v2253, %v2172
      %v2290 = vsel %vm818, %v2254, %v2174
      %v2291 = vsel %vm818, %v2255, %v2176
      %v2292 = vsel %vm818, %v2256, %v2178
      %v2293 = vsel %vm818, %v2257, %v2180
      %v2294 = vsel %vm818, %v2258, %v2182
      %v2295 = vsel %vm818, %v2259, %v2184
      %v2296 = vsel %vm818, %v2260, %v2186
      %v2297 = vsel %vm818, %v2261, %v2188
      %v2298 = vsel %vm818, %v2262, %v2190
      %v2299 = vld [vmem:[%s2] sm:$0xff]
      %v2300 = vld [vmem:[%s2 + $0x8] sm:$0xf]
      %s2301 = scalar_lea.vmem %s2, 16
      %v2302 = vld [vmem:[%s2301] sm:$0xff]
      %v2303 = vld [vmem:[%s2301 + $0x8] sm:$0xf]
      %v2305 = vsel %vm860, %v2265, 0
      %v2308 = vsel %vm860, %v2266, 0
      %v2311 = vsel %vm860, %v2267, 0
      %v2314 = vsel %vm860, %v2268, 0
      %v2317 = vsel %vm860, %v2269, 0
      %v2320 = vsel %vm860, %v2270, 0
      %v2323 = vsel %vm860, %v2271, 0
      %v2326 = vsel %vm860, %v2272, 0
      %v2329 = vsel %vm860, %v2273, 0
      %v2332 = vsel %vm860, %v2274, 0
      %v2335 = vsel %vm860, %v2275, 0
      %v2338 = vsel %vm860, %v2276, 0
      %v2341 = vsel %vm860, %v2277, 0
      %v2344 = vsel %vm860, %v2278, 0
      %v2347 = vsel %vm860, %v2279, 0
      %v2350 = vsel %vm860, %v2280, 0
      %v2353 = vsel %vm860, %v2281, 0
      %v2356 = vsel %vm860, %v2282, 0
      %v2359 = vsel %vm860, %v2283, 0
      %v2362 = vsel %vm860, %v2284, 0
      %v2365 = vsel %vm860, %v2285, 0
      %v2368 = vsel %vm860, %v2286, 0
      %v2371 = vsel %vm860, %v2287, 0
      %v2374 = vsel %vm860, %v2288, 0
      %v2377 = vsel %vm860, %v2289, 0
      %v2380 = vsel %vm860, %v2290, 0
      %v2383 = vsel %vm860, %v2291, 0
      %v2386 = vsel %vm860, %v2292, 0
      %v2389 = vsel %vm860, %v2293, 0
      %v2392 = vsel %vm860, %v2294, 0
      %v2395 = vsel %vm860, %v2295, 0
      %v2398 = vsel %vm860, %v2296, 0
      %v2401 = vsel %vm957, %v2303, 0
      %2403 = vmatprep.subr.mxu0 0.0
      %2404 = vmatpush1.msra.mxu0 0.0
      %2405 = vmatprep.subr.mxu0 0.0
      %2406 = vmatpush1.msra.mxu0 0.0
      %2407 = vmatprep.subr.mxu0 0.0
      %2408 = vmatpush1.msra.mxu0 0.0
      %2409 = vmatprep.subr.mxu0 0.0
      %2410 = vmatpush1.msra.mxu0 0.0
      %2411 = vmatprep.subr.mxu0 0.0
      %2412 = vmatpush1.msra.mxu0 0.0
      %2413 = vmatprep.subr.mxu0 0.0
      %2414 = vmatpush1.msra.mxu0 0.0
      %2415 = vmatprep.subr.mxu0 0.0
      %2416 = vmatpush1.msra.mxu0 0.0
      %2417 = vmatprep.subr.mxu0 0.0
      %2418 = vmatpush1.msra.mxu0 0.0
      %2419 = vmatprep.subr.mxu0 0.0
      %2420 = vmatpush1.msra.mxu0 0.0
      %2421 = vmatprep.subr.mxu0 0.0
      %2422 = vmatpush1.msra.mxu0 0.0
      %2423 = vmatprep.subr.mxu0 0.0
      %2424 = vmatpush1.msra.mxu0 0.0
      %2425 = vmatprep.subr.mxu0 0.0
      %2426 = vmatpush1.msra.mxu0 0.0
      %2427 = vmatprep.subr.mxu0 0.0
      %2428 = vmatpush1.msra.mxu0 0.0
      %2429 = vmatprep.subr.mxu0 0.0
      %2430 = vmatpush1.msra.mxu0 0.0
      %2431 = vmatprep.subr.mxu0 0.0
      %2432 = vmatpush1.msra.mxu0 %v2401
      %2433 = vmatprep.subr.mxu0 0.0
      %2434 = vmatpush1.msra.mxu0 %v2302
      %2435 = vmatprep.subr.mxu0 0.0
      %2436 = vmatpush2.msra.mxu0 0.0
      %2437 = vmatprep.subr.mxu0 0.0
      %2438 = vmatpush2.msra.mxu0 0.0
      %2439 = vmatprep.subr.mxu0 0.0
      %2440 = vmatpush2.msra.mxu0 0.0
      %2441 = vmatprep.subr.mxu0 0.0
      %2442 = vmatpush2.msra.mxu0 0.0
      %2443 = vmatprep.subr.mxu0 0.0
      %2444 = vmatpush2.msra.mxu0 0.0
      %2445 = vmatprep.subr.mxu0 0.0
      %2446 = vmatpush2.msra.mxu0 0.0
      %2447 = vmatprep.subr.mxu0 0.0
      %2448 = vmatpush2.msra.mxu0 0.0
      %2449 = vmatprep.subr.mxu0 0.0
      %2450 = vmatpush2.msra.mxu0 0.0
      %2451 = vmatprep.subr.mxu0 0.0
      %2452 = vmatpush2.msra.mxu0 0.0
      %2453 = vmatprep.subr.mxu0 0.0
      %2454 = vmatpush2.msra.mxu0 0.0
      %2455 = vmatprep.subr.mxu0 0.0
      %2456 = vmatpush2.msra.mxu0 0.0
      %2457 = vmatprep.subr.mxu0 0.0
      %2458 = vmatpush2.msra.mxu0 0.0
      %2459 = vmatprep.subr.mxu0 0.0
      %2460 = vmatpush2.msra.mxu0 0.0
      %2461 = vmatprep.subr.mxu0 0.0
      %2462 = vmatpush2.msra.mxu0 0.0
      %2463 = vmatprep.subr.mxu0 0.0
      %2464 = vmatpush2.msra.mxu0 0.0
      %2465 = vmatprep.subr.mxu0 0.0
      %2466 = vmatpush2.msra.mxu0 0.0
      %2467 = vmatprep.mubr.f32.mxu0 0.0
      %2468 = vmatmul.mubr.f32.gmra.mxu0 %v2305
      %v2469 = vpop.f32.mrf.mxu0
      %v2470 = vadd.f32 0.0, %v2469
      %v2471 = vpop.f32.mrf.mxu0
      %2472 = vmatprep.mubr.f32.mxu0 0.0
      %2473 = vmatmul.mubr.f32.gmra.mxu0 %v2308
      %v2474 = vpop.f32.mrf.mxu0
      %v2475 = vadd.f32 0.0, %v2474
      %v2476 = vpop.f32.mrf.mxu0
      %2477 = vmatprep.mubr.f32.mxu0 0.0
      %2478 = vmatmul.mubr.f32.gmra.mxu0 %v2311
      %v2479 = vpop.f32.mrf.mxu0
      %v2480 = vadd.f32 0.0, %v2479
      %v2481 = vpop.f32.mrf.mxu0
      %2482 = vmatprep.mubr.f32.mxu0 0.0
      %2483 = vmatmul.mubr.f32.gmra.mxu0 %v2314
      %v2484 = vpop.f32.mrf.mxu0
      %v2485 = vadd.f32 0.0, %v2484
      %v2486 = vpop.f32.mrf.mxu0
      %2487 = vmatprep.mubr.f32.mxu0 0.0
      %2488 = vmatmul.mubr.f32.gmra.mxu0 %v2317
      %v2489 = vpop.f32.mrf.mxu0
      %v2490 = vadd.f32 0.0, %v2489
      %v2491 = vpop.f32.mrf.mxu0
      %2492 = vmatprep.mubr.f32.mxu0 0.0
      %2493 = vmatmul.mubr.f32.gmra.mxu0 %v2320
      %v2494 = vpop.f32.mrf.mxu0
      %v2495 = vadd.f32 0.0, %v2494
      %v2496 = vpop.f32.mrf.mxu0
      %2497 = vmatprep.mubr.f32.mxu0 0.0
      %2498 = vmatmul.mubr.f32.gmra.mxu0 %v2323
      %v2499 = vpop.f32.mrf.mxu0
      %v2500 = vadd.f32 0.0, %v2499
      %v2501 = vpop.f32.mrf.mxu0
      %2502 = vmatprep.mubr.f32.mxu0 0.0
      %2503 = vmatmul.mubr.f32.gmra.mxu0 %v2326
      %v2504 = vpop.f32.mrf.mxu0
      %v2505 = vadd.f32 0.0, %v2504
      %v2506 = vpop.f32.mrf.mxu0
      %2507 = vmatprep.mubr.f32.mxu0 0.0
      %2508 = vmatmul.mubr.f32.gmra.mxu0 %v2329
      %v2509 = vpop.f32.mrf.mxu0
      %v2510 = vadd.f32 0.0, %v2509
      %v2511 = vpop.f32.mrf.mxu0
      %2512 = vmatprep.mubr.f32.mxu0 0.0
      %2513 = vmatmul.mubr.f32.gmra.mxu0 %v2332
      %v2514 = vpop.f32.mrf.mxu0
      %v2515 = vadd.f32 0.0, %v2514
      %v2516 = vpop.f32.mrf.mxu0
      %2517 = vmatprep.mubr.f32.mxu0 0.0
      %2518 = vmatmul.mubr.f32.gmra.mxu0 %v2335
      %v2519 = vpop.f32.mrf.mxu0
      %v2520 = vadd.f32 0.0, %v2519
      %v2521 = vpop.f32.mrf.mxu0
      %2522 = vmatprep.mubr.f32.mxu0 0.0
      %2523 = vmatmul.mubr.f32.gmra.mxu0 %v2338
      %v2524 = vpop.f32.mrf.mxu0
      %v2525 = vadd.f32 0.0, %v2524
      %v2526 = vpop.f32.mrf.mxu0
      %2527 = vmatprep.mubr.f32.mxu0 0.0
      %2528 = vmatmul.mubr.f32.gmra.mxu0 %v2341
      %v2529 = vpop.f32.mrf.mxu0
      %v2530 = vadd.f32 0.0, %v2529
      %v2531 = vpop.f32.mrf.mxu0
      %2532 = vmatprep.mubr.f32.mxu0 0.0
      %2533 = vmatmul.mubr.f32.gmra.mxu0 %v2344
      %v2534 = vpop.f32.mrf.mxu0
      %v2535 = vadd.f32 0.0, %v2534
      %v2536 = vpop.f32.mrf.mxu0
      %2537 = vmatprep.mubr.f32.mxu0 0.0
      %2538 = vmatmul.mubr.f32.gmra.mxu0 %v2347
      %v2539 = vpop.f32.mrf.mxu0
      %v2540 = vadd.f32 0.0, %v2539
      %v2541 = vpop.f32.mrf.mxu0
      %2542 = vmatprep.mubr.f32.mxu0 0.0
      %2543 = vmatmul.mubr.f32.gmra.mxu0 %v2350
      %v2544 = vpop.f32.mrf.mxu0
      %v2545 = vadd.f32 0.0, %v2544
      %v2546 = vpop.f32.mrf.mxu0
      %2547 = vmatprep.mubr.f32.mxu0 0.0
      %2548 = vmatmul.mubr.f32.gmra.mxu0 %v2353
      %v2549 = vpop.f32.mrf.mxu0
      %v2550 = vadd.f32 0.0, %v2549
      %v2551 = vpop.f32.mrf.mxu0
      %2552 = vmatprep.mubr.f32.mxu0 0.0
      %2553 = vmatmul.mubr.f32.gmra.mxu0 %v2356
      %v2554 = vpop.f32.mrf.mxu0
      %v2555 = vadd.f32 0.0, %v2554
      %v2556 = vpop.f32.mrf.mxu0
      %2557 = vmatprep.mubr.f32.mxu0 0.0
      %2558 = vmatmul.mubr.f32.gmra.mxu0 %v2359
      %v2559 = vpop.f32.mrf.mxu0
      %v2560 = vadd.f32 0.0, %v2559
      %v2561 = vpop.f32.mrf.mxu0
      %2562 = vmatprep.mubr.f32.mxu0 0.0
      %2563 = vmatmul.mubr.f32.gmra.mxu0 %v2362
      %v2564 = vpop.f32.mrf.mxu0
      %v2565 = vadd.f32 0.0, %v2564
      %v2566 = vpop.f32.mrf.mxu0
      %2567 = vmatprep.mubr.f32.mxu0 0.0
      %2568 = vmatmul.mubr.f32.gmra.mxu0 %v2365
      %v2569 = vpop.f32.mrf.mxu0
      %v2570 = vadd.f32 0.0, %v2569
      %v2571 = vpop.f32.mrf.mxu0
      %2572 = vmatprep.mubr.f32.mxu0 0.0
      %2573 = vmatmul.mubr.f32.gmra.mxu0 %v2368
      %v2574 = vpop.f32.mrf.mxu0
      %v2575 = vadd.f32 0.0, %v2574
      %v2576 = vpop.f32.mrf.mxu0
      %2577 = vmatprep.mubr.f32.mxu0 0.0
      %2578 = vmatmul.mubr.f32.gmra.mxu0 %v2371
      %v2579 = vpop.f32.mrf.mxu0
      %v2580 = vadd.f32 0.0, %v2579
      %v2581 = vpop.f32.mrf.mxu0
      %2582 = vmatprep.mubr.f32.mxu0 0.0
      %2583 = vmatmul.mubr.f32.gmra.mxu0 %v2374
      %v2584 = vpop.f32.mrf.mxu0
      %v2585 = vadd.f32 0.0, %v2584
      %v2586 = vpop.f32.mrf.mxu0
      %2587 = vmatprep.mubr.f32.mxu0 0.0
      %2588 = vmatmul.mubr.f32.gmra.mxu0 %v2377
      %v2589 = vpop.f32.mrf.mxu0
      %v2590 = vadd.f32 0.0, %v2589
      %v2591 = vpop.f32.mrf.mxu0
      %2592 = vmatprep.mubr.f32.mxu0 0.0
      %2593 = vmatmul.mubr.f32.gmra.mxu0 %v2380
      %v2594 = vpop.f32.mrf.mxu0
      %v2595 = vadd.f32 0.0, %v2594
      %v2596 = vpop.f32.mrf.mxu0
      %2597 = vmatprep.mubr.f32.mxu0 0.0
      %2598 = vmatmul.mubr.f32.gmra.mxu0 %v2383
      %v2599 = vpop.f32.mrf.mxu0
      %v2600 = vadd.f32 0.0, %v2599
      %v2601 = vpop.f32.mrf.mxu0
      %2602 = vmatprep.mubr.f32.mxu0 0.0
      %2603 = vmatmul.mubr.f32.gmra.mxu0 %v2386
      %v2604 = vpop.f32.mrf.mxu0
      %v2605 = vadd.f32 0.0, %v2604
      %v2606 = vpop.f32.mrf.mxu0
      %2607 = vmatprep.mubr.f32.mxu0 0.0
      %2608 = vmatmul.mubr.f32.gmra.mxu0 %v2389
      %v2609 = vpop.f32.mrf.mxu0
      %v2610 = vadd.f32 0.0, %v2609
      %v2611 = vpop.f32.mrf.mxu0
      %2612 = vmatprep.mubr.f32.mxu0 0.0
      %2613 = vmatmul.mubr.f32.gmra.mxu0 %v2392
      %v2614 = vpop.f32.mrf.mxu0
      %v2615 = vadd.f32 0.0, %v2614
      %v2616 = vpop.f32.mrf.mxu0
      %2617 = vmatprep.mubr.f32.mxu0 0.0
      %2618 = vmatmul.mubr.f32.gmra.mxu0 %v2395
      %v2619 = vpop.f32.mrf.mxu0
      %v2620 = vadd.f32 0.0, %v2619
      %v2621 = vpop.f32.mrf.mxu0
      %2622 = vmatprep.mubr.f32.mxu0 0.0
      %2623 = vmatmul.mubr.f32.gmra.mxu0 %v2398
      %v2624 = vpop.f32.mrf.mxu0
      %v2625 = vadd.f32 0.0, %v2624
      %v2626 = vpop.f32.mrf.mxu0
      %2627 = vdwg.mxu0
      %v2629 = vsel %vm860, %v2263, 0
      %v2632 = vsel %vm860, %v2264, 0
      %v2635 = vsel %vm957, %v2300, 0
      %2637 = vmatprep.subr.mxu0 0.0
      %2638 = vmatpush1.msra.mxu0 0.0
      %2639 = vmatprep.subr.mxu0 0.0
      %2640 = vmatpush1.msra.mxu0 0.0
      %2641 = vmatprep.subr.mxu0 0.0
      %2642 = vmatpush1.msra.mxu0 0.0
      %2643 = vmatprep.subr.mxu0 0.0
      %2644 = vmatpush1.msra.mxu0 0.0
      %2645 = vmatprep.subr.mxu0 0.0
      %2646 = vmatpush1.msra.mxu0 0.0
      %2647 = vmatprep.subr.mxu0 0.0
      %2648 = vmatpush1.msra.mxu0 0.0
      %2649 = vmatprep.subr.mxu0 0.0
      %2650 = vmatpush1.msra.mxu0 0.0
      %2651 = vmatprep.subr.mxu0 0.0
      %2652 = vmatpush1.msra.mxu0 0.0
      %2653 = vmatprep.subr.mxu0 0.0
      %2654 = vmatpush1.msra.mxu0 0.0
      %2655 = vmatprep.subr.mxu0 0.0
      %2656 = vmatpush1.msra.mxu0 0.0
      %2657 = vmatprep.subr.mxu0 0.0
      %2658 = vmatpush1.msra.mxu0 0.0
      %2659 = vmatprep.subr.mxu0 0.0
      %2660 = vmatpush1.msra.mxu0 0.0
      %2661 = vmatprep.subr.mxu0 0.0
      %2662 = vmatpush1.msra.mxu0 0.0
      %2663 = vmatprep.subr.mxu0 0.0
      %2664 = vmatpush1.msra.mxu0 0.0
      %2665 = vmatprep.subr.mxu0 0.0
      %2666 = vmatpush1.msra.mxu0 %v2635
      %2667 = vmatprep.subr.mxu0 0.0
      %2668 = vmatpush1.msra.mxu0 %v2299
      %2669 = vmatprep.subr.mxu0 0.0
      %2670 = vmatpush2.msra.mxu0 0.0
      %2671 = vmatprep.subr.mxu0 0.0
      %2672 = vmatpush2.msra.mxu0 0.0
      %2673 = vmatprep.subr.mxu0 0.0
      %2674 = vmatpush2.msra.mxu0 0.0
      %2675 = vmatprep.subr.mxu0 0.0
      %2676 = vmatpush2.msra.mxu0 0.0
      %2677 = vmatprep.subr.mxu0 0.0
      %2678 = vmatpush2.msra.mxu0 0.0
      %2679 = vmatprep.subr.mxu0 0.0
      %2680 = vmatpush2.msra.mxu0 0.0
      %2681 = vmatprep.subr.mxu0 0.0
      %2682 = vmatpush2.msra.mxu0 0.0
      %2683 = vmatprep.subr.mxu0 0.0
      %2684 = vmatpush2.msra.mxu0 0.0
      %2685 = vmatprep.subr.mxu0 0.0
      %2686 = vmatpush2.msra.mxu0 0.0
      %2687 = vmatprep.subr.mxu0 0.0
      %2688 = vmatpush2.msra.mxu0 0.0
      %2689 = vmatprep.subr.mxu0 0.0
      %2690 = vmatpush2.msra.mxu0 0.0
      %2691 = vmatprep.subr.mxu0 0.0
      %2692 = vmatpush2.msra.mxu0 0.0
      %2693 = vmatprep.subr.mxu0 0.0
      %2694 = vmatpush2.msra.mxu0 0.0
      %2695 = vmatprep.subr.mxu0 0.0
      %2696 = vmatpush2.msra.mxu0 0.0
      %2697 = vmatprep.subr.mxu0 0.0
      %2698 = vmatpush2.msra.mxu0 0.0
      %2699 = vmatprep.subr.mxu0 0.0
      %2700 = vmatpush2.msra.mxu0 0.0
      %2701 = vmatprep.mubr.f32.mxu0 0.0
      %2702 = vmatmul.mubr.f32.gmra.mxu0 %v2629
      %v2703 = vpop.f32.mrf.mxu0
      %v2704 = vadd.f32 %v2470, %v2703
      %v2705 = vpop.f32.mrf.mxu0
      %2706 = vmatprep.mubr.f32.mxu0 0.0
      %2707 = vmatmul.mubr.f32.gmra.mxu0 %v2632
      %v2708 = vpop.f32.mrf.mxu0
      %v2709 = vadd.f32 %v2475, %v2708
      %v2710 = vpop.f32.mrf.mxu0
      %2711 = vmatprep.mubr.f32.mxu0 0.0
      %2712 = vmatmul.mubr.f32.gmra.mxu0 %v2305
      %v2713 = vpop.f32.mrf.mxu0
      %v2714 = vadd.f32 %v2480, %v2713
      %v2715 = vpop.f32.mrf.mxu0
      %2716 = vmatprep.mubr.f32.mxu0 0.0
      %2717 = vmatmul.mubr.f32.gmra.mxu0 %v2308
      %v2718 = vpop.f32.mrf.mxu0
      %v2719 = vadd.f32 %v2485, %v2718
      %v2720 = vpop.f32.mrf.mxu0
      %2721 = vmatprep.mubr.f32.mxu0 0.0
      %2722 = vmatmul.mubr.f32.gmra.mxu0 %v2311
      %v2723 = vpop.f32.mrf.mxu0
      %v2724 = vadd.f32 %v2490, %v2723
      %v2725 = vpop.f32.mrf.mxu0
      %2726 = vmatprep.mubr.f32.mxu0 0.0
      %2727 = vmatmul.mubr.f32.gmra.mxu0 %v2314
      %v2728 = vpop.f32.mrf.mxu0
      %v2729 = vadd.f32 %v2495, %v2728
      %v2730 = vpop.f32.mrf.mxu0
      %2731 = vmatprep.mubr.f32.mxu0 0.0
      %2732 = vmatmul.mubr.f32.gmra.mxu0 %v2317
      %v2733 = vpop.f32.mrf.mxu0
      %v2734 = vadd.f32 %v2500, %v2733
      %v2735 = vpop.f32.mrf.mxu0
      %2736 = vmatprep.mubr.f32.mxu0 0.0
      %2737 = vmatmul.mubr.f32.gmra.mxu0 %v2320
      %v2738 = vpop.f32.mrf.mxu0
      %v2739 = vadd.f32 %v2505, %v2738
      %v2740 = vpop.f32.mrf.mxu0
      %2741 = vmatprep.mubr.f32.mxu0 0.0
      %2742 = vmatmul.mubr.f32.gmra.mxu0 %v2323
      %v2743 = vpop.f32.mrf.mxu0
      %v2744 = vadd.f32 %v2510, %v2743
      %v2745 = vpop.f32.mrf.mxu0
      %2746 = vmatprep.mubr.f32.mxu0 0.0
      %2747 = vmatmul.mubr.f32.gmra.mxu0 %v2326
      %v2748 = vpop.f32.mrf.mxu0
      %v2749 = vadd.f32 %v2515, %v2748
      %v2750 = vpop.f32.mrf.mxu0
      %2751 = vmatprep.mubr.f32.mxu0 0.0
      %2752 = vmatmul.mubr.f32.gmra.mxu0 %v2329
      %v2753 = vpop.f32.mrf.mxu0
      %v2754 = vadd.f32 %v2520, %v2753
      %v2755 = vpop.f32.mrf.mxu0
      %2756 = vmatprep.mubr.f32.mxu0 0.0
      %2757 = vmatmul.mubr.f32.gmra.mxu0 %v2332
      %v2758 = vpop.f32.mrf.mxu0
      %v2759 = vadd.f32 %v2525, %v2758
      %v2760 = vpop.f32.mrf.mxu0
      %2761 = vmatprep.mubr.f32.mxu0 0.0
      %2762 = vmatmul.mubr.f32.gmra.mxu0 %v2335
      %v2763 = vpop.f32.mrf.mxu0
      %v2764 = vadd.f32 %v2530, %v2763
      %v2765 = vpop.f32.mrf.mxu0
      %2766 = vmatprep.mubr.f32.mxu0 0.0
      %2767 = vmatmul.mubr.f32.gmra.mxu0 %v2338
      %v2768 = vpop.f32.mrf.mxu0
      %v2769 = vadd.f32 %v2535, %v2768
      %v2770 = vpop.f32.mrf.mxu0
      %2771 = vmatprep.mubr.f32.mxu0 0.0
      %2772 = vmatmul.mubr.f32.gmra.mxu0 %v2341
      %v2773 = vpop.f32.mrf.mxu0
      %v2774 = vadd.f32 %v2540, %v2773
      %v2775 = vpop.f32.mrf.mxu0
      %2776 = vmatprep.mubr.f32.mxu0 0.0
      %2777 = vmatmul.mubr.f32.gmra.mxu0 %v2344
      %v2778 = vpop.f32.mrf.mxu0
      %v2779 = vadd.f32 %v2545, %v2778
      %v2780 = vpop.f32.mrf.mxu0
      %2781 = vmatprep.mubr.f32.mxu0 0.0
      %2782 = vmatmul.mubr.f32.gmra.mxu0 %v2347
      %v2783 = vpop.f32.mrf.mxu0
      %v2784 = vadd.f32 %v2550, %v2783
      %v2785 = vpop.f32.mrf.mxu0
      %2786 = vmatprep.mubr.f32.mxu0 0.0
      %2787 = vmatmul.mubr.f32.gmra.mxu0 %v2350
      %v2788 = vpop.f32.mrf.mxu0
      %v2789 = vadd.f32 %v2555, %v2788
      %v2790 = vpop.f32.mrf.mxu0
      %2791 = vmatprep.mubr.f32.mxu0 0.0
      %2792 = vmatmul.mubr.f32.gmra.mxu0 %v2353
      %v2793 = vpop.f32.mrf.mxu0
      %v2794 = vadd.f32 %v2560, %v2793
      %v2795 = vpop.f32.mrf.mxu0
      %2796 = vmatprep.mubr.f32.mxu0 0.0
      %2797 = vmatmul.mubr.f32.gmra.mxu0 %v2356
      %v2798 = vpop.f32.mrf.mxu0
      %v2799 = vadd.f32 %v2565, %v2798
      %v2800 = vpop.f32.mrf.mxu0
      %2801 = vmatprep.mubr.f32.mxu0 0.0
      %2802 = vmatmul.mubr.f32.gmra.mxu0 %v2359
      %v2803 = vpop.f32.mrf.mxu0
      %v2804 = vadd.f32 %v2570, %v2803
      %v2805 = vpop.f32.mrf.mxu0
      %2806 = vmatprep.mubr.f32.mxu0 0.0
      %2807 = vmatmul.mubr.f32.gmra.mxu0 %v2362
      %v2808 = vpop.f32.mrf.mxu0
      %v2809 = vadd.f32 %v2575, %v2808
      %v2810 = vpop.f32.mrf.mxu0
      %2811 = vmatprep.mubr.f32.mxu0 0.0
      %2812 = vmatmul.mubr.f32.gmra.mxu0 %v2365
      %v2813 = vpop.f32.mrf.mxu0
      %v2814 = vadd.f32 %v2580, %v2813
      %v2815 = vpop.f32.mrf.mxu0
      %2816 = vmatprep.mubr.f32.mxu0 0.0
      %2817 = vmatmul.mubr.f32.gmra.mxu0 %v2368
      %v2818 = vpop.f32.mrf.mxu0
      %v2819 = vadd.f32 %v2585, %v2818
      %v2820 = vpop.f32.mrf.mxu0
      %2821 = vmatprep.mubr.f32.mxu0 0.0
      %2822 = vmatmul.mubr.f32.gmra.mxu0 %v2371
      %v2823 = vpop.f32.mrf.mxu0
      %v2824 = vadd.f32 %v2590, %v2823
      %v2825 = vpop.f32.mrf.mxu0
      %2826 = vmatprep.mubr.f32.mxu0 0.0
      %2827 = vmatmul.mubr.f32.gmra.mxu0 %v2374
      %v2828 = vpop.f32.mrf.mxu0
      %v2829 = vadd.f32 %v2595, %v2828
      %v2830 = vpop.f32.mrf.mxu0
      %2831 = vmatprep.mubr.f32.mxu0 0.0
      %2832 = vmatmul.mubr.f32.gmra.mxu0 %v2377
      %v2833 = vpop.f32.mrf.mxu0
      %v2834 = vadd.f32 %v2600, %v2833
      %v2835 = vpop.f32.mrf.mxu0
      %2836 = vmatprep.mubr.f32.mxu0 0.0
      %2837 = vmatmul.mubr.f32.gmra.mxu0 %v2380
      %v2838 = vpop.f32.mrf.mxu0
      %v2839 = vadd.f32 %v2605, %v2838
      %v2840 = vpop.f32.mrf.mxu0
      %2841 = vmatprep.mubr.f32.mxu0 0.0
      %2842 = vmatmul.mubr.f32.gmra.mxu0 %v2383
      %v2843 = vpop.f32.mrf.mxu0
      %v2844 = vadd.f32 %v2610, %v2843
      %v2845 = vpop.f32.mrf.mxu0
      %2846 = vmatprep.mubr.f32.mxu0 0.0
      %2847 = vmatmul.mubr.f32.gmra.mxu0 %v2386
      %v2848 = vpop.f32.mrf.mxu0
      %v2849 = vadd.f32 %v2615, %v2848
      %v2850 = vpop.f32.mrf.mxu0
      %2851 = vmatprep.mubr.f32.mxu0 0.0
      %2852 = vmatmul.mubr.f32.gmra.mxu0 %v2389
      %v2853 = vpop.f32.mrf.mxu0
      %v2854 = vadd.f32 %v2620, %v2853
      %v2855 = vpop.f32.mrf.mxu0
      %2856 = vmatprep.mubr.f32.mxu0 0.0
      %2857 = vmatmul.mubr.f32.gmra.mxu0 %v2392
      %v2858 = vpop.f32.mrf.mxu0
      %v2859 = vadd.f32 %v2625, %v2858
      %v2860 = vpop.f32.mrf.mxu0
      %2861 = vdwg.mxu0
      %s2862 = scalar_lea.vmem %s2, 32
      %v2863 = vld [vmem:[%s2862] sm:$0xff]
      %v2864 = vld [vmem:[%s2862 + $0x8] sm:$0xf]
      %v2866 = vsel %vm860, %v2297, 0
      %v2869 = vsel %vm860, %v2298, 0
      %v2872 = vsel %vm957, %v2864, 0
      %2874 = vmatprep.subr.mxu0 0.0
      %2875 = vmatpush1.msra.mxu0 0.0
      %2876 = vmatprep.subr.mxu0 0.0
      %2877 = vmatpush1.msra.mxu0 0.0
      %2878 = vmatprep.subr.mxu0 0.0
      %2879 = vmatpush1.msra.mxu0 0.0
      %2880 = vmatprep.subr.mxu0 0.0
      %2881 = vmatpush1.msra.mxu0 0.0
      %2882 = vmatprep.subr.mxu0 0.0
      %2883 = vmatpush1.msra.mxu0 0.0
      %2884 = vmatprep.subr.mxu0 0.0
      %2885 = vmatpush1.msra.mxu0 0.0
      %2886 = vmatprep.subr.mxu0 0.0
      %2887 = vmatpush1.msra.mxu0 0.0
      %2888 = vmatprep.subr.mxu0 0.0
      %2889 = vmatpush1.msra.mxu0 0.0
      %2890 = vmatprep.subr.mxu0 0.0
      %2891 = vmatpush1.msra.mxu0 0.0
      %2892 = vmatprep.subr.mxu0 0.0
      %2893 = vmatpush1.msra.mxu0 0.0
      %2894 = vmatprep.subr.mxu0 0.0
      %2895 = vmatpush1.msra.mxu0 0.0
      %2896 = vmatprep.subr.mxu0 0.0
      %2897 = vmatpush1.msra.mxu0 0.0
      %2898 = vmatprep.subr.mxu0 0.0
      %2899 = vmatpush1.msra.mxu0 0.0
      %2900 = vmatprep.subr.mxu0 0.0
      %2901 = vmatpush1.msra.mxu0 0.0
      %2902 = vmatprep.subr.mxu0 0.0
      %2903 = vmatpush1.msra.mxu0 %v2872
      %2904 = vmatprep.subr.mxu0 0.0
      %2905 = vmatpush1.msra.mxu0 %v2863
      %2906 = vmatprep.subr.mxu0 0.0
      %2907 = vmatpush2.msra.mxu0 0.0
      %2908 = vmatprep.subr.mxu0 0.0
      %2909 = vmatpush2.msra.mxu0 0.0
      %2910 = vmatprep.subr.mxu0 0.0
      %2911 = vmatpush2.msra.mxu0 0.0
      %2912 = vmatprep.subr.mxu0 0.0
      %2913 = vmatpush2.msra.mxu0 0.0
      %2914 = vmatprep.subr.mxu0 0.0
      %2915 = vmatpush2.msra.mxu0 0.0
      %2916 = vmatprep.subr.mxu0 0.0
      %2917 = vmatpush2.msra.mxu0 0.0
      %2918 = vmatprep.subr.mxu0 0.0
      %2919 = vmatpush2.msra.mxu0 0.0
      %2920 = vmatprep.subr.mxu0 0.0
      %2921 = vmatpush2.msra.mxu0 0.0
      %2922 = vmatprep.subr.mxu0 0.0
      %2923 = vmatpush2.msra.mxu0 0.0
      %2924 = vmatprep.subr.mxu0 0.0
      %2925 = vmatpush2.msra.mxu0 0.0
      %2926 = vmatprep.subr.mxu0 0.0
      %2927 = vmatpush2.msra.mxu0 0.0
      %2928 = vmatprep.subr.mxu0 0.0
      %2929 = vmatpush2.msra.mxu0 0.0
      %2930 = vmatprep.subr.mxu0 0.0
      %2931 = vmatpush2.msra.mxu0 0.0
      %2932 = vmatprep.subr.mxu0 0.0
      %2933 = vmatpush2.msra.mxu0 0.0
      %2934 = vmatprep.subr.mxu0 0.0
      %2935 = vmatpush2.msra.mxu0 0.0
      %2936 = vmatprep.subr.mxu0 0.0
      %2937 = vmatpush2.msra.mxu0 0.0
      %2938 = vmatprep.mubr.f32.mxu0 0.0
      %2939 = vmatmul.mubr.f32.gmra.mxu0 %v2311
      %v2940 = vpop.f32.mrf.mxu0
      %v2941 = vadd.f32 0.0, %v2940
      %v2942 = vpop.f32.mrf.mxu0
      %2943 = vmatprep.mubr.f32.mxu0 0.0
      %2944 = vmatmul.mubr.f32.gmra.mxu0 %v2314
      %v2945 = vpop.f32.mrf.mxu0
      %v2946 = vadd.f32 0.0, %v2945
      %v2947 = vpop.f32.mrf.mxu0
      %2948 = vmatprep.mubr.f32.mxu0 0.0
      %2949 = vmatmul.mubr.f32.gmra.mxu0 %v2317
      %v2950 = vpop.f32.mrf.mxu0
      %v2951 = vadd.f32 0.0, %v2950
      %v2952 = vpop.f32.mrf.mxu0
      %2953 = vmatprep.mubr.f32.mxu0 0.0
      %2954 = vmatmul.mubr.f32.gmra.mxu0 %v2320
      %v2955 = vpop.f32.mrf.mxu0
      %v2956 = vadd.f32 0.0, %v2955
      %v2957 = vpop.f32.mrf.mxu0
      %2958 = vmatprep.mubr.f32.mxu0 0.0
      %2959 = vmatmul.mubr.f32.gmra.mxu0 %v2323
      %v2960 = vpop.f32.mrf.mxu0
      %v2961 = vadd.f32 0.0, %v2960
      %v2962 = vpop.f32.mrf.mxu0
      %2963 = vmatprep.mubr.f32.mxu0 0.0
      %2964 = vmatmul.mubr.f32.gmra.mxu0 %v2326
      %v2965 = vpop.f32.mrf.mxu0
      %v2966 = vadd.f32 0.0, %v2965
      %v2967 = vpop.f32.mrf.mxu0
      %2968 = vmatprep.mubr.f32.mxu0 0.0
      %2969 = vmatmul.mubr.f32.gmra.mxu0 %v2329
      %v2970 = vpop.f32.mrf.mxu0
      %v2971 = vadd.f32 0.0, %v2970
      %v2972 = vpop.f32.mrf.mxu0
      %2973 = vmatprep.mubr.f32.mxu0 0.0
      %2974 = vmatmul.mubr.f32.gmra.mxu0 %v2332
      %v2975 = vpop.f32.mrf.mxu0
      %v2976 = vadd.f32 0.0, %v2975
      %v2977 = vpop.f32.mrf.mxu0
      %2978 = vmatprep.mubr.f32.mxu0 0.0
      %2979 = vmatmul.mubr.f32.gmra.mxu0 %v2335
      %v2980 = vpop.f32.mrf.mxu0
      %v2981 = vadd.f32 0.0, %v2980
      %v2982 = vpop.f32.mrf.mxu0
      %2983 = vmatprep.mubr.f32.mxu0 0.0
      %2984 = vmatmul.mubr.f32.gmra.mxu0 %v2338
      %v2985 = vpop.f32.mrf.mxu0
      %v2986 = vadd.f32 0.0, %v2985
      %v2987 = vpop.f32.mrf.mxu0
      %2988 = vmatprep.mubr.f32.mxu0 0.0
      %2989 = vmatmul.mubr.f32.gmra.mxu0 %v2341
      %v2990 = vpop.f32.mrf.mxu0
      %v2991 = vadd.f32 0.0, %v2990
      %v2992 = vpop.f32.mrf.mxu0
      %2993 = vmatprep.mubr.f32.mxu0 0.0
      %2994 = vmatmul.mubr.f32.gmra.mxu0 %v2344
      %v2995 = vpop.f32.mrf.mxu0
      %v2996 = vadd.f32 0.0, %v2995
      %v2997 = vpop.f32.mrf.mxu0
      %2998 = vmatprep.mubr.f32.mxu0 0.0
      %2999 = vmatmul.mubr.f32.gmra.mxu0 %v2347
      %v3000 = vpop.f32.mrf.mxu0
      %v3001 = vadd.f32 0.0, %v3000
      %v3002 = vpop.f32.mrf.mxu0
      %3003 = vmatprep.mubr.f32.mxu0 0.0
      %3004 = vmatmul.mubr.f32.gmra.mxu0 %v2350
      %v3005 = vpop.f32.mrf.mxu0
      %v3006 = vadd.f32 0.0, %v3005
      %v3007 = vpop.f32.mrf.mxu0
      %3008 = vmatprep.mubr.f32.mxu0 0.0
      %3009 = vmatmul.mubr.f32.gmra.mxu0 %v2353
      %v3010 = vpop.f32.mrf.mxu0
      %v3011 = vadd.f32 0.0, %v3010
      %v3012 = vpop.f32.mrf.mxu0
      %3013 = vmatprep.mubr.f32.mxu0 0.0
      %3014 = vmatmul.mubr.f32.gmra.mxu0 %v2356
      %v3015 = vpop.f32.mrf.mxu0
      %v3016 = vadd.f32 0.0, %v3015
      %v3017 = vpop.f32.mrf.mxu0
      %3018 = vmatprep.mubr.f32.mxu0 0.0
      %3019 = vmatmul.mubr.f32.gmra.mxu0 %v2359
      %v3020 = vpop.f32.mrf.mxu0
      %v3021 = vadd.f32 0.0, %v3020
      %v3022 = vpop.f32.mrf.mxu0
      %3023 = vmatprep.mubr.f32.mxu0 0.0
      %3024 = vmatmul.mubr.f32.gmra.mxu0 %v2362
      %v3025 = vpop.f32.mrf.mxu0
      %v3026 = vadd.f32 0.0, %v3025
      %v3027 = vpop.f32.mrf.mxu0
      %3028 = vmatprep.mubr.f32.mxu0 0.0
      %3029 = vmatmul.mubr.f32.gmra.mxu0 %v2365
      %v3030 = vpop.f32.mrf.mxu0
      %v3031 = vadd.f32 0.0, %v3030
      %v3032 = vpop.f32.mrf.mxu0
      %3033 = vmatprep.mubr.f32.mxu0 0.0
      %3034 = vmatmul.mubr.f32.gmra.mxu0 %v2368
      %v3035 = vpop.f32.mrf.mxu0
      %v3036 = vadd.f32 0.0, %v3035
      %v3037 = vpop.f32.mrf.mxu0
      %3038 = vmatprep.mubr.f32.mxu0 0.0
      %3039 = vmatmul.mubr.f32.gmra.mxu0 %v2371
      %v3040 = vpop.f32.mrf.mxu0
      %v3041 = vadd.f32 0.0, %v3040
      %v3042 = vpop.f32.mrf.mxu0
      %3043 = vmatprep.mubr.f32.mxu0 0.0
      %3044 = vmatmul.mubr.f32.gmra.mxu0 %v2374
      %v3045 = vpop.f32.mrf.mxu0
      %v3046 = vadd.f32 0.0, %v3045
      %v3047 = vpop.f32.mrf.mxu0
      %3048 = vmatprep.mubr.f32.mxu0 0.0
      %3049 = vmatmul.mubr.f32.gmra.mxu0 %v2377
      %v3050 = vpop.f32.mrf.mxu0
      %v3051 = vadd.f32 0.0, %v3050
      %v3052 = vpop.f32.mrf.mxu0
      %3053 = vmatprep.mubr.f32.mxu0 0.0
      %3054 = vmatmul.mubr.f32.gmra.mxu0 %v2380
      %v3055 = vpop.f32.mrf.mxu0
      %v3056 = vadd.f32 0.0, %v3055
      %v3057 = vpop.f32.mrf.mxu0
      %3058 = vmatprep.mubr.f32.mxu0 0.0
      %3059 = vmatmul.mubr.f32.gmra.mxu0 %v2383
      %v3060 = vpop.f32.mrf.mxu0
      %v3061 = vadd.f32 0.0, %v3060
      %v3062 = vpop.f32.mrf.mxu0
      %3063 = vmatprep.mubr.f32.mxu0 0.0
      %3064 = vmatmul.mubr.f32.gmra.mxu0 %v2386
      %v3065 = vpop.f32.mrf.mxu0
      %v3066 = vadd.f32 0.0, %v3065
      %v3067 = vpop.f32.mrf.mxu0
      %3068 = vmatprep.mubr.f32.mxu0 0.0
      %3069 = vmatmul.mubr.f32.gmra.mxu0 %v2389
      %v3070 = vpop.f32.mrf.mxu0
      %v3071 = vadd.f32 0.0, %v3070
      %v3072 = vpop.f32.mrf.mxu0
      %3073 = vmatprep.mubr.f32.mxu0 0.0
      %3074 = vmatmul.mubr.f32.gmra.mxu0 %v2392
      %v3075 = vpop.f32.mrf.mxu0
      %v3076 = vadd.f32 0.0, %v3075
      %v3077 = vpop.f32.mrf.mxu0
      %3078 = vmatprep.mubr.f32.mxu0 0.0
      %3079 = vmatmul.mubr.f32.gmra.mxu0 %v2395
      %v3080 = vpop.f32.mrf.mxu0
      %v3081 = vadd.f32 0.0, %v3080
      %v3082 = vpop.f32.mrf.mxu0
      %3083 = vmatprep.mubr.f32.mxu0 0.0
      %3084 = vmatmul.mubr.f32.gmra.mxu0 %v2398
      %v3085 = vpop.f32.mrf.mxu0
      %v3086 = vadd.f32 0.0, %v3085
      %v3087 = vpop.f32.mrf.mxu0
      %3088 = vmatprep.mubr.f32.mxu0 0.0
      %3089 = vmatmul.mubr.f32.gmra.mxu0 %v2866
      %v3090 = vpop.f32.mrf.mxu0
      %v3091 = vadd.f32 0.0, %v3090
      %v3092 = vpop.f32.mrf.mxu0
      %3093 = vmatprep.mubr.f32.mxu0 0.0
      %3094 = vmatmul.mubr.f32.gmra.mxu0 %v2869
      %v3095 = vpop.f32.mrf.mxu0
      %v3096 = vadd.f32 0.0, %v3095
      %v3097 = vpop.f32.mrf.mxu0
      %3098 = vdwg.mxu0
      %v3099 = vadd.f32 %v2704, %v2941
      %v3100 = vadd.f32 %v2709, %v2946
      %v3101 = vadd.f32 %v2714, %v2951
      %v3102 = vadd.f32 %v2719, %v2956
      %v3103 = vadd.f32 %v2724, %v2961
      %v3104 = vadd.f32 %v2729, %v2966
      %v3105 = vadd.f32 %v2734, %v2971
      %v3106 = vadd.f32 %v2739, %v2976
      %v3107 = vadd.f32 %v2744, %v2981
      %v3108 = vadd.f32 %v2749, %v2986
      %v3109 = vadd.f32 %v2754, %v2991
      %v3110 = vadd.f32 %v2759, %v2996
      %v3111 = vadd.f32 %v2764, %v3001
      %v3112 = vadd.f32 %v2769, %v3006
      %v3113 = vadd.f32 %v2774, %v3011
      %v3114 = vadd.f32 %v2779, %v3016
      %v3115 = vadd.f32 %v2784, %v3021
      %v3116 = vadd.f32 %v2789, %v3026
      %v3117 = vadd.f32 %v2794, %v3031
      %v3118 = vadd.f32 %v2799, %v3036
      %v3119 = vadd.f32 %v2804, %v3041
      %v3120 = vadd.f32 %v2809, %v3046
      %v3121 = vadd.f32 %v2814, %v3051
      %v3122 = vadd.f32 %v2819, %v3056
      %v3123 = vadd.f32 %v2824, %v3061
      %v3124 = vadd.f32 %v2829, %v3066
      %v3125 = vadd.f32 %v2834, %v3071
      %v3126 = vadd.f32 %v2839, %v3076
      %v3127 = vadd.f32 %v2844, %v3081
      %v3128 = vadd.f32 %v2849, %v3086
      %v3129 = vadd.f32 %v2854, %v3091
      %v3130 = vadd.f32 %v2859, %v3096
      %v3131 = vld [vmem:[%s5] sm:$0x1]
      %v3133 = vlaneseq
      %v3134 = vshrl.u32 %v3133, 7
      %v3135 = vsub.s32 0, %v3134
      %v3136 = vrot.slane %v3131, %v3135
      %v3138 = vmul.f32 %v3099, %v3136
      %v3139 = vmul.f32 %v3100, %v3136
      %v3140 = vmul.f32 %v3101, %v3136
      %v3141 = vmul.f32 %v3102, %v3136
      %v3142 = vmul.f32 %v3103, %v3136
      %v3143 = vmul.f32 %v3104, %v3136
      %v3144 = vmul.f32 %v3105, %v3136
      %v3145 = vmul.f32 %v3106, %v3136
      %v3146 = vmul.f32 %v3107, %v3136
      %v3147 = vmul.f32 %v3108, %v3136
      %v3148 = vmul.f32 %v3109, %v3136
      %v3149 = vmul.f32 %v3110, %v3136
      %v3150 = vmul.f32 %v3111, %v3136
      %v3151 = vmul.f32 %v3112, %v3136
      %v3152 = vmul.f32 %v3113, %v3136
      %v3153 = vmul.f32 %v3114, %v3136
      %v3154 = vmul.f32 %v3115, %v3136
      %v3155 = vmul.f32 %v3116, %v3136
      %v3156 = vmul.f32 %v3117, %v3136
      %v3157 = vmul.f32 %v3118, %v3136
      %v3158 = vmul.f32 %v3119, %v3136
      %v3159 = vmul.f32 %v3120, %v3136
      %v3160 = vmul.f32 %v3121, %v3136
      %v3161 = vmul.f32 %v3122, %v3136
      %v3162 = vmul.f32 %v3123, %v3136
      %v3163 = vmul.f32 %v3124, %v3136
      %v3164 = vmul.f32 %v3125, %v3136
      %v3165 = vmul.f32 %v3126, %v3136
      %v3166 = vmul.f32 %v3127, %v3136
      %v3167 = vmul.f32 %v3128, %v3136
      %v3168 = vmul.f32 %v3129, %v3136
      %v3169 = vmul.f32 %v3130, %v3136
      %v3170 = vld [vmem:[%s6] sm:$0x1]
      %v3172 = vlaneseq
      %v3173 = vshrl.u32 %v3172, 7
      %v3174 = vsub.s32 0, %v3173
      %v3175 = vrot.slane %v3170, %v3174
      %v3177 = vadd.f32 %v3138, %v3175
      %v3178 = vadd.f32 %v3139, %v3175
      %v3179 = vadd.f32 %v3140, %v3175
      %v3180 = vadd.f32 %v3141, %v3175
      %v3181 = vadd.f32 %v3142, %v3175
      %v3182 = vadd.f32 %v3143, %v3175
      %v3183 = vadd.f32 %v3144, %v3175
      %v3184 = vadd.f32 %v3145, %v3175
      %v3185 = vadd.f32 %v3146, %v3175
      %v3186 = vadd.f32 %v3147, %v3175
      %v3187 = vadd.f32 %v3148, %v3175
      %v3188 = vadd.f32 %v3149, %v3175
      %v3189 = vadd.f32 %v3150, %v3175
      %v3190 = vadd.f32 %v3151, %v3175
      %v3191 = vadd.f32 %v3152, %v3175
      %v3192 = vadd.f32 %v3153, %v3175
      %v3193 = vadd.f32 %v3154, %v3175
      %v3194 = vadd.f32 %v3155, %v3175
      %v3195 = vadd.f32 %v3156, %v3175
      %v3196 = vadd.f32 %v3157, %v3175
      %v3197 = vadd.f32 %v3158, %v3175
      %v3198 = vadd.f32 %v3159, %v3175
      %v3199 = vadd.f32 %v3160, %v3175
      %v3200 = vadd.f32 %v3161, %v3175
      %v3201 = vadd.f32 %v3162, %v3175
      %v3202 = vadd.f32 %v3163, %v3175
      %v3203 = vadd.f32 %v3164, %v3175
      %v3204 = vadd.f32 %v3165, %v3175
      %v3205 = vadd.f32 %v3166, %v3175
      %v3206 = vadd.f32 %v3167, %v3175
      %v3207 = vadd.f32 %v3168, %v3175
      %v3208 = vadd.f32 %v3169, %v3175
      %v3209 = vadd.f32 %v3177, %v279
      %v3210 = vadd.f32 %v3178, %v280
      %v3211 = vadd.f32 %v3179, %v281
      %v3212 = vadd.f32 %v3180, %v282
      %v3213 = vadd.f32 %v3181, %v283
      %v3214 = vadd.f32 %v3182, %v284
      %v3215 = vadd.f32 %v3183, %v285
      %v3216 = vadd.f32 %v3184, %v286
      %v3217 = vadd.f32 %v3185, %v287
      %v3218 = vadd.f32 %v3186, %v288
      %v3219 = vadd.f32 %v3187, %v289
      %v3220 = vadd.f32 %v3188, %v290
      %v3221 = vadd.f32 %v3189, %v291
      %v3222 = vadd.f32 %v3190, %v292
      %v3223 = vadd.f32 %v3191, %v293
      %v3224 = vadd.f32 %v3192, %v294
      %v3225 = vadd.f32 %v3193, %v295
      %v3226 = vadd.f32 %v3194, %v296
      %v3227 = vadd.f32 %v3195, %v297
      %v3228 = vadd.f32 %v3196, %v298
      %v3229 = vadd.f32 %v3197, %v299
      %v3230 = vadd.f32 %v3198, %v300
      %v3231 = vadd.f32 %v3199, %v301
      %v3232 = vadd.f32 %v3200, %v302
      %v3233 = vadd.f32 %v3201, %v303
      %v3234 = vadd.f32 %v3202, %v304
      %v3235 = vadd.f32 %v3203, %v305
      %v3236 = vadd.f32 %v3204, %v306
      %v3237 = vadd.f32 %v3205, %v307
      %v3238 = vadd.f32 %v3206, %v308
      %v3239 = vadd.f32 %v3207, %v309
      %v3240 = vadd.f32 %v3208, %v310
      %v3241 = vmax.f32 %v3209, 0.0
      %v3242 = vmax.f32 %v3210, 0.0
      %v3243 = vmax.f32 %v3211, 0.0
      %v3244 = vmax.f32 %v3212, 0.0
      %v3245 = vmax.f32 %v3213, 0.0
      %v3246 = vmax.f32 %v3214, 0.0
      %v3247 = vmax.f32 %v3215, 0.0
      %v3248 = vmax.f32 %v3216, 0.0
      %v3249 = vmax.f32 %v3217, 0.0
      %v3250 = vmax.f32 %v3218, 0.0
      %v3251 = vmax.f32 %v3219, 0.0
      %v3252 = vmax.f32 %v3220, 0.0
      %v3253 = vmax.f32 %v3221, 0.0
      %v3254 = vmax.f32 %v3222, 0.0
      %v3255 = vmax.f32 %v3223, 0.0
      %v3256 = vmax.f32 %v3224, 0.0
      %v3257 = vmax.f32 %v3225, 0.0
      %v3258 = vmax.f32 %v3226, 0.0
      %v3259 = vmax.f32 %v3227, 0.0
      %v3260 = vmax.f32 %v3228, 0.0
      %v3261 = vmax.f32 %v3229, 0.0
      %v3262 = vmax.f32 %v3230, 0.0
      %v3263 = vmax.f32 %v3231, 0.0
      %v3264 = vmax.f32 %v3232, 0.0
      %v3265 = vmax.f32 %v3233, 0.0
      %v3266 = vmax.f32 %v3234, 0.0
      %v3267 = vmax.f32 %v3235, 0.0
      %v3268 = vmax.f32 %v3236, 0.0
      %v3269 = vmax.f32 %v3237, 0.0
      %v3270 = vmax.f32 %v3238, 0.0
      %v3271 = vmax.f32 %v3239, 0.0
      %v3272 = vmax.f32 %v3240, 0.0
      %3273 = vst.msk [vmem:[%s278] sm:$0xff] %vm311, %v3241
      %3274 = vst.msk [vmem:[%s278 + $0x8] sm:$0xff] %vm311, %v3242
      %3275 = vst.msk [vmem:[%s278 + $0x10] sm:$0xff] %vm311, %v3243
      %3276 = vst.msk [vmem:[%s278 + $0x18] sm:$0xff] %vm311, %v3244
      %3277 = vst.msk [vmem:[%s278 + $0x20] sm:$0xff] %vm311, %v3245
      %3278 = vst.msk [vmem:[%s278 + $0x28] sm:$0xff] %vm311, %v3246
      %3279 = vst.msk [vmem:[%s278 + $0x30] sm:$0xff] %vm311, %v3247
      %3280 = vst.msk [vmem:[%s278 + $0x38] sm:$0xff] %vm311, %v3248
      %3281 = vst.msk [vmem:[%s278 + $0x40] sm:$0xff] %vm311, %v3249
      %3282 = vst.msk [vmem:[%s278 + $0x48] sm:$0xff] %vm311, %v3250
      %3283 = vst.msk [vmem:[%s278 + $0x50] sm:$0xff] %vm311, %v3251
      %3284 = vst.msk [vmem:[%s278 + $0x58] sm:$0xff] %vm311, %v3252
      %3285 = vst.msk [vmem:[%s278 + $0x60] sm:$0xff] %vm311, %v3253
      %3286 = vst.msk [vmem:[%s278 + $0x68] sm:$0xff] %vm311, %v3254
      %3287 = vst.msk [vmem:[%s278 + $0x70] sm:$0xff] %vm311, %v3255
      %3288 = vst.msk [vmem:[%s278 + $0x78] sm:$0xff] %vm311, %v3256
      %3289 = vst.msk [vmem:[%s278 + $0x80] sm:$0xff] %vm311, %v3257
      %3290 = vst.msk [vmem:[%s278 + $0x88] sm:$0xff] %vm311, %v3258
      %3291 = vst.msk [vmem:[%s278 + $0x90] sm:$0xff] %vm311, %v3259
      %3292 = vst.msk [vmem:[%s278 + $0x98] sm:$0xff] %vm311, %v3260
      %3293 = vst.msk [vmem:[%s278 + $0xa0] sm:$0xff] %vm311, %v3261
      %3294 = vst.msk [vmem:[%s278 + $0xa8] sm:$0xff] %vm311, %v3262
      %3295 = vst.msk [vmem:[%s278 + $0xb0] sm:$0xff] %vm311, %v3263
      %3296 = vst.msk [vmem:[%s278 + $0xb8] sm:$0xff] %vm311, %v3264
      %3297 = vst.msk [vmem:[%s278 + $0xc0] sm:$0xff] %vm311, %v3265
      %3298 = vst.msk [vmem:[%s278 + $0xc8] sm:$0xff] %vm311, %v3266
      %3299 = vst.msk [vmem:[%s278 + $0xd0] sm:$0xff] %vm311, %v3267
      %3300 = vst.msk [vmem:[%s278 + $0xd8] sm:$0xff] %vm311, %v3268
      %3301 = vst.msk [vmem:[%s278 + $0xe0] sm:$0xff] %vm311, %v3269
      %3302 = vst.msk [vmem:[%s278 + $0xe8] sm:$0xff] %vm311, %v3270
      %3303 = vst.msk [vmem:[%s278 + $0xf0] sm:$0xff] %vm311, %v3271
      %3304 = vst.msk [vmem:[%s278 + $0xf8] sm:$0xff] %vm311, %v3272
      %p3305 = scmp.lt.s32.totalorder %s18, 1
      %s3306 = scalar_select %p3305, %s18, 1
      %s3307 = smul.addr %s3306, 32
      %s3308 = smul.addr %s3307, 8
      %s3309 = scalar_lea.vmem %s7, %s3308
      // Predicated region
      $region49: #{tpu_custom_call.1} parent=47 // pred_check
        %p3310 = pneg %p188
      $region50: #{tpu_custom_call.1} parent=47 // pred_check_branch
        %3312 = sbr.rel (%p3310) target = $region52
      $region51: #{tpu_custom_call.1} parent=47 // pred_region
        _
      $region52: #{tpu_custom_call.1} parent=47 // pred_fallthru
        _
    $region48: #{tpu_custom_call.1} parent=5 // pred_fallthru
      _
    %p3313 = scmp.le.s32.totalorder 2, %s13
    // Predicated region
    $region53: #{tpu_custom_call.1} parent=5 // pred_check
      %p3314 = pneg %p3313
    $region54: #{tpu_custom_call.1} parent=5 // pred_check_branch
      %3316 = sbr.rel (%p3314) target = $region56
    $region55: #{tpu_custom_call.1} parent=5 // pred_region
      %s3317 = ssub.s32 %s13, 2
      // Predicated region
      $region57: #{tpu_custom_call.1} parent=55 // pred_check
        %p3318 = pneg %p194
      $region58: #{tpu_custom_call.1} parent=55 // pred_check_branch
        %3320 = sbr.rel (%p3318) target = $region60
      $region59: #{tpu_custom_call.1} parent=55 // pred_region
        %p3321 = scmp.lt.s32.totalorder %s19, 1
        %s3322 = scalar_select %p3321, %s19, 1
        %s3323 = smul.addr %s3322, 32
        %s3324 = smul.addr %s3323, 8
        %s3325 = scalar_lea.vmem %s7, %s3324
      $region60: #{tpu_custom_call.1} parent=55 // pred_fallthru
        _
    $region56: #{tpu_custom_call.1} parent=5 // pred_fallthru
      _
  $region6: #{tpu_custom_call.1} parent=0 // loop_footer
    %s17 = sadd.s32 1, %s13
  $region7: #{tpu_custom_call.1} parent=0 // loop_footer_branch
    %12 = sbr.rel target = $region3
  $region8: #{tpu_custom_call.1} parent=0 // loop_exit
    _

</llo_original>
